<compile_context>
chip_gen: v7x
topology: tpu7x:2x2x1
jax: 0.10.0
libtpu: 0.0.40
codegen_flags: <defaults>
</compile_context>

<pallas_src>
import jax
import jax.numpy as jnp
from jax import lax
from jax.experimental import pallas as pl
from jax.experimental.pallas import tpu as pltpu

BN_EPS = 1e-5
K_NEIGHBORS = 5      # ContextualSimilarity.__call__ hard-codes self.k = 5
SIGMA = 1.0          # PairwiseSimilarity default
ALPHA = 0.5          # ReconPatch default


# ----------------------------------------------------------------------------
# Fused kernel: embedding MLP -> projection MLP (z) -> ema-projection MLP
#               -> similarity (w).  Single grid step, h cached in VMEM.
# ----------------------------------------------------------------------------
def _reconpatch_kernel(feat_ref,
                       ew1, eb1, eg, ebt, ew2, eb2,      # embedding_layer
                       mw1, mb1, mg, mbt, mw2, mb2,      # ema_projection_layer
                       pw1, pb1, pg, pbt, pw2, pb2,      # projection_layer
                       z_ref, w_ref,
                       h_scr):
    def mlp(x, w1, b1, g, beta, w2, b2):
        # Linear -> BatchNorm1d (training: biased batch stats) -> ReLU -> Linear
        a = jnp.dot(x, w1[...], preferred_element_type=jnp.float32) + b1[...]
        mu = jnp.mean(a, axis=0, keepdims=True)
        var = jnp.mean((a - mu) ** 2, axis=0, keepdims=True)
        a = (a - mu) * lax.rsqrt(var + BN_EPS) * g[...] + beta[...]
        a = jnp.maximum(a, 0.0)
        return jnp.dot(a, w2[...], preferred_element_type=jnp.float32) + b2[...]

    # h = embedding_layer(feat); reused by both projection heads (VMEM-resident)
    h_scr[...] = mlp(feat_ref[...], ew1, eb1, eg, ebt, ew2, eb2)
    h = h_scr[...]

    # z = projection_layer(h) — emitted first so h is dead before the NxN block.
    z_ref[...] = mlp(h, pw1, pb1, pg, pbt, pw2, pb2)

    # z_ema = ema_projection_layer(h)   (torch no_grad branch)
    z_ema = mlp(h, mw1, mb1, mg, mbt, mw2, mb2)
    n = z_ema.shape[0]

    # --- pairwise squared L2 via Gram trick (no NxN transposes) -------------
    gram = lax.dot_general(z_ema, z_ema, (((1,), (1,)), ((), ())),
                           preferred_element_type=jnp.float32)       # z @ z.T
    sq = jnp.sum(z_ema * z_ema, axis=-1, keepdims=True)              # [N, 1]
    d = jnp.maximum(sq + jnp.transpose(sq) - 2.0 * gram, 0.0)        # [N, N]
    row = lax.broadcasted_iota(jnp.int32, (n, n), 0)
    col = lax.broadcasted_iota(jnp.int32, (n, n), 1)
    d = jnp.where(row == col, 0.0, d)                                # exact 0 diag

    # --- k-th smallest distance per row (k=5, duplicates counted) -----------
    # Counting scan: advance to the next distinct value while fewer than k
    # elements lie at or below the current threshold.  5 mins + 4 sums, no
    # NxN int32 temporaries.
    kth = jnp.full((n, 1), -jnp.inf, dtype=jnp.float32)
    cnt = jnp.zeros((n, 1), dtype=jnp.float32)
    for it in range(K_NEIGHBORS):
        nxt = jnp.min(jnp.where(d > kth, d, jnp.inf), axis=-1, keepdims=True)
        adv = cnt < float(K_NEIGHBORS)
        kth = jnp.where(adv, nxt, kth)
        if it + 1 < K_NEIGHBORS:
            cnt = jnp.where(
                adv,
                jnp.sum((d <= nxt).astype(jnp.float32), axis=-1, keepdims=True),
                cnt)

    # --- contextual similarity ----------------------------------------------
    mask_f = (d <= kth).astype(jnp.float32)                          # [N, N] 0/1
    mask_bf = mask_f.astype(jnp.bfloat16)                            # exact 0/1
    counts = lax.dot_general(mask_bf, mask_bf, (((1,), (1,)), ((), ())),
                             preferred_element_type=jnp.float32)     # mask @ mask.T
    inv_msum = pl.reciprocal(jnp.sum(mask_f, axis=-1, keepdims=True), approx=False)
    s = counts * inv_msum

    # R = mask * mask.T; d is bitwise symmetric, so R[i,j] = (d<=kth_i)&(d<=kth_j)
    r_f = mask_f * (d <= jnp.transpose(kth)).astype(jnp.float32)
    sr = lax.dot_general(s, r_f, (((1,), (1,)), ((), ())),
                         preferred_element_type=jnp.float32)         # s @ R.T
    inv_rsum = pl.reciprocal(jnp.sum(r_f, axis=-1, keepdims=True), approx=False)
    s2 = sr * inv_rsum
    c_sim = 0.5 * (s2 + jnp.transpose(s2))

    # --- blend with pairwise similarity, single direct store ----------------
    p_sim = jnp.exp(d * (-1.0 / SIGMA))
    w_ref[...] = ALPHA * p_sim + (1.0 - ALPHA) * c_sim


def recon_patch_forward(feat, params):
    n = feat.shape[0]
    emb = params["embedding"]
    ema = params["ema_projection"]
    proj = params["projection"]
    d_proj = emb[4].shape[1]     # output width of embedding MLP (= h width)

    args = (feat, *emb, *ema, *proj)
    in_specs = [pl.BlockSpec(a.shape, lambda i: (0, 0)) for a in args]

    z, w = pl.pallas_call(
        _reconpatch_kernel,
        out_shape=(jax.ShapeDtypeStruct((n, d_proj), jnp.float32),
                   jax.ShapeDtypeStruct((n, n), jnp.float32)),
        grid=(1,),
        in_specs=in_specs,
        out_specs=[pl.BlockSpec((n, d_proj), lambda i: (0, 0)),
                   pl.BlockSpec((n, n), lambda i: (0, 0))],
        scratch_shapes=[pltpu.VMEM((n, d_proj), jnp.float32)],
        compiler_params=pltpu.CompilerParams(
            dimension_semantics=("arbitrary",),
            vmem_limit_bytes=32 * 1024 * 1024),
    )(*args)
    return z, w


# ----------------------------------------------------------------------------
# Deterministic parameter init.  torch Linear stores [out, in]; here weights
# are stored [in, out] for x @ W.  BN gamma=1, beta=0 (module defaults).
# ----------------------------------------------------------------------------
def init_mlp_params(key, d_in, d_hidden, d_out):
    k1, k2, k3, k4 = jax.random.split(key, 4)
    w1 = jax.random.normal(k1, (d_in, d_hidden), jnp.float32) / jnp.sqrt(d_in)
    b1 = 0.01 * jax.random.normal(k2, (1, d_hidden), jnp.float32)
    g = jnp.ones((1, d_hidden), jnp.float32)
    beta = jnp.zeros((1, d_hidden), jnp.float32)
    w2 = jax.random.normal(k3, (d_hidden, d_out), jnp.float32) / jnp.sqrt(d_hidden)
    b2 = 0.01 * jax.random.normal(k4, (1, d_out), jnp.float32)
    return (w1, b1, g, beta, w2, b2)


# Pure-JAX reference mirroring the torch code (diff-based l2, sort-based topk).
def ref_forward(feat, params):
    def mlp(x, p):
        w1, b1, g, beta, w2, b2 = p
        h = x @ w1 + b1
        mean = h.mean(0, keepdims=True)
        var = ((h - mean) ** 2).mean(0, keepdims=True)
        h = (h - mean) / jnp.sqrt(var + BN_EPS) * g + beta
        return jnp.maximum(h, 0.0) @ w2 + b2

    def l2(z):
        diff = z[:, None, :] - z[None, :, :]
        return jnp.sum(diff ** 2, axis=-1)

    h = mlp(feat, params["embedding"])
    z_ema = mlp(h, params["ema_projection"])
    d = l2(z_ema)
    p_sim = jnp.exp(-d / SIGMA)
    kth = jnp.sort(d, axis=-1)[:, K_NEIGHBORS - 1:K_NEIGHBORS]
    mask = (d <= kth).astype(jnp.float32)
    s = (mask @ mask.T) / mask.sum(-1, keepdims=True)
    r = mask * mask.T
    s = (s @ r.T) / r.sum(-1, keepdims=True)
    c_sim = 0.5 * (s + s.T)
    w = ALPHA * p_sim + (1.0 - ALPHA) * c_sim
    z = mlp(h, params["projection"])
    return z, w


if __name__ == "__main__":
    N, D_IN, D_HID, D_PROJ = 128, 128, 256, 128   # small, (8,128)-aligned shapes
    key = jax.random.PRNGKey(0)
    kf, ke, kp, kep = jax.random.split(key, 4)
    feat = jax.random.normal(kf, (N, D_IN), jnp.float32)
    params = {
        "embedding": init_mlp_params(ke, D_IN, D_HID, D_PROJ),
        "projection": init_mlp_params(kp, D_PROJ, D_HID, D_PROJ),
        "ema_projection": init_mlp_params(kep, D_PROJ, D_HID, D_PROJ),
    }

    z, w = recon_patch_forward(feat, params)
    jax.block_until_ready((z, w))

    z_ref, w_ref = ref_forward(feat, params)
    assert z.shape == (N, D_PROJ) and w.shape == (N, N)
    assert jnp.allclose(z, z_ref, atol=1e-3, rtol=1e-3)
    assert jnp.allclose(w, w_ref, atol=1e-3, rtol=1e-3)
    print("KERNEL_OK")
</pallas_src>

<mosaic_0001>
module attributes {stable_mosaic.version = 11 : i64} {
  func.func @_reconpatch_kernel(%arg0: i32, %arg1: memref<128x128xf32, #tpu.memory_space<vmem>>, %arg2: memref<128x256xf32, #tpu.memory_space<vmem>>, %arg3: memref<1x256xf32, #tpu.memory_space<vmem>>, %arg4: memref<1x256xf32, #tpu.memory_space<vmem>>, %arg5: memref<1x256xf32, #tpu.memory_space<vmem>>, %arg6: memref<256x128xf32, #tpu.memory_space<vmem>>, %arg7: memref<1x128xf32, #tpu.memory_space<vmem>>, %arg8: memref<128x256xf32, #tpu.memory_space<vmem>>, %arg9: memref<1x256xf32, #tpu.memory_space<vmem>>, %arg10: memref<1x256xf32, #tpu.memory_space<vmem>>, %arg11: memref<1x256xf32, #tpu.memory_space<vmem>>, %arg12: memref<256x128xf32, #tpu.memory_space<vmem>>, %arg13: memref<1x128xf32, #tpu.memory_space<vmem>>, %arg14: memref<128x256xf32, #tpu.memory_space<vmem>>, %arg15: memref<1x256xf32, #tpu.memory_space<vmem>>, %arg16: memref<1x256xf32, #tpu.memory_space<vmem>>, %arg17: memref<1x256xf32, #tpu.memory_space<vmem>>, %arg18: memref<256x128xf32, #tpu.memory_space<vmem>>, %arg19: memref<1x128xf32, #tpu.memory_space<vmem>>, %arg20: memref<128x128xf32, #tpu.memory_space<vmem>>, %arg21: memref<128x128xf32, #tpu.memory_space<vmem>>, %arg22: memref<128x128xf32, #tpu.memory_space<vmem>>) attributes {dimension_semantics = [#tpu.dimension_semantics<arbitrary>], iteration_bounds = array<i64: 1>, scalar_prefetch = 0 : i64, scratch_operands = 1 : i64, tpu.core_type = #tpu.core_type<tc>, window_params = [{pipeline_mode = #tpu.pipeline_mode<synchronous>, transform_indices = @transform_0, window_bounds = array<i64: 128, 128>}, {pipeline_mode = #tpu.pipeline_mode<synchronous>, transform_indices = @transform_1, window_bounds = array<i64: 128, 256>}, {pipeline_mode = #tpu.pipeline_mode<synchronous>, transform_indices = @transform_2, window_bounds = array<i64: 1, 256>}, {pipeline_mode = #tpu.pipeline_mode<synchronous>, transform_indices = @transform_3, window_bounds = array<i64: 1, 256>}, {pipeline_mode = #tpu.pipeline_mode<synchronous>, transform_indices = @transform_4, window_bounds = array<i64: 1, 256>}, {pipeline_mode = #tpu.pipeline_mode<synchronous>, transform_indices = @transform_5, window_bounds = array<i64: 256, 128>}, {pipeline_mode = #tpu.pipeline_mode<synchronous>, transform_indices = @transform_6, window_bounds = array<i64: 1, 128>}, {pipeline_mode = #tpu.pipeline_mode<synchronous>, transform_indices = @transform_7, window_bounds = array<i64: 128, 256>}, {pipeline_mode = #tpu.pipeline_mode<synchronous>, transform_indices = @transform_8, window_bounds = array<i64: 1, 256>}, {pipeline_mode = #tpu.pipeline_mode<synchronous>, transform_indices = @transform_9, window_bounds = array<i64: 1, 256>}, {pipeline_mode = #tpu.pipeline_mode<synchronous>, transform_indices = @transform_10, window_bounds = array<i64: 1, 256>}, {pipeline_mode = #tpu.pipeline_mode<synchronous>, transform_indices = @transform_11, window_bounds = array<i64: 256, 128>}, {pipeline_mode = #tpu.pipeline_mode<synchronous>, transform_indices = @transform_12, window_bounds = array<i64: 1, 128>}, {pipeline_mode = #tpu.pipeline_mode<synchronous>, transform_indices = @transform_13, window_bounds = array<i64: 128, 256>}, {pipeline_mode = #tpu.pipeline_mode<synchronous>, transform_indices = @transform_14, window_bounds = array<i64: 1, 256>}, {pipeline_mode = #tpu.pipeline_mode<synchronous>, transform_indices = @transform_15, window_bounds = array<i64: 1, 256>}, {pipeline_mode = #tpu.pipeline_mode<synchronous>, transform_indices = @transform_16, window_bounds = array<i64: 1, 256>}, {pipeline_mode = #tpu.pipeline_mode<synchronous>, transform_indices = @transform_17, window_bounds = array<i64: 256, 128>}, {pipeline_mode = #tpu.pipeline_mode<synchronous>, transform_indices = @transform_18, window_bounds = array<i64: 1, 128>}, {pipeline_mode = #tpu.pipeline_mode<synchronous>, transform_indices = @transform_19, window_bounds = array<i64: 128, 128>}, {pipeline_mode = #tpu.pipeline_mode<synchronous>, transform_indices = @transform_20, window_bounds = array<i64: 128, 128>}]} {
    %c0 = arith.constant 0 : index
    %c0_0 = arith.constant 0 : index
    %0 = vector.load %arg1[%c0, %c0_0] : memref<128x128xf32, #tpu.memory_space<vmem>>, vector<128x128xf32>
    %c0_1 = arith.constant 0 : index
    %c0_2 = arith.constant 0 : index
    %1 = vector.load %arg2[%c0_1, %c0_2] : memref<128x256xf32, #tpu.memory_space<vmem>>, vector<128x256xf32>
    %cst = arith.constant dense<0.000000e+00> : vector<128x256xf32>
    %2 = tpu.matmul %0, %1, %cst {dimension_numbers = #tpu.dot_dimension_numbers<[1], [0], [0], [1], [0, 0, 1, 1], [], []>} : vector<128x128xf32>, vector<128x256xf32>, vector<128x256xf32> -> vector<128x256xf32>
    %c0_3 = arith.constant 0 : index
    %c0_4 = arith.constant 0 : index
    %3 = vector.load %arg3[%c0_3, %c0_4] : memref<1x256xf32, #tpu.memory_space<vmem>>, vector<1x256xf32>
    %4 = vector.broadcast %3 : vector<1x256xf32> to vector<128x256xf32>
    %5 = arith.addf %2, %4 : vector<128x256xf32>
    %cst_5 = arith.constant dense<0.000000e+00> : vector<256xf32>
    %6 = vector.multi_reduction <add>, %5, %cst_5 [0] : vector<128x256xf32> to vector<256xf32>
    %7 = vector.shape_cast %6 : vector<256xf32> to vector<1x256xf32>
    %cst_6 = arith.constant 1.280000e+02 : f32
    %8 = vector.broadcast %cst_6 : f32 to vector<1x256xf32>
    %9 = arith.divf %7, %8 : vector<1x256xf32>
    %10 = vector.broadcast %9 : vector<1x256xf32> to vector<128x256xf32>
    %11 = arith.subf %5, %10 : vector<128x256xf32>
    %12 = arith.mulf %11, %11 : vector<128x256xf32>
    %cst_7 = arith.constant dense<0.000000e+00> : vector<256xf32>
    %13 = vector.multi_reduction <add>, %12, %cst_7 [0] : vector<128x256xf32> to vector<256xf32>
    %14 = vector.shape_cast %13 : vector<256xf32> to vector<1x256xf32>
    %cst_8 = arith.constant 1.280000e+02 : f32
    %15 = vector.broadcast %cst_8 : f32 to vector<1x256xf32>
    %16 = arith.divf %14, %15 : vector<1x256xf32>
    %17 = vector.broadcast %9 : vector<1x256xf32> to vector<128x256xf32>
    %18 = arith.subf %5, %17 : vector<128x256xf32>
    %cst_9 = arith.constant 9.99999974E-6 : f32
    %19 = vector.broadcast %cst_9 : f32 to vector<1x256xf32>
    %20 = arith.addf %16, %19 : vector<1x256xf32>
    %21 = math.rsqrt %20 : vector<1x256xf32>
    %22 = vector.broadcast %21 : vector<1x256xf32> to vector<128x256xf32>
    %23 = arith.mulf %18, %22 : vector<128x256xf32>
    %c0_10 = arith.constant 0 : index
    %c0_11 = arith.constant 0 : index
    %24 = vector.load %arg4[%c0_10, %c0_11] : memref<1x256xf32, #tpu.memory_space<vmem>>, vector<1x256xf32>
    %25 = vector.broadcast %24 : vector<1x256xf32> to vector<128x256xf32>
    %26 = arith.mulf %23, %25 : vector<128x256xf32>
    %c0_12 = arith.constant 0 : index
    %c0_13 = arith.constant 0 : index
    %27 = vector.load %arg5[%c0_12, %c0_13] : memref<1x256xf32, #tpu.memory_space<vmem>>, vector<1x256xf32>
    %28 = vector.broadcast %27 : vector<1x256xf32> to vector<128x256xf32>
    %29 = arith.addf %26, %28 : vector<128x256xf32>
    %cst_14 = arith.constant 0.000000e+00 : f32
    %30 = vector.broadcast %cst_14 : f32 to vector<128x256xf32>
    %31 = arith.maximumf %29, %30 : vector<128x256xf32>
    %c0_15 = arith.constant 0 : index
    %c0_16 = arith.constant 0 : index
    %32 = vector.load %arg6[%c0_15, %c0_16] : memref<256x128xf32, #tpu.memory_space<vmem>>, vector<256x128xf32>
    %cst_17 = arith.constant dense<0.000000e+00> : vector<128x128xf32>
    %33 = tpu.matmul %31, %32, %cst_17 {dimension_numbers = #tpu.dot_dimension_numbers<[1], [0], [0], [1], [0, 0, 1, 1], [], []>} : vector<128x256xf32>, vector<256x128xf32>, vector<128x128xf32> -> vector<128x128xf32>
    %c0_18 = arith.constant 0 : index
    %c0_19 = arith.constant 0 : index
    %34 = vector.load %arg7[%c0_18, %c0_19] : memref<1x128xf32, #tpu.memory_space<vmem>>, vector<1x128xf32>
    %35 = vector.broadcast %34 : vector<1x128xf32> to vector<128x128xf32>
    %36 = arith.addf %33, %35 : vector<128x128xf32>
    %c0_20 = arith.constant 0 : index
    %c0_21 = arith.constant 0 : index
    %37 = vector.load %arg22[%c0_20, %c0_21] : memref<128x128xf32, #tpu.memory_space<vmem>>, vector<128x128xf32>
    tpu.vector_store %arg22[%c0_20, %c0_21], %36 {strides = array<i32>} : memref<128x128xf32, #tpu.memory_space<vmem>>, vector<128x128xf32>,
    %c0_22 = arith.constant 0 : index
    %c0_23 = arith.constant 0 : index
    %38 = vector.load %arg22[%c0_22, %c0_23] : memref<128x128xf32, #tpu.memory_space<vmem>>, vector<128x128xf32>
    %c0_24 = arith.constant 0 : index
    %c0_25 = arith.constant 0 : index
    %39 = vector.load %arg14[%c0_24, %c0_25] : memref<128x256xf32, #tpu.memory_space<vmem>>, vector<128x256xf32>
    %cst_26 = arith.constant dense<0.000000e+00> : vector<128x256xf32>
    %40 = tpu.matmul %38, %39, %cst_26 {dimension_numbers = #tpu.dot_dimension_numbers<[1], [0], [0], [1], [0, 0, 1, 1], [], []>} : vector<128x128xf32>, vector<128x256xf32>, vector<128x256xf32> -> vector<128x256xf32>
    %c0_27 = arith.constant 0 : index
    %c0_28 = arith.constant 0 : index
    %41 = vector.load %arg15[%c0_27, %c0_28] : memref<1x256xf32, #tpu.memory_space<vmem>>, vector<1x256xf32>
    %42 = vector.broadcast %41 : vector<1x256xf32> to vector<128x256xf32>
    %43 = arith.addf %40, %42 : vector<128x256xf32>
    %cst_29 = arith.constant dense<0.000000e+00> : vector<256xf32>
    %44 = vector.multi_reduction <add>, %43, %cst_29 [0] : vector<128x256xf32> to vector<256xf32>
    %45 = vector.shape_cast %44 : vector<256xf32> to vector<1x256xf32>
    %cst_30 = arith.constant 1.280000e+02 : f32
    %46 = vector.broadcast %cst_30 : f32 to vector<1x256xf32>
    %47 = arith.divf %45, %46 : vector<1x256xf32>
    %48 = vector.broadcast %47 : vector<1x256xf32> to vector<128x256xf32>
    %49 = arith.subf %43, %48 : vector<128x256xf32>
    %50 = arith.mulf %49, %49 : vector<128x256xf32>
    %cst_31 = arith.constant dense<0.000000e+00> : vector<256xf32>
    %51 = vector.multi_reduction <add>, %50, %cst_31 [0] : vector<128x256xf32> to vector<256xf32>
    %52 = vector.shape_cast %51 : vector<256xf32> to vector<1x256xf32>
    %cst_32 = arith.constant 1.280000e+02 : f32
    %53 = vector.broadcast %cst_32 : f32 to vector<1x256xf32>
    %54 = arith.divf %52, %53 : vector<1x256xf32>
    %55 = vector.broadcast %47 : vector<1x256xf32> to vector<128x256xf32>
    %56 = arith.subf %43, %55 : vector<128x256xf32>
    %cst_33 = arith.constant 9.99999974E-6 : f32
    %57 = vector.broadcast %cst_33 : f32 to vector<1x256xf32>
    %58 = arith.addf %54, %57 : vector<1x256xf32>
    %59 = math.rsqrt %58 : vector<1x256xf32>
    %60 = vector.broadcast %59 : vector<1x256xf32> to vector<128x256xf32>
    %61 = arith.mulf %56, %60 : vector<128x256xf32>
    %c0_34 = arith.constant 0 : index
    %c0_35 = arith.constant 0 : index
    %62 = vector.load %arg16[%c0_34, %c0_35] : memref<1x256xf32, #tpu.memory_space<vmem>>, vector<1x256xf32>
    %63 = vector.broadcast %62 : vector<1x256xf32> to vector<128x256xf32>
    %64 = arith.mulf %61, %63 : vector<128x256xf32>
    %c0_36 = arith.constant 0 : index
    %c0_37 = arith.constant 0 : index
    %65 = vector.load %arg17[%c0_36, %c0_37] : memref<1x256xf32, #tpu.memory_space<vmem>>, vector<1x256xf32>
    %66 = vector.broadcast %65 : vector<1x256xf32> to vector<128x256xf32>
    %67 = arith.addf %64, %66 : vector<128x256xf32>
    %cst_38 = arith.constant 0.000000e+00 : f32
    %68 = vector.broadcast %cst_38 : f32 to vector<128x256xf32>
    %69 = arith.maximumf %67, %68 : vector<128x256xf32>
    %c0_39 = arith.constant 0 : index
    %c0_40 = arith.constant 0 : index
    %70 = vector.load %arg18[%c0_39, %c0_40] : memref<256x128xf32, #tpu.memory_space<vmem>>, vector<256x128xf32>
    %cst_41 = arith.constant dense<0.000000e+00> : vector<128x128xf32>
    %71 = tpu.matmul %69, %70, %cst_41 {dimension_numbers = #tpu.dot_dimension_numbers<[1], [0], [0], [1], [0, 0, 1, 1], [], []>} : vector<128x256xf32>, vector<256x128xf32>, vector<128x128xf32> -> vector<128x128xf32>
    %c0_42 = arith.constant 0 : index
    %c0_43 = arith.constant 0 : index
    %72 = vector.load %arg19[%c0_42, %c0_43] : memref<1x128xf32, #tpu.memory_space<vmem>>, vector<1x128xf32>
    %73 = vector.broadcast %72 : vector<1x128xf32> to vector<128x128xf32>
    %74 = arith.addf %71, %73 : vector<128x128xf32>
    %c0_44 = arith.constant 0 : index
    %c0_45 = arith.constant 0 : index
    %75 = vector.load %arg20[%c0_44, %c0_45] : memref<128x128xf32, #tpu.memory_space<vmem>>, vector<128x128xf32>
    tpu.vector_store %arg20[%c0_44, %c0_45], %74 {strides = array<i32>} : memref<128x128xf32, #tpu.memory_space<vmem>>, vector<128x128xf32>,
    %c0_46 = arith.constant 0 : index
    %c0_47 = arith.constant 0 : index
    %76 = vector.load %arg8[%c0_46, %c0_47] : memref<128x256xf32, #tpu.memory_space<vmem>>, vector<128x256xf32>
    %cst_48 = arith.constant dense<0.000000e+00> : vector<128x256xf32>
    %77 = tpu.matmul %38, %76, %cst_48 {dimension_numbers = #tpu.dot_dimension_numbers<[1], [0], [0], [1], [0, 0, 1, 1], [], []>} : vector<128x128xf32>, vector<128x256xf32>, vector<128x256xf32> -> vector<128x256xf32>
    %c0_49 = arith.constant 0 : index
    %c0_50 = arith.constant 0 : index
    %78 = vector.load %arg9[%c0_49, %c0_50] : memref<1x256xf32, #tpu.memory_space<vmem>>, vector<1x256xf32>
    %79 = vector.broadcast %78 : vector<1x256xf32> to vector<128x256xf32>
    %80 = arith.addf %77, %79 : vector<128x256xf32>
    %cst_51 = arith.constant dense<0.000000e+00> : vector<256xf32>
    %81 = vector.multi_reduction <add>, %80, %cst_51 [0] : vector<128x256xf32> to vector<256xf32>
    %82 = vector.shape_cast %81 : vector<256xf32> to vector<1x256xf32>
    %cst_52 = arith.constant 1.280000e+02 : f32
    %83 = vector.broadcast %cst_52 : f32 to vector<1x256xf32>
    %84 = arith.divf %82, %83 : vector<1x256xf32>
    %85 = vector.broadcast %84 : vector<1x256xf32> to vector<128x256xf32>
    %86 = arith.subf %80, %85 : vector<128x256xf32>
    %87 = arith.mulf %86, %86 : vector<128x256xf32>
    %cst_53 = arith.constant dense<0.000000e+00> : vector<256xf32>
    %88 = vector.multi_reduction <add>, %87, %cst_53 [0] : vector<128x256xf32> to vector<256xf32>
    %89 = vector.shape_cast %88 : vector<256xf32> to vector<1x256xf32>
    %cst_54 = arith.constant 1.280000e+02 : f32
    %90 = vector.broadcast %cst_54 : f32 to vector<1x256xf32>
    %91 = arith.divf %89, %90 : vector<1x256xf32>
    %92 = vector.broadcast %84 : vector<1x256xf32> to vector<128x256xf32>
    %93 = arith.subf %80, %92 : vector<128x256xf32>
    %cst_55 = arith.constant 9.99999974E-6 : f32
    %94 = vector.broadcast %cst_55 : f32 to vector<1x256xf32>
    %95 = arith.addf %91, %94 : vector<1x256xf32>
    %96 = math.rsqrt %95 : vector<1x256xf32>
    %97 = vector.broadcast %96 : vector<1x256xf32> to vector<128x256xf32>
    %98 = arith.mulf %93, %97 : vector<128x256xf32>
    %c0_56 = arith.constant 0 : index
    %c0_57 = arith.constant 0 : index
    %99 = vector.load %arg10[%c0_56, %c0_57] : memref<1x256xf32, #tpu.memory_space<vmem>>, vector<1x256xf32>
    %100 = vector.broadcast %99 : vector<1x256xf32> to vector<128x256xf32>
    %101 = arith.mulf %98, %100 : vector<128x256xf32>
    %c0_58 = arith.constant 0 : index
    %c0_59 = arith.constant 0 : index
    %102 = vector.load %arg11[%c0_58, %c0_59] : memref<1x256xf32, #tpu.memory_space<vmem>>, vector<1x256xf32>
    %103 = vector.broadcast %102 : vector<1x256xf32> to vector<128x256xf32>
    %104 = arith.addf %101, %103 : vector<128x256xf32>
    %cst_60 = arith.constant 0.000000e+00 : f32
    %105 = vector.broadcast %cst_60 : f32 to vector<128x256xf32>
    %106 = arith.maximumf %104, %105 : vector<128x256xf32>
    %c0_61 = arith.constant 0 : index
    %c0_62 = arith.constant 0 : index
    %107 = vector.load %arg12[%c0_61, %c0_62] : memref<256x128xf32, #tpu.memory_space<vmem>>, vector<256x128xf32>
    %cst_63 = arith.constant dense<0.000000e+00> : vector<128x128xf32>
    %108 = tpu.matmul %106, %107, %cst_63 {dimension_numbers = #tpu.dot_dimension_numbers<[1], [0], [0], [1], [0, 0, 1, 1], [], []>} : vector<128x256xf32>, vector<256x128xf32>, vector<128x128xf32> -> vector<128x128xf32>
    %c0_64 = arith.constant 0 : index
    %c0_65 = arith.constant 0 : index
    %109 = vector.load %arg13[%c0_64, %c0_65] : memref<1x128xf32, #tpu.memory_space<vmem>>, vector<1x128xf32>
    %110 = vector.broadcast %109 : vector<1x128xf32> to vector<128x128xf32>
    %111 = arith.addf %108, %110 : vector<128x128xf32>
    %cst_66 = arith.constant dense<0.000000e+00> : vector<128x128xf32>
    %112 = tpu.matmul %111, %111, %cst_66 {dimension_numbers = #tpu.dot_dimension_numbers<[1], [1], [0], [0], [0, 0, 1, 0], [], []>} : vector<128x128xf32>, vector<128x128xf32>, vector<128x128xf32> -> vector<128x128xf32>
    %113 = arith.mulf %111, %111 : vector<128x128xf32>
    %cst_67 = arith.constant dense<0.000000e+00> : vector<128xf32>
    %114 = vector.multi_reduction <add>, %113, %cst_67 [1] : vector<128x128xf32> to vector<128xf32>
    %115 = vector.shape_cast %114 : vector<128xf32> to vector<128x1xf32>
    %116 = tpu.transpose %115, [1, 0] : vector<128x1xf32> -> vector<1x128xf32>
    %117 = vector.broadcast %115 : vector<128x1xf32> to vector<128x128xf32>
    %118 = vector.broadcast %116 : vector<1x128xf32> to vector<128x128xf32>
    %119 = arith.addf %117, %118 : vector<128x128xf32>
    %cst_68 = arith.constant 2.000000e+00 : f32
    %120 = vector.broadcast %cst_68 : f32 to vector<128x128xf32>
    %121 = arith.mulf %120, %112 : vector<128x128xf32>
    %122 = arith.subf %119, %121 : vector<128x128xf32>
    %cst_69 = arith.constant 0.000000e+00 : f32
    %123 = vector.broadcast %cst_69 : f32 to vector<128x128xf32>
    %124 = arith.maximumf %122, %123 : vector<128x128xf32>
    %125 = tpu.iota {dimensions = array<i32: 0>} : vector<128x128xi32>
    %126 = tpu.iota {dimensions = array<i32: 1>} : vector<128x128xi32>
    %127 = arith.cmpi eq, %125, %126 : vector<128x128xi32>
    %cst_70 = arith.constant 0.000000e+00 : f32
    %128 = vector.broadcast %cst_70 : f32 to vector<128x128xf32>
    %129 = arith.select %127, %128, %124 : vector<128x128xi1>, vector<128x128xf32>
    %cst_71 = arith.constant 0xFF800000 : f32
    %130 = vector.broadcast %cst_71 : f32 to vector<128x1xf32>
    %cst_72 = arith.constant 0.000000e+00 : f32
    %131 = vector.broadcast %cst_72 : f32 to vector<128x1xf32>
    %132 = vector.broadcast %130 : vector<128x1xf32> to vector<128x128xf32>
    %133 = arith.cmpf ogt, %129, %132 : vector<128x128xf32>
    %cst_73 = arith.constant 0x7F800000 : f32
    %134 = vector.broadcast %cst_73 : f32 to vector<128x128xf32>
    %135 = arith.select %133, %129, %134 : vector<128x128xi1>, vector<128x128xf32>
    %cst_74 = arith.constant dense<0x7F800000> : vector<128xf32>
    %136 = vector.multi_reduction <minimumf>, %135, %cst_74 [1] : vector<128x128xf32> to vector<128xf32>
    %137 = vector.shape_cast %136 : vector<128xf32> to vector<128x1xf32>
    %cst_75 = arith.constant 5.000000e+00 : f32
    %138 = vector.broadcast %cst_75 : f32 to vector<128x1xf32>
    %139 = arith.cmpf olt, %131, %138 : vector<128x1xf32>
    %140 = arith.select %139, %137, %130 : vector<128x1xi1>, vector<128x1xf32>
    %141 = vector.broadcast %137 : vector<128x1xf32> to vector<128x128xf32>
    %142 = arith.cmpf ole, %129, %141 : vector<128x128xf32>
    %143 = arith.extui %142 : vector<128x128xi1> to vector<128x128xi32>
    %144 = arith.sitofp %143 : vector<128x128xi32> to vector<128x128xf32>
    %cst_76 = arith.constant dense<0.000000e+00> : vector<128xf32>
    %145 = vector.multi_reduction <add>, %144, %cst_76 [1] : vector<128x128xf32> to vector<128xf32>
    %146 = vector.shape_cast %145 : vector<128xf32> to vector<128x1xf32>
    %147 = arith.select %139, %146, %131 : vector<128x1xi1>, vector<128x1xf32>
    %148 = vector.broadcast %140 : vector<128x1xf32> to vector<128x128xf32>
    %149 = arith.cmpf ogt, %129, %148 : vector<128x128xf32>
    %cst_77 = arith.constant 0x7F800000 : f32
    %150 = vector.broadcast %cst_77 : f32 to vector<128x128xf32>
    %151 = arith.select %149, %129, %150 : vector<128x128xi1>, vector<128x128xf32>
    %cst_78 = arith.constant dense<0x7F800000> : vector<128xf32>
    %152 = vector.multi_reduction <minimumf>, %151, %cst_78 [1] : vector<128x128xf32> to vector<128xf32>
    %153 = vector.shape_cast %152 : vector<128xf32> to vector<128x1xf32>
    %cst_79 = arith.constant 5.000000e+00 : f32
    %154 = vector.broadcast %cst_79 : f32 to vector<128x1xf32>
    %155 = arith.cmpf olt, %147, %154 : vector<128x1xf32>
    %156 = arith.select %155, %153, %140 : vector<128x1xi1>, vector<128x1xf32>
    %157 = vector.broadcast %153 : vector<128x1xf32> to vector<128x128xf32>
    %158 = arith.cmpf ole, %129, %157 : vector<128x128xf32>
    %159 = arith.extui %158 : vector<128x128xi1> to vector<128x128xi32>
    %160 = arith.sitofp %159 : vector<128x128xi32> to vector<128x128xf32>
    %cst_80 = arith.constant dense<0.000000e+00> : vector<128xf32>
    %161 = vector.multi_reduction <add>, %160, %cst_80 [1] : vector<128x128xf32> to vector<128xf32>
    %162 = vector.shape_cast %161 : vector<128xf32> to vector<128x1xf32>
    %163 = arith.select %155, %162, %147 : vector<128x1xi1>, vector<128x1xf32>
    %164 = vector.broadcast %156 : vector<128x1xf32> to vector<128x128xf32>
    %165 = arith.cmpf ogt, %129, %164 : vector<128x128xf32>
    %cst_81 = arith.constant 0x7F800000 : f32
    %166 = vector.broadcast %cst_81 : f32 to vector<128x128xf32>
    %167 = arith.select %165, %129, %166 : vector<128x128xi1>, vector<128x128xf32>
    %cst_82 = arith.constant dense<0x7F800000> : vector<128xf32>
    %168 = vector.multi_reduction <minimumf>, %167, %cst_82 [1] : vector<128x128xf32> to vector<128xf32>
    %169 = vector.shape_cast %168 : vector<128xf32> to vector<128x1xf32>
    %cst_83 = arith.constant 5.000000e+00 : f32
    %170 = vector.broadcast %cst_83 : f32 to vector<128x1xf32>
    %171 = arith.cmpf olt, %163, %170 : vector<128x1xf32>
    %172 = arith.select %171, %169, %156 : vector<128x1xi1>, vector<128x1xf32>
    %173 = vector.broadcast %169 : vector<128x1xf32> to vector<128x128xf32>
    %174 = arith.cmpf ole, %129, %173 : vector<128x128xf32>
    %175 = arith.extui %174 : vector<128x128xi1> to vector<128x128xi32>
    %176 = arith.sitofp %175 : vector<128x128xi32> to vector<128x128xf32>
    %cst_84 = arith.constant dense<0.000000e+00> : vector<128xf32>
    %177 = vector.multi_reduction <add>, %176, %cst_84 [1] : vector<128x128xf32> to vector<128xf32>
    %178 = vector.shape_cast %177 : vector<128xf32> to vector<128x1xf32>
    %179 = arith.select %171, %178, %163 : vector<128x1xi1>, vector<128x1xf32>
    %180 = vector.broadcast %172 : vector<128x1xf32> to vector<128x128xf32>
    %181 = arith.cmpf ogt, %129, %180 : vector<128x128xf32>
    %cst_85 = arith.constant 0x7F800000 : f32
    %182 = vector.broadcast %cst_85 : f32 to vector<128x128xf32>
    %183 = arith.select %181, %129, %182 : vector<128x128xi1>, vector<128x128xf32>
    %cst_86 = arith.constant dense<0x7F800000> : vector<128xf32>
    %184 = vector.multi_reduction <minimumf>, %183, %cst_86 [1] : vector<128x128xf32> to vector<128xf32>
    %185 = vector.shape_cast %184 : vector<128xf32> to vector<128x1xf32>
    %cst_87 = arith.constant 5.000000e+00 : f32
    %186 = vector.broadcast %cst_87 : f32 to vector<128x1xf32>
    %187 = arith.cmpf olt, %179, %186 : vector<128x1xf32>
    %188 = arith.select %187, %185, %172 : vector<128x1xi1>, vector<128x1xf32>
    %189 = vector.broadcast %185 : vector<128x1xf32> to vector<128x128xf32>
    %190 = arith.cmpf ole, %129, %189 : vector<128x128xf32>
    %191 = arith.extui %190 : vector<128x128xi1> to vector<128x128xi32>
    %192 = arith.sitofp %191 : vector<128x128xi32> to vector<128x128xf32>
    %cst_88 = arith.constant dense<0.000000e+00> : vector<128xf32>
    %193 = vector.multi_reduction <add>, %192, %cst_88 [1] : vector<128x128xf32> to vector<128xf32>
    %194 = vector.shape_cast %193 : vector<128xf32> to vector<128x1xf32>
    %195 = arith.select %187, %194, %179 : vector<128x1xi1>, vector<128x1xf32>
    %196 = vector.broadcast %188 : vector<128x1xf32> to vector<128x128xf32>
    %197 = arith.cmpf ogt, %129, %196 : vector<128x128xf32>
    %cst_89 = arith.constant 0x7F800000 : f32
    %198 = vector.broadcast %cst_89 : f32 to vector<128x128xf32>
    %199 = arith.select %197, %129, %198 : vector<128x128xi1>, vector<128x128xf32>
    %cst_90 = arith.constant dense<0x7F800000> : vector<128xf32>
    %200 = vector.multi_reduction <minimumf>, %199, %cst_90 [1] : vector<128x128xf32> to vector<128xf32>
    %201 = vector.shape_cast %200 : vector<128xf32> to vector<128x1xf32>
    %cst_91 = arith.constant 5.000000e+00 : f32
    %202 = vector.broadcast %cst_91 : f32 to vector<128x1xf32>
    %203 = arith.cmpf olt, %195, %202 : vector<128x1xf32>
    %204 = arith.select %203, %201, %188 : vector<128x1xi1>, vector<128x1xf32>
    %205 = vector.broadcast %204 : vector<128x1xf32> to vector<128x128xf32>
    %206 = arith.cmpf ole, %129, %205 : vector<128x128xf32>
    %207 = arith.extui %206 : vector<128x128xi1> to vector<128x128xi32>
    %208 = arith.sitofp %207 : vector<128x128xi32> to vector<128x128xf32>
    %209 = arith.truncf %208 : vector<128x128xf32> to vector<128x128xbf16>
    %cst_92 = arith.constant dense<0.000000e+00> : vector<128x128xf32>
    %210 = tpu.matmul %209, %209, %cst_92 {dimension_numbers = #tpu.dot_dimension_numbers<[1], [1], [0], [0], [0, 0, 1, 0], [], []>} : vector<128x128xbf16>, vector<128x128xbf16>, vector<128x128xf32> -> vector<128x128xf32>
    %cst_93 = arith.constant dense<0.000000e+00> : vector<128xf32>
    %211 = vector.multi_reduction <add>, %208, %cst_93 [1] : vector<128x128xf32> to vector<128xf32>
    %212 = vector.shape_cast %211 : vector<128xf32> to vector<128x1xf32>
    %213 = tpu.reciprocal %212 : vector<128x1xf32> -> vector<128x1xf32>
    %214 = vector.broadcast %213 : vector<128x1xf32> to vector<128x128xf32>
    %215 = arith.mulf %210, %214 : vector<128x128xf32>
    %216 = tpu.transpose %204, [1, 0] : vector<128x1xf32> -> vector<1x128xf32>
    %217 = vector.broadcast %216 : vector<1x128xf32> to vector<128x128xf32>
    %218 = arith.cmpf ole, %129, %217 : vector<128x128xf32>
    %219 = arith.extui %218 : vector<128x128xi1> to vector<128x128xi32>
    %220 = arith.sitofp %219 : vector<128x128xi32> to vector<128x128xf32>
    %221 = arith.mulf %208, %220 : vector<128x128xf32>
    %cst_94 = arith.constant dense<0.000000e+00> : vector<128x128xf32>
    %222 = tpu.matmul %215, %221, %cst_94 {dimension_numbers = #tpu.dot_dimension_numbers<[1], [1], [0], [0], [0, 0, 1, 0], [], []>} : vector<128x128xf32>, vector<128x128xf32>, vector<128x128xf32> -> vector<128x128xf32>
    %cst_95 = arith.constant dense<0.000000e+00> : vector<128xf32>
    %223 = vector.multi_reduction <add>, %221, %cst_95 [1] : vector<128x128xf32> to vector<128xf32>
    %224 = vector.shape_cast %223 : vector<128xf32> to vector<128x1xf32>
    %225 = tpu.reciprocal %224 : vector<128x1xf32> -> vector<128x1xf32>
    %226 = vector.broadcast %225 : vector<128x1xf32> to vector<128x128xf32>
    %227 = arith.mulf %222, %226 : vector<128x128xf32>
    %228 = tpu.transpose %227, [1, 0] : vector<128x128xf32> -> vector<128x128xf32>
    %229 = arith.addf %227, %228 : vector<128x128xf32>
    %cst_96 = arith.constant 5.000000e-01 : f32
    %230 = vector.broadcast %cst_96 : f32 to vector<128x128xf32>
    %231 = arith.mulf %230, %229 : vector<128x128xf32>
    %cst_97 = arith.constant -1.000000e+00 : f32
    %232 = vector.broadcast %cst_97 : f32 to vector<128x128xf32>
    %233 = arith.mulf %129, %232 : vector<128x128xf32>
    %234 = math.exp %233 : vector<128x128xf32>
    %cst_98 = arith.constant 5.000000e-01 : f32
    %235 = vector.broadcast %cst_98 : f32 to vector<128x128xf32>
    %236 = arith.mulf %235, %234 : vector<128x128xf32>
    %cst_99 = arith.constant 5.000000e-01 : f32
    %237 = vector.broadcast %cst_99 : f32 to vector<128x128xf32>
    %238 = arith.mulf %237, %231 : vector<128x128xf32>
    %239 = arith.addf %236, %238 : vector<128x128xf32>
    %c0_100 = arith.constant 0 : index
    %c0_101 = arith.constant 0 : index
    %240 = vector.load %arg21[%c0_100, %c0_101] : memref<128x128xf32, #tpu.memory_space<vmem>>, vector<128x128xf32>
    tpu.vector_store %arg21[%c0_100, %c0_101], %239 {strides = array<i32>} : memref<128x128xf32, #tpu.memory_space<vmem>>, vector<128x128xf32>,
    return
  }
  func.func @transform_0(%arg0: i32) -> (i32, i32) {
    %c0_i32 = arith.constant 0 : i32
    %c0_i32_0 = arith.constant 0 : i32
    %c0_i32_1 = arith.constant 0 : i32
    return %c0_i32, %c0_i32_0 : i32, i32
  }
  func.func @transform_1(%arg0: i32) -> (i32, i32) {
    %c0_i32 = arith.constant 0 : i32
    %c0_i32_0 = arith.constant 0 : i32
    %c0_i32_1 = arith.constant 0 : i32
    return %c0_i32, %c0_i32_0 : i32, i32
  }
  func.func @transform_2(%arg0: i32) -> (i32, i32) {
    %c0_i32 = arith.constant 0 : i32
    %c0_i32_0 = arith.constant 0 : i32
    %c0_i32_1 = arith.constant 0 : i32
    return %c0_i32, %c0_i32_0 : i32, i32
  }
  func.func @transform_3(%arg0: i32) -> (i32, i32) {
    %c0_i32 = arith.constant 0 : i32
    %c0_i32_0 = arith.constant 0 : i32
    %c0_i32_1 = arith.constant 0 : i32
    return %c0_i32, %c0_i32_0 : i32, i32
  }
  func.func @transform_4(%arg0: i32) -> (i32, i32) {
    %c0_i32 = arith.constant 0 : i32
    %c0_i32_0 = arith.constant 0 : i32
    %c0_i32_1 = arith.constant 0 : i32
    return %c0_i32, %c0_i32_0 : i32, i32
  }
  func.func @transform_5(%arg0: i32) -> (i32, i32) {
    %c0_i32 = arith.constant 0 : i32
    %c0_i32_0 = arith.constant 0 : i32
    %c0_i32_1 = arith.constant 0 : i32
    return %c0_i32, %c0_i32_0 : i32, i32
  }
  func.func @transform_6(%arg0: i32) -> (i32, i32) {
    %c0_i32 = arith.constant 0 : i32
    %c0_i32_0 = arith.constant 0 : i32
    %c0_i32_1 = arith.constant 0 : i32
    return %c0_i32, %c0_i32_0 : i32, i32
  }
  func.func @transform_7(%arg0: i32) -> (i32, i32) {
    %c0_i32 = arith.constant 0 : i32
    %c0_i32_0 = arith.constant 0 : i32
    %c0_i32_1 = arith.constant 0 : i32
    return %c0_i32, %c0_i32_0 : i32, i32
  }
  func.func @transform_8(%arg0: i32) -> (i32, i32) {
    %c0_i32 = arith.constant 0 : i32
    %c0_i32_0 = arith.constant 0 : i32
    %c0_i32_1 = arith.constant 0 : i32
    return %c0_i32, %c0_i32_0 : i32, i32
  }
  func.func @transform_9(%arg0: i32) -> (i32, i32) {
    %c0_i32 = arith.constant 0 : i32
    %c0_i32_0 = arith.constant 0 : i32
    %c0_i32_1 = arith.constant 0 : i32
    return %c0_i32, %c0_i32_0 : i32, i32
  }
  func.func @transform_10(%arg0: i32) -> (i32, i32) {
    %c0_i32 = arith.constant 0 : i32
    %c0_i32_0 = arith.constant 0 : i32
    %c0_i32_1 = arith.constant 0 : i32
    return %c0_i32, %c0_i32_0 : i32, i32
  }
  func.func @transform_11(%arg0: i32) -> (i32, i32) {
    %c0_i32 = arith.constant 0 : i32
    %c0_i32_0 = arith.constant 0 : i32
    %c0_i32_1 = arith.constant 0 : i32
    return %c0_i32, %c0_i32_0 : i32, i32
  }
  func.func @transform_12(%arg0: i32) -> (i32, i32) {
    %c0_i32 = arith.constant 0 : i32
    %c0_i32_0 = arith.constant 0 : i32
    %c0_i32_1 = arith.constant 0 : i32
    return %c0_i32, %c0_i32_0 : i32, i32
  }
  func.func @transform_13(%arg0: i32) -> (i32, i32) {
    %c0_i32 = arith.constant 0 : i32
    %c0_i32_0 = arith.constant 0 : i32
    %c0_i32_1 = arith.constant 0 : i32
    return %c0_i32, %c0_i32_0 : i32, i32
  }
  func.func @transform_14(%arg0: i32) -> (i32, i32) {
    %c0_i32 = arith.constant 0 : i32
    %c0_i32_0 = arith.constant 0 : i32
    %c0_i32_1 = arith.constant 0 : i32
    return %c0_i32, %c0_i32_0 : i32, i32
  }
  func.func @transform_15(%arg0: i32) -> (i32, i32) {
    %c0_i32 = arith.constant 0 : i32
    %c0_i32_0 = arith.constant 0 : i32
    %c0_i32_1 = arith.constant 0 : i32
    return %c0_i32, %c0_i32_0 : i32, i32
  }
  func.func @transform_16(%arg0: i32) -> (i32, i32) {
    %c0_i32 = arith.constant 0 : i32
    %c0_i32_0 = arith.constant 0 : i32
    %c0_i32_1 = arith.constant 0 : i32
    return %c0_i32, %c0_i32_0 : i32, i32
  }
  func.func @transform_17(%arg0: i32) -> (i32, i32) {
    %c0_i32 = arith.constant 0 : i32
    %c0_i32_0 = arith.constant 0 : i32
    %c0_i32_1 = arith.constant 0 : i32
    return %c0_i32, %c0_i32_0 : i32, i32
  }
  func.func @transform_18(%arg0: i32) -> (i32, i32) {
    %c0_i32 = arith.constant 0 : i32
    %c0_i32_0 = arith.constant 0 : i32
    %c0_i32_1 = arith.constant 0 : i32
    return %c0_i32, %c0_i32_0 : i32, i32
  }
  func.func @transform_19(%arg0: i32) -> (i32, i32) {
    %c0_i32 = arith.constant 0 : i32
    %c0_i32_0 = arith.constant 0 : i32
    %c0_i32_1 = arith.constant 0 : i32
    return %c0_i32, %c0_i32_0 : i32, i32
  }
  func.func @transform_20(%arg0: i32) -> (i32, i32) {
    %c0_i32 = arith.constant 0 : i32
    %c0_i32_0 = arith.constant 0 : i32
    %c0_i32_1 = arith.constant 0 : i32
    return %c0_i32, %c0_i32_0 : i32, i32
  }
}

</mosaic_0001>

<llo_original>
// kernel: tpu_custom_call.1
$region0: #{tpu_custom_call.1}
  #allocation0 [shape = 'u32[]', space=smem, size = 0x4, offset = 0x4, fixed_abs, tag = 'smem constant byte address 0x4 - core index']
  #allocation1 [shape = 'u32[144,128]{1,0:T(1,128)}', space=vmem, size = 0x12000, scoped, tag = 'internal scratch']
  #allocation2 [shape = 'f32[128,128]{1,0:T(8,128)}', space=vmem, size = 0x10000, scoped, tag = 'scratch operand']
  %s0 = inlined_call_operand.hbm [shape: f32[128,128], index: 0, kind: input, shape index: {}]
  %s1 = inlined_call_operand.hbm [shape: f32[128,256], index: 1, kind: input, shape index: {}]
  %s2 = inlined_call_operand.vmem [shape: f32[1,256], index: 2, kind: input, shape index: {}]
  %s3 = inlined_call_operand.vmem [shape: f32[1,256], index: 3, kind: input, shape index: {}]
  %s4 = inlined_call_operand.vmem [shape: f32[1,256], index: 4, kind: input, shape index: {}]
  %s5 = inlined_call_operand.hbm [shape: f32[256,128], index: 5, kind: input, shape index: {}]
  %s6 = inlined_call_operand.vmem [shape: f32[1,128], index: 6, kind: input, shape index: {}]
  %s7 = inlined_call_operand.hbm [shape: f32[128,256], index: 7, kind: input, shape index: {}]
  %s8 = inlined_call_operand.vmem [shape: f32[1,256], index: 8, kind: input, shape index: {}]
  %s9 = inlined_call_operand.vmem [shape: f32[1,256], index: 9, kind: input, shape index: {}]
  %s10 = inlined_call_operand.vmem [shape: f32[1,256], index: 10, kind: input, shape index: {}]
  %s11 = inlined_call_operand.hbm [shape: f32[256,128], index: 11, kind: input, shape index: {}]
  %s12 = inlined_call_operand.vmem [shape: f32[1,128], index: 12, kind: input, shape index: {}]
  %s13 = inlined_call_operand.hbm [shape: f32[128,256], index: 13, kind: input, shape index: {}]
  %s14 = inlined_call_operand.vmem [shape: f32[1,256], index: 14, kind: input, shape index: {}]
  %s15 = inlined_call_operand.vmem [shape: f32[1,256], index: 15, kind: input, shape index: {}]
  %s16 = inlined_call_operand.vmem [shape: f32[1,256], index: 16, kind: input, shape index: {}]
  %s17 = inlined_call_operand.hbm [shape: f32[256,128], index: 17, kind: input, shape index: {}]
  %s18 = inlined_call_operand.vmem [shape: f32[1,128], index: 18, kind: input, shape index: {}]
  %s19 = inlined_call_operand.hbm [shape: f32[128,128], index: 19, kind: output, shape index: {0}]
  %s20 = inlined_call_operand.hbm [shape: f32[128,128], index: 20, kind: output, shape index: {1}]
  %21 = xla_tuple %s19, %s20
  %s22 = sld [smem:[#allocation0]]
  $region122: #{tpu_custom_call.1} parent=0
    _
  %s24 = ssub.s32 1, %s22
  %s25 = scalar_select 0, %s24, %s22
  $region1: #{tpu_custom_call.1} parent=0
    #allocation3 [shape = 'u8[65536]{0}', space=vmem, size = 0x10000, scoped, tag = 'input window, operand 0, single buffered']
    #allocation4 [shape = 's32[1]{0}', space=sflag, size = 0x4, scoped, tag = 'scoped memory for tpu_custom_call.1']
    #allocation5 [shape = 's32[1]{0}', space=sflag, size = 0x4, scoped, tag = 'scoped memory for tpu_custom_call.1']
    #allocation6 [shape = 'u8[131072]{0}', space=vmem, size = 0x20000, scoped, tag = 'input window, operand 1, single buffered']
    #allocation7 [shape = 's32[1]{0}', space=sflag, size = 0x4, scoped, tag = 'scoped memory for tpu_custom_call.1']
    #allocation8 [shape = 'u8[131072]{0}', space=vmem, size = 0x20000, scoped, tag = 'input window, operand 5, single buffered']
    #allocation9 [shape = 'u8[131072]{0}', space=vmem, size = 0x20000, scoped, tag = 'input window, operand 7, single buffered']
    #allocation10 [shape = 's32[1]{0}', space=sflag, size = 0x4, scoped, tag = 'scoped memory for tpu_custom_call.1']
    #allocation11 [shape = 'u8[131072]{0}', space=vmem, size = 0x20000, scoped, tag = 'input window, operand 11, single buffered']
    #allocation12 [shape = 'u8[131072]{0}', space=vmem, size = 0x20000, scoped, tag = 'input window, operand 13, single buffered']
    #allocation13 [shape = 's32[1]{0}', space=sflag, size = 0x4, scoped, tag = 'scoped memory for tpu_custom_call.1']
    #allocation14 [shape = 'u8[131072]{0}', space=vmem, size = 0x20000, scoped, tag = 'input window, operand 17, single buffered']
    #allocation15 [shape = 'u8[65536]{0}', space=vmem, size = 0x10000, scoped, tag = 'output window, operand 0, single buffered']
    #allocation16 [shape = 'u8[65536]{0}', space=vmem, size = 0x10000, scoped, tag = 'output window, operand 1, single buffered']
    #allocation17 [shape = 's32[1]{0}', space=sflag, size = 0x4, scoped, tag = 'scoped memory for tpu_custom_call.1']
    %26 = vsyncpa [#allocation4], 0
    %27 = vsyncpa [#allocation7], 0
    %28 = vsyncpa [#allocation10], 0
    %29 = vsyncpa [#allocation13], 0
    %30 = vsyncpa [#allocation5], 0
    %31 = vsyncpa [#allocation17], 0
    // Predicated region
    $region2: #{tpu_custom_call.1} parent=1 // pred_check
      _
    $region3: #{tpu_custom_call.1} parent=1 // pred_check_branch
      %33 = sbr.rel (0) target = $region5
    $region4: #{tpu_custom_call.1} parent=1 // pred_region
      %s35 = ssub.s32 2048, 2048
      %36 = vsyncadd [#allocation4], %s35
      %s37 = sshll.u32 [#allocation3], 4
      %s38 = int_to_ptr.vmem [resolvable:$true] %s37
      %43 = dma.hbm_to_vmem [thread:$0]  %s0, 2048, %s38, [#allocation4], 128, 128, 8
    $region5: #{tpu_custom_call.1} parent=1 // pred_fallthru
      _
    // Predicated region
    $region6: #{tpu_custom_call.1} parent=1 // pred_check
      _
    $region7: #{tpu_custom_call.1} parent=1 // pred_check_branch
      %45 = sbr.rel (0) target = $region9
    $region8: #{tpu_custom_call.1} parent=1 // pred_region
      %s47 = ssub.s32 4096, 4096
      %48 = vsyncadd [#allocation7], %s47
      %s49 = sshll.u32 [#allocation6], 4
      %s50 = int_to_ptr.vmem [resolvable:$true] %s49
      %55 = dma.hbm_to_vmem [thread:$0]  %s1, 4096, %s50, [#allocation7], 256, 256, 16
    $region9: #{tpu_custom_call.1} parent=1 // pred_fallthru
      _
    // Predicated region
    $region10: #{tpu_custom_call.1} parent=1 // pred_check
      _
    $region11: #{tpu_custom_call.1} parent=1 // pred_check_branch
      %57 = sbr.rel (0) target = $region13
    $region12: #{tpu_custom_call.1} parent=1 // pred_region
      _
    $region13: #{tpu_custom_call.1} parent=1 // pred_fallthru
      _
    // Predicated region
    $region14: #{tpu_custom_call.1} parent=1 // pred_check
      _
    $region15: #{tpu_custom_call.1} parent=1 // pred_check_branch
      %59 = sbr.rel (0) target = $region17
    $region16: #{tpu_custom_call.1} parent=1 // pred_region
      _
    $region17: #{tpu_custom_call.1} parent=1 // pred_fallthru
      _
    // Predicated region
    $region18: #{tpu_custom_call.1} parent=1 // pred_check
      _
    $region19: #{tpu_custom_call.1} parent=1 // pred_check_branch
      %61 = sbr.rel (0) target = $region21
    $region20: #{tpu_custom_call.1} parent=1 // pred_region
      _
    $region21: #{tpu_custom_call.1} parent=1 // pred_fallthru
      _
    // Predicated region
    $region22: #{tpu_custom_call.1} parent=1 // pred_check
      _
    $region23: #{tpu_custom_call.1} parent=1 // pred_check_branch
      %63 = sbr.rel (0) target = $region25
    $region24: #{tpu_custom_call.1} parent=1 // pred_region
      %s65 = ssub.s32 4096, 4096
      %66 = vsyncadd [#allocation7], %s65
      %s67 = sshll.u32 [#allocation8], 4
      %s68 = int_to_ptr.vmem [resolvable:$true] %s67
      %73 = dma.hbm_to_vmem [thread:$0]  %s5, 4096, %s68, [#allocation7], 128, 128, 8
    $region25: #{tpu_custom_call.1} parent=1 // pred_fallthru
      _
    // Predicated region
    $region26: #{tpu_custom_call.1} parent=1 // pred_check
      _
    $region27: #{tpu_custom_call.1} parent=1 // pred_check_branch
      %75 = sbr.rel (0) target = $region29
    $region28: #{tpu_custom_call.1} parent=1 // pred_region
      _
    $region29: #{tpu_custom_call.1} parent=1 // pred_fallthru
      _
    // Predicated region
    $region30: #{tpu_custom_call.1} parent=1 // pred_check
      _
    $region31: #{tpu_custom_call.1} parent=1 // pred_check_branch
      %77 = sbr.rel (0) target = $region33
    $region32: #{tpu_custom_call.1} parent=1 // pred_region
      %s79 = ssub.s32 4096, 4096
      %80 = vsyncadd [#allocation10], %s79
      %s81 = sshll.u32 [#allocation9], 4
      %s82 = int_to_ptr.vmem [resolvable:$true] %s81
      %87 = dma.hbm_to_vmem [thread:$0]  %s7, 4096, %s82, [#allocation10], 256, 256, 16
    $region33: #{tpu_custom_call.1} parent=1 // pred_fallthru
      _
    // Predicated region
    $region34: #{tpu_custom_call.1} parent=1 // pred_check
      _
    $region35: #{tpu_custom_call.1} parent=1 // pred_check_branch
      %89 = sbr.rel (0) target = $region37
    $region36: #{tpu_custom_call.1} parent=1 // pred_region
      _
    $region37: #{tpu_custom_call.1} parent=1 // pred_fallthru
      _
    // Predicated region
    $region38: #{tpu_custom_call.1} parent=1 // pred_check
      _
    $region39: #{tpu_custom_call.1} parent=1 // pred_check_branch
      %91 = sbr.rel (0) target = $region41
    $region40: #{tpu_custom_call.1} parent=1 // pred_region
      _
    $region41: #{tpu_custom_call.1} parent=1 // pred_fallthru
      _
    // Predicated region
    $region42: #{tpu_custom_call.1} parent=1 // pred_check
      _
    $region43: #{tpu_custom_call.1} parent=1 // pred_check_branch
      %93 = sbr.rel (0) target = $region45
    $region44: #{tpu_custom_call.1} parent=1 // pred_region
      _
    $region45: #{tpu_custom_call.1} parent=1 // pred_fallthru
      _
    // Predicated region
    $region46: #{tpu_custom_call.1} parent=1 // pred_check
      _
    $region47: #{tpu_custom_call.1} parent=1 // pred_check_branch
      %95 = sbr.rel (0) target = $region49
    $region48: #{tpu_custom_call.1} parent=1 // pred_region
      %s97 = ssub.s32 4096, 4096
      %98 = vsyncadd [#allocation10], %s97
      %s99 = sshll.u32 [#allocation11], 4
      %s100 = int_to_ptr.vmem [resolvable:$true] %s99
      %105 = dma.hbm_to_vmem [thread:$0]  %s11, 4096, %s100, [#allocation10], 128, 128, 8
    $region49: #{tpu_custom_call.1} parent=1 // pred_fallthru
      _
    // Predicated region
    $region50: #{tpu_custom_call.1} parent=1 // pred_check
      _
    $region51: #{tpu_custom_call.1} parent=1 // pred_check_branch
      %107 = sbr.rel (0) target = $region53
    $region52: #{tpu_custom_call.1} parent=1 // pred_region
      _
    $region53: #{tpu_custom_call.1} parent=1 // pred_fallthru
      _
    // Predicated region
    $region54: #{tpu_custom_call.1} parent=1 // pred_check
      _
    $region55: #{tpu_custom_call.1} parent=1 // pred_check_branch
      %109 = sbr.rel (0) target = $region57
    $region56: #{tpu_custom_call.1} parent=1 // pred_region
      %s111 = ssub.s32 4096, 4096
      %112 = vsyncadd [#allocation13], %s111
      %s113 = sshll.u32 [#allocation12], 4
      %s114 = int_to_ptr.vmem [resolvable:$true] %s113
      %119 = dma.hbm_to_vmem [thread:$0]  %s13, 4096, %s114, [#allocation13], 256, 256, 16
    $region57: #{tpu_custom_call.1} parent=1 // pred_fallthru
      _
    // Predicated region
    $region58: #{tpu_custom_call.1} parent=1 // pred_check
      _
    $region59: #{tpu_custom_call.1} parent=1 // pred_check_branch
      %121 = sbr.rel (0) target = $region61
    $region60: #{tpu_custom_call.1} parent=1 // pred_region
      _
    $region61: #{tpu_custom_call.1} parent=1 // pred_fallthru
      _
    // Predicated region
    $region62: #{tpu_custom_call.1} parent=1 // pred_check
      _
    $region63: #{tpu_custom_call.1} parent=1 // pred_check_branch
      %123 = sbr.rel (0) target = $region65
    $region64: #{tpu_custom_call.1} parent=1 // pred_region
      _
    $region65: #{tpu_custom_call.1} parent=1 // pred_fallthru
      _
    // Predicated region
    $region66: #{tpu_custom_call.1} parent=1 // pred_check
      _
    $region67: #{tpu_custom_call.1} parent=1 // pred_check_branch
      %125 = sbr.rel (0) target = $region69
    $region68: #{tpu_custom_call.1} parent=1 // pred_region
      _
    $region69: #{tpu_custom_call.1} parent=1 // pred_fallthru
      _
    // Predicated region
    $region70: #{tpu_custom_call.1} parent=1 // pred_check
      _
    $region71: #{tpu_custom_call.1} parent=1 // pred_check_branch
      %127 = sbr.rel (0) target = $region73
    $region72: #{tpu_custom_call.1} parent=1 // pred_region
      %s129 = ssub.s32 4096, 4096
      %130 = vsyncadd [#allocation13], %s129
      %s131 = sshll.u32 [#allocation14], 4
      %s132 = int_to_ptr.vmem [resolvable:$true] %s131
      %137 = dma.hbm_to_vmem [thread:$0]  %s17, 4096, %s132, [#allocation13], 128, 128, 8
    $region73: #{tpu_custom_call.1} parent=1 // pred_fallthru
      _
    // Predicated region
    $region74: #{tpu_custom_call.1} parent=1 // pred_check
      _
    $region75: #{tpu_custom_call.1} parent=1 // pred_check_branch
      %139 = sbr.rel (0) target = $region77
    $region76: #{tpu_custom_call.1} parent=1 // pred_region
      _
    $region77: #{tpu_custom_call.1} parent=1 // pred_fallthru
      _
    // Predicated region
    $region78: #{tpu_custom_call.1} parent=1 // pred_check
      _
    $region79: #{tpu_custom_call.1} parent=1 // pred_check_branch
      %141 = sbr.rel (0) target = $region81
    $region80: #{tpu_custom_call.1} parent=1 // pred_region
      %142 = dma.done [#allocation4], 2048
    $region81: #{tpu_custom_call.1} parent=1 // pred_fallthru
      _
    // Predicated region
    $region82: #{tpu_custom_call.1} parent=1 // pred_check
      _
    $region83: #{tpu_custom_call.1} parent=1 // pred_check_branch
      %144 = sbr.rel (0) target = $region85
    $region84: #{tpu_custom_call.1} parent=1 // pred_region
      %145 = dma.done [#allocation7], 4096
    $region85: #{tpu_custom_call.1} parent=1 // pred_fallthru
      _
    // Predicated region
    $region86: #{tpu_custom_call.1} parent=1 // pred_check
      _
    $region87: #{tpu_custom_call.1} parent=1 // pred_check_branch
      %147 = sbr.rel (0) target = $region89
    $region88: #{tpu_custom_call.1} parent=1 // pred_region
      %148 = dma.done [#allocation7], 4096
    $region89: #{tpu_custom_call.1} parent=1 // pred_fallthru
      _
    // Predicated region
    $region90: #{tpu_custom_call.1} parent=1 // pred_check
      _
    $region91: #{tpu_custom_call.1} parent=1 // pred_check_branch
      %150 = sbr.rel (0) target = $region93
    $region92: #{tpu_custom_call.1} parent=1 // pred_region
      %151 = dma.done [#allocation10], 4096
    $region93: #{tpu_custom_call.1} parent=1 // pred_fallthru
      _
    // Predicated region
    $region94: #{tpu_custom_call.1} parent=1 // pred_check
      _
    $region95: #{tpu_custom_call.1} parent=1 // pred_check_branch
      %153 = sbr.rel (0) target = $region97
    $region96: #{tpu_custom_call.1} parent=1 // pred_region
      %154 = dma.done [#allocation10], 4096
    $region97: #{tpu_custom_call.1} parent=1 // pred_fallthru
      _
    // Predicated region
    $region98: #{tpu_custom_call.1} parent=1 // pred_check
      _
    $region99: #{tpu_custom_call.1} parent=1 // pred_check_branch
      %156 = sbr.rel (0) target = $region101
    $region100: #{tpu_custom_call.1} parent=1 // pred_region
      %157 = dma.done [#allocation13], 4096
    $region101: #{tpu_custom_call.1} parent=1 // pred_fallthru
      _
    // Predicated region
    $region102: #{tpu_custom_call.1} parent=1 // pred_check
      _
    $region103: #{tpu_custom_call.1} parent=1 // pred_check_branch
      %159 = sbr.rel (0) target = $region105
    $region104: #{tpu_custom_call.1} parent=1 // pred_region
      %160 = dma.done [#allocation13], 4096
    $region105: #{tpu_custom_call.1} parent=1 // pred_fallthru
      _
    %v162 = vld [vmem:[#allocation3] sm:$0xff]
    %v163 = vld [vmem:[#allocation3 + $0x8] sm:$0xff]
    %v164 = vld [vmem:[#allocation3 + $0x10] sm:$0xff]
    %v165 = vld [vmem:[#allocation3 + $0x18] sm:$0xff]
    %v166 = vld [vmem:[#allocation3 + $0x20] sm:$0xff]
    %v167 = vld [vmem:[#allocation3 + $0x28] sm:$0xff]
    %v168 = vld [vmem:[#allocation3 + $0x30] sm:$0xff]
    %v169 = vld [vmem:[#allocation3 + $0x38] sm:$0xff]
    %v170 = vld [vmem:[#allocation3 + $0x40] sm:$0xff]
    %v171 = vld [vmem:[#allocation3 + $0x48] sm:$0xff]
    %v172 = vld [vmem:[#allocation3 + $0x50] sm:$0xff]
    %v173 = vld [vmem:[#allocation3 + $0x58] sm:$0xff]
    %v174 = vld [vmem:[#allocation3 + $0x60] sm:$0xff]
    %v175 = vld [vmem:[#allocation3 + $0x68] sm:$0xff]
    %v176 = vld [vmem:[#allocation3 + $0x70] sm:$0xff]
    %v177 = vld [vmem:[#allocation3 + $0x78] sm:$0xff]
    %v178 = vld [vmem:[#allocation6] sm:$0xff]
    %v179 = vld [vmem:[#allocation6 + $0x8] sm:$0xff]
    %v180 = vld [vmem:[#allocation6 + $0x10] sm:$0xff]
    %v181 = vld [vmem:[#allocation6 + $0x18] sm:$0xff]
    %v182 = vld [vmem:[#allocation6 + $0x20] sm:$0xff]
    %v183 = vld [vmem:[#allocation6 + $0x28] sm:$0xff]
    %v184 = vld [vmem:[#allocation6 + $0x30] sm:$0xff]
    %v185 = vld [vmem:[#allocation6 + $0x38] sm:$0xff]
    %v186 = vld [vmem:[#allocation6 + $0x40] sm:$0xff]
    %v187 = vld [vmem:[#allocation6 + $0x48] sm:$0xff]
    %v188 = vld [vmem:[#allocation6 + $0x50] sm:$0xff]
    %v189 = vld [vmem:[#allocation6 + $0x58] sm:$0xff]
    %v190 = vld [vmem:[#allocation6 + $0x60] sm:$0xff]
    %v191 = vld [vmem:[#allocation6 + $0x68] sm:$0xff]
    %v192 = vld [vmem:[#allocation6 + $0x70] sm:$0xff]
    %v193 = vld [vmem:[#allocation6 + $0x78] sm:$0xff]
    %v194 = vld [vmem:[#allocation6 + $0x80] sm:$0xff]
    %v195 = vld [vmem:[#allocation6 + $0x88] sm:$0xff]
    %v196 = vld [vmem:[#allocation6 + $0x90] sm:$0xff]
    %v197 = vld [vmem:[#allocation6 + $0x98] sm:$0xff]
    %v198 = vld [vmem:[#allocation6 + $0xa0] sm:$0xff]
    %v199 = vld [vmem:[#allocation6 + $0xa8] sm:$0xff]
    %v200 = vld [vmem:[#allocation6 + $0xb0] sm:$0xff]
    %v201 = vld [vmem:[#allocation6 + $0xb8] sm:$0xff]
    %v202 = vld [vmem:[#allocation6 + $0xc0] sm:$0xff]
    %v203 = vld [vmem:[#allocation6 + $0xc8] sm:$0xff]
    %v204 = vld [vmem:[#allocation6 + $0xd0] sm:$0xff]
    %v205 = vld [vmem:[#allocation6 + $0xd8] sm:$0xff]
    %v206 = vld [vmem:[#allocation6 + $0xe0] sm:$0xff]
    %v207 = vld [vmem:[#allocation6 + $0xe8] sm:$0xff]
    %v208 = vld [vmem:[#allocation6 + $0xf0] sm:$0xff]
    %v209 = vld [vmem:[#allocation6 + $0xf8] sm:$0xff]
    %v210 = vld [vmem:[%s2] sm:$0x3]
    %v212 = vlaneseq
    %v213 = vshrl.u32 %v212, 7
    %v214 = vsub.s32 0, %v213
    %v215 = vrot.slane %v210, %v214
    %v216 = vlaneseq
    %v217 = vshrl.u32 %v216, 7
    %v218 = vsub.s32 1, %v217
    %v219 = vrot.slane %v210, %v218
    %222 = vmatprep.subr.mxu0 %v179
    %223 = vmatpush1.msra.mxu0 %v178
    %224 = vmatprep.subr.mxu0 %v181
    %225 = vmatpush1.msra.mxu0 %v180
    %226 = vmatprep.subr.mxu0 %v183
    %227 = vmatpush1.msra.mxu0 %v182
    %228 = vmatprep.subr.mxu0 %v185
    %229 = vmatpush1.msra.mxu0 %v184
    %230 = vmatprep.subr.mxu0 %v187
    %231 = vmatpush1.msra.mxu0 %v186
    %232 = vmatprep.subr.mxu0 %v189
    %233 = vmatpush1.msra.mxu0 %v188
    %234 = vmatprep.subr.mxu0 %v191
    %235 = vmatpush1.msra.mxu0 %v190
    %236 = vmatprep.subr.mxu0 %v193
    %237 = vmatpush1.msra.mxu0 %v192
    %238 = vmatprep.subr.mxu0 %v195
    %239 = vmatpush1.msra.mxu0 %v194
    %240 = vmatprep.subr.mxu0 %v197
    %241 = vmatpush1.msra.mxu0 %v196
    %242 = vmatprep.subr.mxu0 %v199
    %243 = vmatpush1.msra.mxu0 %v198
    %244 = vmatprep.subr.mxu0 %v201
    %245 = vmatpush1.msra.mxu0 %v200
    %246 = vmatprep.subr.mxu0 %v203
    %247 = vmatpush1.msra.mxu0 %v202
    %248 = vmatprep.subr.mxu0 %v205
    %249 = vmatpush1.msra.mxu0 %v204
    %250 = vmatprep.subr.mxu0 %v207
    %251 = vmatpush1.msra.mxu0 %v206
    %252 = vmatprep.subr.mxu0 %v209
    %253 = vmatpush1.msra.mxu0 %v208
    %254 = vmatprep.subr.mxu0 0.0
    %255 = vmatpush1.msra.mxu0 0.0
    %256 = vmatprep.subr.mxu0 0.0
    %257 = vmatpush1.msra.mxu0 0.0
    %258 = vmatprep.subr.mxu0 0.0
    %259 = vmatpush1.msra.mxu0 0.0
    %260 = vmatprep.subr.mxu0 0.0
    %261 = vmatpush1.msra.mxu0 0.0
    %262 = vmatprep.subr.mxu0 0.0
    %263 = vmatpush1.msra.mxu0 0.0
    %264 = vmatprep.subr.mxu0 0.0
    %265 = vmatpush1.msra.mxu0 0.0
    %266 = vmatprep.subr.mxu0 0.0
    %267 = vmatpush1.msra.mxu0 0.0
    %268 = vmatprep.subr.mxu0 0.0
    %269 = vmatpush1.msra.mxu0 0.0
    %270 = vmatprep.subr.mxu0 0.0
    %271 = vmatpush1.msra.mxu0 0.0
    %272 = vmatprep.subr.mxu0 0.0
    %273 = vmatpush1.msra.mxu0 0.0
    %274 = vmatprep.subr.mxu0 0.0
    %275 = vmatpush1.msra.mxu0 0.0
    %276 = vmatprep.subr.mxu0 0.0
    %277 = vmatpush1.msra.mxu0 0.0
    %278 = vmatprep.subr.mxu0 0.0
    %279 = vmatpush1.msra.mxu0 0.0
    %280 = vmatprep.subr.mxu0 0.0
    %281 = vmatpush1.msra.mxu0 0.0
    %282 = vmatprep.subr.mxu0 0.0
    %283 = vmatpush1.msra.mxu0 0.0
    %284 = vmatprep.subr.mxu0 0.0
    %285 = vmatpush1.msra.mxu0 0.0
    %286 = vmatprep.mubr.f32.mxu0 0.0
    %287 = vmatmul.mubr.f32.gmra.mrb[0].mxu0 %v162
    %v288 = vpop.f32.mrb[0].mxu0
    %v289 = vadd.f32 %v215, %v288
    %v290 = vpop.f32.mrb[0].mxu0
    %v291 = vadd.f32 %v219, %v290
    %292 = vmatprep.mubr.f32.mxu0 0.0
    %293 = vmatmul.mubr.f32.gmra.mrb[0].mxu0 %v163
    %v294 = vpop.f32.mrb[0].mxu0
    %v295 = vadd.f32 %v215, %v294
    %v296 = vpop.f32.mrb[0].mxu0
    %v297 = vadd.f32 %v219, %v296
    %298 = vmatprep.mubr.f32.mxu0 0.0
    %299 = vmatmul.mubr.f32.gmra.mrb[0].mxu0 %v164
    %v300 = vpop.f32.mrb[0].mxu0
    %v301 = vadd.f32 %v215, %v300
    %v302 = vpop.f32.mrb[0].mxu0
    %v303 = vadd.f32 %v219, %v302
    %304 = vmatprep.mubr.f32.mxu0 0.0
    %305 = vmatmul.mubr.f32.gmra.mrb[0].mxu0 %v165
    %v306 = vpop.f32.mrb[0].mxu0
    %v307 = vadd.f32 %v215, %v306
    %v308 = vpop.f32.mrb[0].mxu0
    %v309 = vadd.f32 %v219, %v308
    %310 = vmatprep.mubr.f32.mxu0 0.0
    %311 = vmatmul.mubr.f32.gmra.mrb[0].mxu0 %v166
    %v312 = vpop.f32.mrb[0].mxu0
    %v313 = vadd.f32 %v215, %v312
    %v314 = vpop.f32.mrb[0].mxu0
    %v315 = vadd.f32 %v219, %v314
    %316 = vmatprep.mubr.f32.mxu0 0.0
    %317 = vmatmul.mubr.f32.gmra.mrb[0].mxu0 %v167
    %v318 = vpop.f32.mrb[0].mxu0
    %v319 = vadd.f32 %v215, %v318
    %v320 = vpop.f32.mrb[0].mxu0
    %v321 = vadd.f32 %v219, %v320
    %322 = vmatprep.mubr.f32.mxu0 0.0
    %323 = vmatmul.mubr.f32.gmra.mrb[0].mxu0 %v168
    %v324 = vpop.f32.mrb[0].mxu0
    %v325 = vadd.f32 %v215, %v324
    %v326 = vpop.f32.mrb[0].mxu0
    %v327 = vadd.f32 %v219, %v326
    %328 = vmatprep.mubr.f32.mxu0 0.0
    %329 = vmatmul.mubr.f32.gmra.mrb[0].mxu0 %v169
    %v330 = vpop.f32.mrb[0].mxu0
    %v331 = vadd.f32 %v215, %v330
    %v332 = vpop.f32.mrb[0].mxu0
    %v333 = vadd.f32 %v219, %v332
    %334 = vmatprep.mubr.f32.mxu0 0.0
    %335 = vmatmul.mubr.f32.gmra.mrb[0].mxu0 %v170
    %v336 = vpop.f32.mrb[0].mxu0
    %v337 = vadd.f32 %v215, %v336
    %v338 = vpop.f32.mrb[0].mxu0
    %v339 = vadd.f32 %v219, %v338
    %340 = vmatprep.mubr.f32.mxu0 0.0
    %341 = vmatmul.mubr.f32.gmra.mrb[0].mxu0 %v171
    %v342 = vpop.f32.mrb[0].mxu0
    %v343 = vadd.f32 %v215, %v342
    %v344 = vpop.f32.mrb[0].mxu0
    %v345 = vadd.f32 %v219, %v344
    %346 = vmatprep.mubr.f32.mxu0 0.0
    %347 = vmatmul.mubr.f32.gmra.mrb[0].mxu0 %v172
    %v348 = vpop.f32.mrb[0].mxu0
    %v349 = vadd.f32 %v215, %v348
    %v350 = vpop.f32.mrb[0].mxu0
    %v351 = vadd.f32 %v219, %v350
    %352 = vmatprep.mubr.f32.mxu0 0.0
    %353 = vmatmul.mubr.f32.gmra.mrb[0].mxu0 %v173
    %v354 = vpop.f32.mrb[0].mxu0
    %v355 = vadd.f32 %v215, %v354
    %v356 = vpop.f32.mrb[0].mxu0
    %v357 = vadd.f32 %v219, %v356
    %358 = vmatprep.mubr.f32.mxu0 0.0
    %359 = vmatmul.mubr.f32.gmra.mrb[0].mxu0 %v174
    %v360 = vpop.f32.mrb[0].mxu0
    %v361 = vadd.f32 %v215, %v360
    %v362 = vpop.f32.mrb[0].mxu0
    %v363 = vadd.f32 %v219, %v362
    %364 = vmatprep.mubr.f32.mxu0 0.0
    %365 = vmatmul.mubr.f32.gmra.mrb[0].mxu0 %v175
    %v366 = vpop.f32.mrb[0].mxu0
    %v367 = vadd.f32 %v215, %v366
    %v368 = vpop.f32.mrb[0].mxu0
    %v369 = vadd.f32 %v219, %v368
    %370 = vmatprep.mubr.f32.mxu0 0.0
    %371 = vmatmul.mubr.f32.gmra.mrb[0].mxu0 %v176
    %v372 = vpop.f32.mrb[0].mxu0
    %v373 = vadd.f32 %v215, %v372
    %v374 = vpop.f32.mrb[0].mxu0
    %v375 = vadd.f32 %v219, %v374
    %376 = vmatprep.mubr.f32.mxu0 0.0
    %377 = vmatmul.mubr.f32.gmra.mrb[0].mxu0 %v177
    %v378 = vpop.f32.mrb[0].mxu0
    %v379 = vadd.f32 %v215, %v378
    %v380 = vpop.f32.mrb[0].mxu0
    %v381 = vadd.f32 %v219, %v380
    %382 = vdwg.mxu0
    %v383 = vadd.f32 %v289, %v295
    %v384 = vadd.f32 %v383, %v301
    %v385 = vadd.f32 %v384, %v307
    %v386 = vadd.f32 %v385, %v313
    %v387 = vadd.f32 %v386, %v319
    %v388 = vadd.f32 %v387, %v325
    %v389 = vadd.f32 %v388, %v331
    %v390 = vadd.f32 %v389, %v337
    %v391 = vadd.f32 %v390, %v343
    %v392 = vadd.f32 %v391, %v349
    %v393 = vadd.f32 %v392, %v355
    %v394 = vadd.f32 %v393, %v361
    %v395 = vadd.f32 %v394, %v367
    %v396 = vadd.f32 %v395, %v373
    %v397 = vadd.f32 %v396, %v379
    %v398 = vrot.slane %v397, 4
    %v399 = vadd.f32 %v397, %v398
    %v400 = vrot.slane %v399, 2
    %v401 = vadd.f32 %v399, %v400
    %v402 = vrot.slane %v401, 1
    %v403 = vadd.f32 %v401, %v402
    %v404 = vadd.f32 %v291, %v297
    %v405 = vadd.f32 %v404, %v303
    %v406 = vadd.f32 %v405, %v309
    %v407 = vadd.f32 %v406, %v315
    %v408 = vadd.f32 %v407, %v321
    %v409 = vadd.f32 %v408, %v327
    %v410 = vadd.f32 %v409, %v333
    %v411 = vadd.f32 %v410, %v339
    %v412 = vadd.f32 %v411, %v345
    %v413 = vadd.f32 %v412, %v351
    %v414 = vadd.f32 %v413, %v357
    %v415 = vadd.f32 %v414, %v363
    %v416 = vadd.f32 %v415, %v369
    %v417 = vadd.f32 %v416, %v375
    %v418 = vadd.f32 %v417, %v381
    %v419 = vrot.slane %v418, 4
    %v420 = vadd.f32 %v418, %v419
    %v421 = vrot.slane %v420, 2
    %v422 = vadd.f32 %v420, %v421
    %v423 = vrot.slane %v422, 1
    %v424 = vadd.f32 %v422, %v423
    %v425 = vrcp.pop 128.0
    %v426 = vmul.f32 %v403, %v425
    %v427 = vmul.f32 %v424, %v425
    %v428 = vsub.f32 %v289, %v426
    %v429 = vsub.f32 %v291, %v427
    %v430 = vsub.f32 %v295, %v426
    %v431 = vsub.f32 %v297, %v427
    %v432 = vsub.f32 %v301, %v426
    %v433 = vsub.f32 %v303, %v427
    %v434 = vsub.f32 %v307, %v426
    %v435 = vsub.f32 %v309, %v427
    %v436 = vsub.f32 %v313, %v426
    %v437 = vsub.f32 %v315, %v427
    %v438 = vsub.f32 %v319, %v426
    %v439 = vsub.f32 %v321, %v427
    %v440 = vsub.f32 %v325, %v426
    %v441 = vsub.f32 %v327, %v427
    %v442 = vsub.f32 %v331, %v426
    %v443 = vsub.f32 %v333, %v427
    %v444 = vsub.f32 %v337, %v426
    %v445 = vsub.f32 %v339, %v427
    %v446 = vsub.f32 %v343, %v426
    %v447 = vsub.f32 %v345, %v427
    %v448 = vsub.f32 %v349, %v426
    %v449 = vsub.f32 %v351, %v427
    %v450 = vsub.f32 %v355, %v426
    %v451 = vsub.f32 %v357, %v427
    %v452 = vsub.f32 %v361, %v426
    %v453 = vsub.f32 %v363, %v427
    %v454 = vsub.f32 %v367, %v426
    %v455 = vsub.f32 %v369, %v427
    %v456 = vsub.f32 %v373, %v426
    %v457 = vsub.f32 %v375, %v427
    %v458 = vsub.f32 %v379, %v426
    %v459 = vsub.f32 %v381, %v427
    %v460 = vmul.f32 %v428, %v428
    %v461 = vmul.f32 %v429, %v429
    %v462 = vmul.f32 %v430, %v430
    %v463 = vmul.f32 %v431, %v431
    %v464 = vmul.f32 %v432, %v432
    %v465 = vmul.f32 %v433, %v433
    %v466 = vmul.f32 %v434, %v434
    %v467 = vmul.f32 %v435, %v435
    %v468 = vmul.f32 %v436, %v436
    %v469 = vmul.f32 %v437, %v437
    %v470 = vmul.f32 %v438, %v438
    %v471 = vmul.f32 %v439, %v439
    %v472 = vmul.f32 %v440, %v440
    %v473 = vmul.f32 %v441, %v441
    %v474 = vmul.f32 %v442, %v442
    %v475 = vmul.f32 %v443, %v443
    %v476 = vmul.f32 %v444, %v444
    %v477 = vmul.f32 %v445, %v445
    %v478 = vmul.f32 %v446, %v446
    %v479 = vmul.f32 %v447, %v447
    %v480 = vmul.f32 %v448, %v448
    %v481 = vmul.f32 %v449, %v449
    %v482 = vmul.f32 %v450, %v450
    %v483 = vmul.f32 %v451, %v451
    %v484 = vmul.f32 %v452, %v452
    %v485 = vmul.f32 %v453, %v453
    %v486 = vmul.f32 %v454, %v454
    %v487 = vmul.f32 %v455, %v455
    %v488 = vmul.f32 %v456, %v456
    %v489 = vmul.f32 %v457, %v457
    %v490 = vmul.f32 %v458, %v458
    %v491 = vmul.f32 %v459, %v459
    %v492 = vadd.f32 %v460, %v462
    %v493 = vadd.f32 %v492, %v464
    %v494 = vadd.f32 %v493, %v466
    %v495 = vadd.f32 %v494, %v468
    %v496 = vadd.f32 %v495, %v470
    %v497 = vadd.f32 %v496, %v472
    %v498 = vadd.f32 %v497, %v474
    %v499 = vadd.f32 %v498, %v476
    %v500 = vadd.f32 %v499, %v478
    %v501 = vadd.f32 %v500, %v480
    %v502 = vadd.f32 %v501, %v482
    %v503 = vadd.f32 %v502, %v484
    %v504 = vadd.f32 %v503, %v486
    %v505 = vadd.f32 %v504, %v488
    %v506 = vadd.f32 %v505, %v490
    %v507 = vrot.slane %v506, 4
    %v508 = vadd.f32 %v506, %v507
    %v509 = vrot.slane %v508, 2
    %v510 = vadd.f32 %v508, %v509
    %v511 = vrot.slane %v510, 1
    %v512 = vadd.f32 %v510, %v511
    %v513 = vadd.f32 %v461, %v463
    %v514 = vadd.f32 %v513, %v465
    %v515 = vadd.f32 %v514, %v467
    %v516 = vadd.f32 %v515, %v469
    %v517 = vadd.f32 %v516, %v471
    %v518 = vadd.f32 %v517, %v473
    %v519 = vadd.f32 %v518, %v475
    %v520 = vadd.f32 %v519, %v477
    %v521 = vadd.f32 %v520, %v479
    %v522 = vadd.f32 %v521, %v481
    %v523 = vadd.f32 %v522, %v483
    %v524 = vadd.f32 %v523, %v485
    %v525 = vadd.f32 %v524, %v487
    %v526 = vadd.f32 %v525, %v489
    %v527 = vadd.f32 %v526, %v491
    %v528 = vrot.slane %v527, 4
    %v529 = vadd.f32 %v527, %v528
    %v530 = vrot.slane %v529, 2
    %v531 = vadd.f32 %v529, %v530
    %v532 = vrot.slane %v531, 1
    %v533 = vadd.f32 %v531, %v532
    %v534 = vmul.f32 %v512, %v425
    %v535 = vmul.f32 %v533, %v425
    %v536 = vadd.f32 %v534, 1e-05
    %v537 = vadd.f32 %v535, 1e-05
    %v538 = vrsqrt.pop %v536
    %v539 = vrsqrt.pop %v537
    %v540 = vmul.f32 %v428, %v538
    %v541 = vmul.f32 %v429, %v539
    %v542 = vmul.f32 %v430, %v538
    %v543 = vmul.f32 %v431, %v539
    %v544 = vmul.f32 %v432, %v538
    %v545 = vmul.f32 %v433, %v539
    %v546 = vmul.f32 %v434, %v538
    %v547 = vmul.f32 %v435, %v539
    %v548 = vmul.f32 %v436, %v538
    %v549 = vmul.f32 %v437, %v539
    %v550 = vmul.f32 %v438, %v538
    %v551 = vmul.f32 %v439, %v539
    %v552 = vmul.f32 %v440, %v538
    %v553 = vmul.f32 %v441, %v539
    %v554 = vmul.f32 %v442, %v538
    %v555 = vmul.f32 %v443, %v539
    %v556 = vmul.f32 %v444, %v538
    %v557 = vmul.f32 %v445, %v539
    %v558 = vmul.f32 %v446, %v538
    %v559 = vmul.f32 %v447, %v539
    %v560 = vmul.f32 %v448, %v538
    %v561 = vmul.f32 %v449, %v539
    %v562 = vmul.f32 %v450, %v538
    %v563 = vmul.f32 %v451, %v539
    %v564 = vmul.f32 %v452, %v538
    %v565 = vmul.f32 %v453, %v539
    %v566 = vmul.f32 %v454, %v538
    %v567 = vmul.f32 %v455, %v539
    %v568 = vmul.f32 %v456, %v538
    %v569 = vmul.f32 %v457, %v539
    %v570 = vmul.f32 %v458, %v538
    %v571 = vmul.f32 %v459, %v539
    %v572 = vld [vmem:[%s3] sm:$0x3]
    %v574 = vlaneseq
    %v575 = vshrl.u32 %v574, 7
    %v576 = vsub.s32 0, %v575
    %v577 = vrot.slane %v572, %v576
    %v578 = vlaneseq
    %v579 = vshrl.u32 %v578, 7
    %v580 = vsub.s32 1, %v579
    %v581 = vrot.slane %v572, %v580
    %v584 = vmul.f32 %v540, %v577
    %v585 = vmul.f32 %v541, %v581
    %v586 = vmul.f32 %v542, %v577
    %v587 = vmul.f32 %v543, %v581
    %v588 = vmul.f32 %v544, %v577
    %v589 = vmul.f32 %v545, %v581
    %v590 = vmul.f32 %v546, %v577
    %v591 = vmul.f32 %v547, %v581
    %v592 = vmul.f32 %v548, %v577
    %v593 = vmul.f32 %v549, %v581
    %v594 = vmul.f32 %v550, %v577
    %v595 = vmul.f32 %v551, %v581
    %v596 = vmul.f32 %v552, %v577
    %v597 = vmul.f32 %v553, %v581
    %v598 = vmul.f32 %v554, %v577
    %v599 = vmul.f32 %v555, %v581
    %v600 = vmul.f32 %v556, %v577
    %v601 = vmul.f32 %v557, %v581
    %v602 = vmul.f32 %v558, %v577
    %v603 = vmul.f32 %v559, %v581
    %v604 = vmul.f32 %v560, %v577
    %v605 = vmul.f32 %v561, %v581
    %v606 = vmul.f32 %v562, %v577
    %v607 = vmul.f32 %v563, %v581
    %v608 = vmul.f32 %v564, %v577
    %v609 = vmul.f32 %v565, %v581
    %v610 = vmul.f32 %v566, %v577
    %v611 = vmul.f32 %v567, %v581
    %v612 = vmul.f32 %v568, %v577
    %v613 = vmul.f32 %v569, %v581
    %v614 = vmul.f32 %v570, %v577
    %v615 = vmul.f32 %v571, %v581
    %v616 = vld [vmem:[%s4] sm:$0x3]
    %v618 = vlaneseq
    %v619 = vshrl.u32 %v618, 7
    %v620 = vsub.s32 0, %v619
    %v621 = vrot.slane %v616, %v620
    %v622 = vlaneseq
    %v623 = vshrl.u32 %v622, 7
    %v624 = vsub.s32 1, %v623
    %v625 = vrot.slane %v616, %v624
    %v628 = vadd.f32 %v584, %v621
    %v629 = vadd.f32 %v585, %v625
    %v630 = vadd.f32 %v586, %v621
    %v631 = vadd.f32 %v587, %v625
    %v632 = vadd.f32 %v588, %v621
    %v633 = vadd.f32 %v589, %v625
    %v634 = vadd.f32 %v590, %v621
    %v635 = vadd.f32 %v591, %v625
    %v636 = vadd.f32 %v592, %v621
    %v637 = vadd.f32 %v593, %v625
    %v638 = vadd.f32 %v594, %v621
    %v639 = vadd.f32 %v595, %v625
    %v640 = vadd.f32 %v596, %v621
    %v641 = vadd.f32 %v597, %v625
    %v642 = vadd.f32 %v598, %v621
    %v643 = vadd.f32 %v599, %v625
    %v644 = vadd.f32 %v600, %v621
    %v645 = vadd.f32 %v601, %v625
    %v646 = vadd.f32 %v602, %v621
    %v647 = vadd.f32 %v603, %v625
    %v648 = vadd.f32 %v604, %v621
    %v649 = vadd.f32 %v605, %v625
    %v650 = vadd.f32 %v606, %v621
    %v651 = vadd.f32 %v607, %v625
    %v652 = vadd.f32 %v608, %v621
    %v653 = vadd.f32 %v609, %v625
    %v654 = vadd.f32 %v610, %v621
    %v655 = vadd.f32 %v611, %v625
    %v656 = vadd.f32 %v612, %v621
    %v657 = vadd.f32 %v613, %v625
    %v658 = vadd.f32 %v614, %v621
    %v659 = vadd.f32 %v615, %v625
    %v660 = vmax.f32 %v628, 0.0
    %v661 = vmax.f32 %v629, 0.0
    %v662 = vmax.f32 %v630, 0.0
    %v663 = vmax.f32 %v631, 0.0
    %v664 = vmax.f32 %v632, 0.0
    %v665 = vmax.f32 %v633, 0.0
    %v666 = vmax.f32 %v634, 0.0
    %v667 = vmax.f32 %v635, 0.0
    %v668 = vmax.f32 %v636, 0.0
    %v669 = vmax.f32 %v637, 0.0
    %v670 = vmax.f32 %v638, 0.0
    %v671 = vmax.f32 %v639, 0.0
    %v672 = vmax.f32 %v640, 0.0
    %v673 = vmax.f32 %v641, 0.0
    %v674 = vmax.f32 %v642, 0.0
    %v675 = vmax.f32 %v643, 0.0
    %v676 = vmax.f32 %v644, 0.0
    %v677 = vmax.f32 %v645, 0.0
    %v678 = vmax.f32 %v646, 0.0
    %v679 = vmax.f32 %v647, 0.0
    %v680 = vmax.f32 %v648, 0.0
    %v681 = vmax.f32 %v649, 0.0
    %v682 = vmax.f32 %v650, 0.0
    %v683 = vmax.f32 %v651, 0.0
    %v684 = vmax.f32 %v652, 0.0
    %v685 = vmax.f32 %v653, 0.0
    %v686 = vmax.f32 %v654, 0.0
    %v687 = vmax.f32 %v655, 0.0
    %v688 = vmax.f32 %v656, 0.0
    %v689 = vmax.f32 %v657, 0.0
    %v690 = vmax.f32 %v658, 0.0
    %v691 = vmax.f32 %v659, 0.0
    %v692 = vld [vmem:[#allocation8] sm:$0xff]
    %v693 = vld [vmem:[#allocation8 + $0x8] sm:$0xff]
    %v694 = vld [vmem:[#allocation8 + $0x10] sm:$0xff]
    %v695 = vld [vmem:[#allocation8 + $0x18] sm:$0xff]
    %v696 = vld [vmem:[#allocation8 + $0x20] sm:$0xff]
    %v697 = vld [vmem:[#allocation8 + $0x28] sm:$0xff]
    %v698 = vld [vmem:[#allocation8 + $0x30] sm:$0xff]
    %v699 = vld [vmem:[#allocation8 + $0x38] sm:$0xff]
    %v700 = vld [vmem:[#allocation8 + $0x40] sm:$0xff]
    %v701 = vld [vmem:[#allocation8 + $0x48] sm:$0xff]
    %v702 = vld [vmem:[#allocation8 + $0x50] sm:$0xff]
    %v703 = vld [vmem:[#allocation8 + $0x58] sm:$0xff]
    %v704 = vld [vmem:[#allocation8 + $0x60] sm:$0xff]
    %v705 = vld [vmem:[#allocation8 + $0x68] sm:$0xff]
    %v706 = vld [vmem:[#allocation8 + $0x70] sm:$0xff]
    %v707 = vld [vmem:[#allocation8 + $0x78] sm:$0xff]
    %v708 = vld [vmem:[#allocation8 + $0x80] sm:$0xff]
    %v709 = vld [vmem:[#allocation8 + $0x88] sm:$0xff]
    %v710 = vld [vmem:[#allocation8 + $0x90] sm:$0xff]
    %v711 = vld [vmem:[#allocation8 + $0x98] sm:$0xff]
    %v712 = vld [vmem:[#allocation8 + $0xa0] sm:$0xff]
    %v713 = vld [vmem:[#allocation8 + $0xa8] sm:$0xff]
    %v714 = vld [vmem:[#allocation8 + $0xb0] sm:$0xff]
    %v715 = vld [vmem:[#allocation8 + $0xb8] sm:$0xff]
    %v716 = vld [vmem:[#allocation8 + $0xc0] sm:$0xff]
    %v717 = vld [vmem:[#allocation8 + $0xc8] sm:$0xff]
    %v718 = vld [vmem:[#allocation8 + $0xd0] sm:$0xff]
    %v719 = vld [vmem:[#allocation8 + $0xd8] sm:$0xff]
    %v720 = vld [vmem:[#allocation8 + $0xe0] sm:$0xff]
    %v721 = vld [vmem:[#allocation8 + $0xe8] sm:$0xff]
    %v722 = vld [vmem:[#allocation8 + $0xf0] sm:$0xff]
    %v723 = vld [vmem:[#allocation8 + $0xf8] sm:$0xff]
    %v724 = vld [vmem:[%s6] sm:$0x1]
    %v726 = vlaneseq
    %v727 = vshrl.u32 %v726, 7
    %v728 = vsub.s32 0, %v727
    %v729 = vrot.slane %v724, %v728
    %731 = vmatprep.subr.mxu0 0.0
    %732 = vmatpush1.msra.mxu0 %v692
    %733 = vmatprep.subr.mxu0 0.0
    %734 = vmatpush1.msra.mxu0 %v693
    %735 = vmatprep.subr.mxu0 0.0
    %736 = vmatpush1.msra.mxu0 %v694
    %737 = vmatprep.subr.mxu0 0.0
    %738 = vmatpush1.msra.mxu0 %v695
    %739 = vmatprep.subr.mxu0 0.0
    %740 = vmatpush1.msra.mxu0 %v696
    %741 = vmatprep.subr.mxu0 0.0
    %742 = vmatpush1.msra.mxu0 %v697
    %743 = vmatprep.subr.mxu0 0.0
    %744 = vmatpush1.msra.mxu0 %v698
    %745 = vmatprep.subr.mxu0 0.0
    %746 = vmatpush1.msra.mxu0 %v699
    %747 = vmatprep.subr.mxu0 0.0
    %748 = vmatpush1.msra.mxu0 %v700
    %749 = vmatprep.subr.mxu0 0.0
    %750 = vmatpush1.msra.mxu0 %v701
    %751 = vmatprep.subr.mxu0 0.0
    %752 = vmatpush1.msra.mxu0 %v702
    %753 = vmatprep.subr.mxu0 0.0
    %754 = vmatpush1.msra.mxu0 %v703
    %755 = vmatprep.subr.mxu0 0.0
    %756 = vmatpush1.msra.mxu0 %v704
    %757 = vmatprep.subr.mxu0 0.0
    %758 = vmatpush1.msra.mxu0 %v705
    %759 = vmatprep.subr.mxu0 0.0
    %760 = vmatpush1.msra.mxu0 %v706
    %761 = vmatprep.subr.mxu0 0.0
    %762 = vmatpush1.msra.mxu0 %v707
    %763 = vmatprep.subr.mxu0 0.0
    %764 = vmatpush1.msra.mxu0 %v708
    %765 = vmatprep.subr.mxu0 0.0
    %766 = vmatpush1.msra.mxu0 %v709
    %767 = vmatprep.subr.mxu0 0.0
    %768 = vmatpush1.msra.mxu0 %v710
    %769 = vmatprep.subr.mxu0 0.0
    %770 = vmatpush1.msra.mxu0 %v711
    %771 = vmatprep.subr.mxu0 0.0
    %772 = vmatpush1.msra.mxu0 %v712
    %773 = vmatprep.subr.mxu0 0.0
    %774 = vmatpush1.msra.mxu0 %v713
    %775 = vmatprep.subr.mxu0 0.0
    %776 = vmatpush1.msra.mxu0 %v714
    %777 = vmatprep.subr.mxu0 0.0
    %778 = vmatpush1.msra.mxu0 %v715
    %779 = vmatprep.subr.mxu0 0.0
    %780 = vmatpush1.msra.mxu0 %v716
    %781 = vmatprep.subr.mxu0 0.0
    %782 = vmatpush1.msra.mxu0 %v717
    %783 = vmatprep.subr.mxu0 0.0
    %784 = vmatpush1.msra.mxu0 %v718
    %785 = vmatprep.subr.mxu0 0.0
    %786 = vmatpush1.msra.mxu0 %v719
    %787 = vmatprep.subr.mxu0 0.0
    %788 = vmatpush1.msra.mxu0 %v720
    %789 = vmatprep.subr.mxu0 0.0
    %790 = vmatpush1.msra.mxu0 %v721
    %791 = vmatprep.subr.mxu0 0.0
    %792 = vmatpush1.msra.mxu0 %v722
    %793 = vmatprep.subr.mxu0 0.0
    %794 = vmatpush1.msra.mxu0 %v723
    %795 = vmatprep.mubr.f32.mxu0 %v661
    %796 = vmatmul.mubr.f32.gmra.mrb[0].mxu0 %v660
    %v797 = vpop.f32.mrb[0].mxu0
    %v798 = vadd.f32 %v729, %v797
    %v799 = vpop.f32.mrb[0].mxu0
    %800 = vmatprep.mubr.f32.mxu0 %v663
    %801 = vmatmul.mubr.f32.gmra.mrb[0].mxu0 %v662
    %v802 = vpop.f32.mrb[0].mxu0
    %v803 = vadd.f32 %v729, %v802
    %v804 = vpop.f32.mrb[0].mxu0
    %805 = vmatprep.mubr.f32.mxu0 %v665
    %806 = vmatmul.mubr.f32.gmra.mrb[0].mxu0 %v664
    %v807 = vpop.f32.mrb[0].mxu0
    %v808 = vadd.f32 %v729, %v807
    %v809 = vpop.f32.mrb[0].mxu0
    %810 = vmatprep.mubr.f32.mxu0 %v667
    %811 = vmatmul.mubr.f32.gmra.mrb[0].mxu0 %v666
    %v812 = vpop.f32.mrb[0].mxu0
    %v813 = vadd.f32 %v729, %v812
    %v814 = vpop.f32.mrb[0].mxu0
    %815 = vmatprep.mubr.f32.mxu0 %v669
    %816 = vmatmul.mubr.f32.gmra.mrb[0].mxu0 %v668
    %v817 = vpop.f32.mrb[0].mxu0
    %v818 = vadd.f32 %v729, %v817
    %v819 = vpop.f32.mrb[0].mxu0
    %820 = vmatprep.mubr.f32.mxu0 %v671
    %821 = vmatmul.mubr.f32.gmra.mrb[0].mxu0 %v670
    %v822 = vpop.f32.mrb[0].mxu0
    %v823 = vadd.f32 %v729, %v822
    %v824 = vpop.f32.mrb[0].mxu0
    %825 = vmatprep.mubr.f32.mxu0 %v673
    %826 = vmatmul.mubr.f32.gmra.mrb[0].mxu0 %v672
    %v827 = vpop.f32.mrb[0].mxu0
    %v828 = vadd.f32 %v729, %v827
    %v829 = vpop.f32.mrb[0].mxu0
    %830 = vmatprep.mubr.f32.mxu0 %v675
    %831 = vmatmul.mubr.f32.gmra.mrb[0].mxu0 %v674
    %v832 = vpop.f32.mrb[0].mxu0
    %v833 = vadd.f32 %v729, %v832
    %v834 = vpop.f32.mrb[0].mxu0
    %835 = vmatprep.mubr.f32.mxu0 %v677
    %836 = vmatmul.mubr.f32.gmra.mrb[0].mxu0 %v676
    %v837 = vpop.f32.mrb[0].mxu0
    %v838 = vadd.f32 %v729, %v837
    %v839 = vpop.f32.mrb[0].mxu0
    %840 = vmatprep.mubr.f32.mxu0 %v679
    %841 = vmatmul.mubr.f32.gmra.mrb[0].mxu0 %v678
    %v842 = vpop.f32.mrb[0].mxu0
    %v843 = vadd.f32 %v729, %v842
    %v844 = vpop.f32.mrb[0].mxu0
    %845 = vmatprep.mubr.f32.mxu0 %v681
    %846 = vmatmul.mubr.f32.gmra.mrb[0].mxu0 %v680
    %v847 = vpop.f32.mrb[0].mxu0
    %v848 = vadd.f32 %v729, %v847
    %v849 = vpop.f32.mrb[0].mxu0
    %850 = vmatprep.mubr.f32.mxu0 %v683
    %851 = vmatmul.mubr.f32.gmra.mrb[0].mxu0 %v682
    %v852 = vpop.f32.mrb[0].mxu0
    %v853 = vadd.f32 %v729, %v852
    %v854 = vpop.f32.mrb[0].mxu0
    %855 = vmatprep.mubr.f32.mxu0 %v685
    %856 = vmatmul.mubr.f32.gmra.mrb[0].mxu0 %v684
    %v857 = vpop.f32.mrb[0].mxu0
    %v858 = vadd.f32 %v729, %v857
    %v859 = vpop.f32.mrb[0].mxu0
    %860 = vmatprep.mubr.f32.mxu0 %v687
    %861 = vmatmul.mubr.f32.gmra.mrb[0].mxu0 %v686
    %v862 = vpop.f32.mrb[0].mxu0
    %v863 = vadd.f32 %v729, %v862
    %v864 = vpop.f32.mrb[0].mxu0
    %865 = vmatprep.mubr.f32.mxu0 %v689
    %866 = vmatmul.mubr.f32.gmra.mrb[0].mxu0 %v688
    %v867 = vpop.f32.mrb[0].mxu0
    %v868 = vadd.f32 %v729, %v867
    %v869 = vpop.f32.mrb[0].mxu0
    %870 = vmatprep.mubr.f32.mxu0 %v691
    %871 = vmatmul.mubr.f32.gmra.mrb[0].mxu0 %v690
    %v872 = vpop.f32.mrb[0].mxu0
    %v873 = vadd.f32 %v729, %v872
    %v874 = vpop.f32.mrb[0].mxu0
    %875 = vdwg.mxu0
    %876 = vst [vmem:[#allocation2] sm:$0xff] %v798
    %877 = vst [vmem:[#allocation2 + $0x8] sm:$0xff] %v803
    %878 = vst [vmem:[#allocation2 + $0x10] sm:$0xff] %v808
    %879 = vst [vmem:[#allocation2 + $0x18] sm:$0xff] %v813
    %880 = vst [vmem:[#allocation2 + $0x20] sm:$0xff] %v818
    %881 = vst [vmem:[#allocation2 + $0x28] sm:$0xff] %v823
    %882 = vst [vmem:[#allocation2 + $0x30] sm:$0xff] %v828
    %883 = vst [vmem:[#allocation2 + $0x38] sm:$0xff] %v833
    %884 = vst [vmem:[#allocation2 + $0x40] sm:$0xff] %v838
    %885 = vst [vmem:[#allocation2 + $0x48] sm:$0xff] %v843
    %886 = vst [vmem:[#allocation2 + $0x50] sm:$0xff] %v848
    %887 = vst [vmem:[#allocation2 + $0x58] sm:$0xff] %v853
    %888 = vst [vmem:[#allocation2 + $0x60] sm:$0xff] %v858
    %889 = vst [vmem:[#allocation2 + $0x68] sm:$0xff] %v863
    %890 = vst [vmem:[#allocation2 + $0x70] sm:$0xff] %v868
    %891 = vst [vmem:[#allocation2 + $0x78] sm:$0xff] %v873
    %v892 = vld [vmem:[#allocation2] sm:$0xff]
    %v893 = vld [vmem:[#allocation2 + $0x8] sm:$0xff]
    %v894 = vld [vmem:[#allocation2 + $0x10] sm:$0xff]
    %v895 = vld [vmem:[#allocation2 + $0x18] sm:$0xff]
    %v896 = vld [vmem:[#allocation2 + $0x20] sm:$0xff]
    %v897 = vld [vmem:[#allocation2 + $0x28] sm:$0xff]
    %v898 = vld [vmem:[#allocation2 + $0x30] sm:$0xff]
    %v899 = vld [vmem:[#allocation2 + $0x38] sm:$0xff]
    %v900 = vld [vmem:[#allocation2 + $0x40] sm:$0xff]
    %v901 = vld [vmem:[#allocation2 + $0x48] sm:$0xff]
    %v902 = vld [vmem:[#allocation2 + $0x50] sm:$0xff]
    %v903 = vld [vmem:[#allocation2 + $0x58] sm:$0xff]
    %v904 = vld [vmem:[#allocation2 + $0x60] sm:$0xff]
    %v905 = vld [vmem:[#allocation2 + $0x68] sm:$0xff]
    %v906 = vld [vmem:[#allocation2 + $0x70] sm:$0xff]
    %v907 = vld [vmem:[#allocation2 + $0x78] sm:$0xff]
    %v908 = vld [vmem:[#allocation12] sm:$0xff]
    %v909 = vld [vmem:[#allocation12 + $0x8] sm:$0xff]
    %v910 = vld [vmem:[#allocation12 + $0x10] sm:$0xff]
    %v911 = vld [vmem:[#allocation12 + $0x18] sm:$0xff]
    %v912 = vld [vmem:[#allocation12 + $0x20] sm:$0xff]
    %v913 = vld [vmem:[#allocation12 + $0x28] sm:$0xff]
    %v914 = vld [vmem:[#allocation12 + $0x30] sm:$0xff]
    %v915 = vld [vmem:[#allocation12 + $0x38] sm:$0xff]
    %v916 = vld [vmem:[#allocation12 + $0x40] sm:$0xff]
    %v917 = vld [vmem:[#allocation12 + $0x48] sm:$0xff]
    %v918 = vld [vmem:[#allocation12 + $0x50] sm:$0xff]
    %v919 = vld [vmem:[#allocation12 + $0x58] sm:$0xff]
    %v920 = vld [vmem:[#allocation12 + $0x60] sm:$0xff]
    %v921 = vld [vmem:[#allocation12 + $0x68] sm:$0xff]
    %v922 = vld [vmem:[#allocation12 + $0x70] sm:$0xff]
    %v923 = vld [vmem:[#allocation12 + $0x78] sm:$0xff]
    %v924 = vld [vmem:[#allocation12 + $0x80] sm:$0xff]
    %v925 = vld [vmem:[#allocation12 + $0x88] sm:$0xff]
    %v926 = vld [vmem:[#allocation12 + $0x90] sm:$0xff]
    %v927 = vld [vmem:[#allocation12 + $0x98] sm:$0xff]
    %v928 = vld [vmem:[#allocation12 + $0xa0] sm:$0xff]
    %v929 = vld [vmem:[#allocation12 + $0xa8] sm:$0xff]
    %v930 = vld [vmem:[#allocation12 + $0xb0] sm:$0xff]
    %v931 = vld [vmem:[#allocation12 + $0xb8] sm:$0xff]
    %v932 = vld [vmem:[#allocation12 + $0xc0] sm:$0xff]
    %v933 = vld [vmem:[#allocation12 + $0xc8] sm:$0xff]
    %v934 = vld [vmem:[#allocation12 + $0xd0] sm:$0xff]
    %v935 = vld [vmem:[#allocation12 + $0xd8] sm:$0xff]
    %v936 = vld [vmem:[#allocation12 + $0xe0] sm:$0xff]
    %v937 = vld [vmem:[#allocation12 + $0xe8] sm:$0xff]
    %v938 = vld [vmem:[#allocation12 + $0xf0] sm:$0xff]
    %v939 = vld [vmem:[#allocation12 + $0xf8] sm:$0xff]
    %v940 = vld [vmem:[%s14] sm:$0x3]
    %v942 = vlaneseq
    %v943 = vshrl.u32 %v942, 7
    %v944 = vsub.s32 0, %v943
    %v945 = vrot.slane %v940, %v944
    %v946 = vlaneseq
    %v947 = vshrl.u32 %v946, 7
    %v948 = vsub.s32 1, %v947
    %v949 = vrot.slane %v940, %v948
    %952 = vmatprep.subr.mxu0 %v909
    %953 = vmatpush1.msra.mxu0 %v908
    %954 = vmatprep.subr.mxu0 %v911
    %955 = vmatpush1.msra.mxu0 %v910
    %956 = vmatprep.subr.mxu0 %v913
    %957 = vmatpush1.msra.mxu0 %v912
    %958 = vmatprep.subr.mxu0 %v915
    %959 = vmatpush1.msra.mxu0 %v914
    %960 = vmatprep.subr.mxu0 %v917
    %961 = vmatpush1.msra.mxu0 %v916
    %962 = vmatprep.subr.mxu0 %v919
    %963 = vmatpush1.msra.mxu0 %v918
    %964 = vmatprep.subr.mxu0 %v921
    %965 = vmatpush1.msra.mxu0 %v920
    %966 = vmatprep.subr.mxu0 %v923
    %967 = vmatpush1.msra.mxu0 %v922
    %968 = vmatprep.subr.mxu0 %v925
    %969 = vmatpush1.msra.mxu0 %v924
    %970 = vmatprep.subr.mxu0 %v927
    %971 = vmatpush1.msra.mxu0 %v926
    %972 = vmatprep.subr.mxu0 %v929
    %973 = vmatpush1.msra.mxu0 %v928
    %974 = vmatprep.subr.mxu0 %v931
    %975 = vmatpush1.msra.mxu0 %v930
    %976 = vmatprep.subr.mxu0 %v933
    %977 = vmatpush1.msra.mxu0 %v932
    %978 = vmatprep.subr.mxu0 %v935
    %979 = vmatpush1.msra.mxu0 %v934
    %980 = vmatprep.subr.mxu0 %v937
    %981 = vmatpush1.msra.mxu0 %v936
    %982 = vmatprep.subr.mxu0 %v939
    %983 = vmatpush1.msra.mxu0 %v938
    %984 = vmatprep.subr.mxu0 0.0
    %985 = vmatpush1.msra.mxu0 0.0
    %986 = vmatprep.subr.mxu0 0.0
    %987 = vmatpush1.msra.mxu0 0.0
    %988 = vmatprep.subr.mxu0 0.0
    %989 = vmatpush1.msra.mxu0 0.0
    %990 = vmatprep.subr.mxu0 0.0
    %991 = vmatpush1.msra.mxu0 0.0
    %992 = vmatprep.subr.mxu0 0.0
    %993 = vmatpush1.msra.mxu0 0.0
    %994 = vmatprep.subr.mxu0 0.0
    %995 = vmatpush1.msra.mxu0 0.0
    %996 = vmatprep.subr.mxu0 0.0
    %997 = vmatpush1.msra.mxu0 0.0
    %998 = vmatprep.subr.mxu0 0.0
    %999 = vmatpush1.msra.mxu0 0.0
    %1000 = vmatprep.subr.mxu0 0.0
    %1001 = vmatpush1.msra.mxu0 0.0
    %1002 = vmatprep.subr.mxu0 0.0
    %1003 = vmatpush1.msra.mxu0 0.0
    %1004 = vmatprep.subr.mxu0 0.0
    %1005 = vmatpush1.msra.mxu0 0.0
    %1006 = vmatprep.subr.mxu0 0.0
    %1007 = vmatpush1.msra.mxu0 0.0
    %1008 = vmatprep.subr.mxu0 0.0
    %1009 = vmatpush1.msra.mxu0 0.0
    %1010 = vmatprep.subr.mxu0 0.0
    %1011 = vmatpush1.msra.mxu0 0.0
    %1012 = vmatprep.subr.mxu0 0.0
    %1013 = vmatpush1.msra.mxu0 0.0
    %1014 = vmatprep.subr.mxu0 0.0
    %1015 = vmatpush1.msra.mxu0 0.0
    %1016 = vmatprep.mubr.f32.mxu0 0.0
    %1017 = vmatmul.mubr.f32.gmra.mrb[0].mxu0 %v892
    %v1018 = vpop.f32.mrb[0].mxu0
    %v1019 = vadd.f32 %v945, %v1018
    %v1020 = vpop.f32.mrb[0].mxu0
    %v1021 = vadd.f32 %v949, %v1020
    %1022 = vmatprep.mubr.f32.mxu0 0.0
    %1023 = vmatmul.mubr.f32.gmra.mrb[0].mxu0 %v893
    %v1024 = vpop.f32.mrb[0].mxu0
    %v1025 = vadd.f32 %v945, %v1024
    %v1026 = vpop.f32.mrb[0].mxu0
    %v1027 = vadd.f32 %v949, %v1026
    %1028 = vmatprep.mubr.f32.mxu0 0.0
    %1029 = vmatmul.mubr.f32.gmra.mrb[0].mxu0 %v894
    %v1030 = vpop.f32.mrb[0].mxu0
    %v1031 = vadd.f32 %v945, %v1030
    %v1032 = vpop.f32.mrb[0].mxu0
    %v1033 = vadd.f32 %v949, %v1032
    %1034 = vmatprep.mubr.f32.mxu0 0.0
    %1035 = vmatmul.mubr.f32.gmra.mrb[0].mxu0 %v895
    %v1036 = vpop.f32.mrb[0].mxu0
    %v1037 = vadd.f32 %v945, %v1036
    %v1038 = vpop.f32.mrb[0].mxu0
    %v1039 = vadd.f32 %v949, %v1038
    %1040 = vmatprep.mubr.f32.mxu0 0.0
    %1041 = vmatmul.mubr.f32.gmra.mrb[0].mxu0 %v896
    %v1042 = vpop.f32.mrb[0].mxu0
    %v1043 = vadd.f32 %v945, %v1042
    %v1044 = vpop.f32.mrb[0].mxu0
    %v1045 = vadd.f32 %v949, %v1044
    %1046 = vmatprep.mubr.f32.mxu0 0.0
    %1047 = vmatmul.mubr.f32.gmra.mrb[0].mxu0 %v897
    %v1048 = vpop.f32.mrb[0].mxu0
    %v1049 = vadd.f32 %v945, %v1048
    %v1050 = vpop.f32.mrb[0].mxu0
    %v1051 = vadd.f32 %v949, %v1050
    %1052 = vmatprep.mubr.f32.mxu0 0.0
    %1053 = vmatmul.mubr.f32.gmra.mrb[0].mxu0 %v898
    %v1054 = vpop.f32.mrb[0].mxu0
    %v1055 = vadd.f32 %v945, %v1054
    %v1056 = vpop.f32.mrb[0].mxu0
    %v1057 = vadd.f32 %v949, %v1056
    %1058 = vmatprep.mubr.f32.mxu0 0.0
    %1059 = vmatmul.mubr.f32.gmra.mrb[0].mxu0 %v899
    %v1060 = vpop.f32.mrb[0].mxu0
    %v1061 = vadd.f32 %v945, %v1060
    %v1062 = vpop.f32.mrb[0].mxu0
    %v1063 = vadd.f32 %v949, %v1062
    %1064 = vmatprep.mubr.f32.mxu0 0.0
    %1065 = vmatmul.mubr.f32.gmra.mrb[0].mxu0 %v900
    %v1066 = vpop.f32.mrb[0].mxu0
    %v1067 = vadd.f32 %v945, %v1066
    %v1068 = vpop.f32.mrb[0].mxu0
    %v1069 = vadd.f32 %v949, %v1068
    %1070 = vmatprep.mubr.f32.mxu0 0.0
    %1071 = vmatmul.mubr.f32.gmra.mrb[0].mxu0 %v901
    %v1072 = vpop.f32.mrb[0].mxu0
    %v1073 = vadd.f32 %v945, %v1072
    %v1074 = vpop.f32.mrb[0].mxu0
    %v1075 = vadd.f32 %v949, %v1074
    %1076 = vmatprep.mubr.f32.mxu0 0.0
    %1077 = vmatmul.mubr.f32.gmra.mrb[0].mxu0 %v902
    %v1078 = vpop.f32.mrb[0].mxu0
    %v1079 = vadd.f32 %v945, %v1078
    %v1080 = vpop.f32.mrb[0].mxu0
    %v1081 = vadd.f32 %v949, %v1080
    %1082 = vmatprep.mubr.f32.mxu0 0.0
    %1083 = vmatmul.mubr.f32.gmra.mrb[0].mxu0 %v903
    %v1084 = vpop.f32.mrb[0].mxu0
    %v1085 = vadd.f32 %v945, %v1084
    %v1086 = vpop.f32.mrb[0].mxu0
    %v1087 = vadd.f32 %v949, %v1086
    %1088 = vmatprep.mubr.f32.mxu0 0.0
    %1089 = vmatmul.mubr.f32.gmra.mrb[0].mxu0 %v904
    %v1090 = vpop.f32.mrb[0].mxu0
    %v1091 = vadd.f32 %v945, %v1090
    %v1092 = vpop.f32.mrb[0].mxu0
    %v1093 = vadd.f32 %v949, %v1092
    %1094 = vmatprep.mubr.f32.mxu0 0.0
    %1095 = vmatmul.mubr.f32.gmra.mrb[0].mxu0 %v905
    %v1096 = vpop.f32.mrb[0].mxu0
    %v1097 = vadd.f32 %v945, %v1096
    %v1098 = vpop.f32.mrb[0].mxu0
    %v1099 = vadd.f32 %v949, %v1098
    %1100 = vmatprep.mubr.f32.mxu0 0.0
    %1101 = vmatmul.mubr.f32.gmra.mrb[0].mxu0 %v906
    %v1102 = vpop.f32.mrb[0].mxu0
    %v1103 = vadd.f32 %v945, %v1102
    %v1104 = vpop.f32.mrb[0].mxu0
    %v1105 = vadd.f32 %v949, %v1104
    %1106 = vmatprep.mubr.f32.mxu0 0.0
    %1107 = vmatmul.mubr.f32.gmra.mrb[0].mxu0 %v907
    %v1108 = vpop.f32.mrb[0].mxu0
    %v1109 = vadd.f32 %v945, %v1108
    %v1110 = vpop.f32.mrb[0].mxu0
    %v1111 = vadd.f32 %v949, %v1110
    %1112 = vdwg.mxu0
    %v1113 = vadd.f32 %v1019, %v1025
    %v1114 = vadd.f32 %v1113, %v1031
    %v1115 = vadd.f32 %v1114, %v1037
    %v1116 = vadd.f32 %v1115, %v1043
    %v1117 = vadd.f32 %v1116, %v1049
    %v1118 = vadd.f32 %v1117, %v1055
    %v1119 = vadd.f32 %v1118, %v1061
    %v1120 = vadd.f32 %v1119, %v1067
    %v1121 = vadd.f32 %v1120, %v1073
    %v1122 = vadd.f32 %v1121, %v1079
    %v1123 = vadd.f32 %v1122, %v1085
    %v1124 = vadd.f32 %v1123, %v1091
    %v1125 = vadd.f32 %v1124, %v1097
    %v1126 = vadd.f32 %v1125, %v1103
    %v1127 = vadd.f32 %v1126, %v1109
    %v1128 = vrot.slane %v1127, 4
    %v1129 = vadd.f32 %v1127, %v1128
    %v1130 = vrot.slane %v1129, 2
    %v1131 = vadd.f32 %v1129, %v1130
    %v1132 = vrot.slane %v1131, 1
    %v1133 = vadd.f32 %v1131, %v1132
    %v1134 = vadd.f32 %v1021, %v1027
    %v1135 = vadd.f32 %v1134, %v1033
    %v1136 = vadd.f32 %v1135, %v1039
    %v1137 = vadd.f32 %v1136, %v1045
    %v1138 = vadd.f32 %v1137, %v1051
    %v1139 = vadd.f32 %v1138, %v1057
    %v1140 = vadd.f32 %v1139, %v1063
    %v1141 = vadd.f32 %v1140, %v1069
    %v1142 = vadd.f32 %v1141, %v1075
    %v1143 = vadd.f32 %v1142, %v1081
    %v1144 = vadd.f32 %v1143, %v1087
    %v1145 = vadd.f32 %v1144, %v1093
    %v1146 = vadd.f32 %v1145, %v1099
    %v1147 = vadd.f32 %v1146, %v1105
    %v1148 = vadd.f32 %v1147, %v1111
    %v1149 = vrot.slane %v1148, 4
    %v1150 = vadd.f32 %v1148, %v1149
    %v1151 = vrot.slane %v1150, 2
    %v1152 = vadd.f32 %v1150, %v1151
    %v1153 = vrot.slane %v1152, 1
    %v1154 = vadd.f32 %v1152, %v1153
    %v1155 = vmul.f32 %v1133, %v425
    %v1156 = vmul.f32 %v1154, %v425
    %v1157 = vsub.f32 %v1019, %v1155
    %v1158 = vsub.f32 %v1021, %v1156
    %v1159 = vsub.f32 %v1025, %v1155
    %v1160 = vsub.f32 %v1027, %v1156
    %v1161 = vsub.f32 %v1031, %v1155
    %v1162 = vsub.f32 %v1033, %v1156
    %v1163 = vsub.f32 %v1037, %v1155
    %v1164 = vsub.f32 %v1039, %v1156
    %v1165 = vsub.f32 %v1043, %v1155
    %v1166 = vsub.f32 %v1045, %v1156
    %v1167 = vsub.f32 %v1049, %v1155
    %v1168 = vsub.f32 %v1051, %v1156
    %v1169 = vsub.f32 %v1055, %v1155
    %v1170 = vsub.f32 %v1057, %v1156
    %v1171 = vsub.f32 %v1061, %v1155
    %v1172 = vsub.f32 %v1063, %v1156
    %v1173 = vsub.f32 %v1067, %v1155
    %v1174 = vsub.f32 %v1069, %v1156
    %v1175 = vsub.f32 %v1073, %v1155
    %v1176 = vsub.f32 %v1075, %v1156
    %v1177 = vsub.f32 %v1079, %v1155
    %v1178 = vsub.f32 %v1081, %v1156
    %v1179 = vsub.f32 %v1085, %v1155
    %v1180 = vsub.f32 %v1087, %v1156
    %v1181 = vsub.f32 %v1091, %v1155
    %v1182 = vsub.f32 %v1093, %v1156
    %v1183 = vsub.f32 %v1097, %v1155
    %v1184 = vsub.f32 %v1099, %v1156
    %v1185 = vsub.f32 %v1103, %v1155
    %v1186 = vsub.f32 %v1105, %v1156
    %v1187 = vsub.f32 %v1109, %v1155
    %v1188 = vsub.f32 %v1111, %v1156
    %v1189 = vmul.f32 %v1157, %v1157
    %v1190 = vmul.f32 %v1158, %v1158
    %v1191 = vmul.f32 %v1159, %v1159
    %v1192 = vmul.f32 %v1160, %v1160
    %v1193 = vmul.f32 %v1161, %v1161
    %v1194 = vmul.f32 %v1162, %v1162
    %v1195 = vmul.f32 %v1163, %v1163
    %v1196 = vmul.f32 %v1164, %v1164
    %v1197 = vmul.f32 %v1165, %v1165
    %v1198 = vmul.f32 %v1166, %v1166
    %v1199 = vmul.f32 %v1167, %v1167
    %v1200 = vmul.f32 %v1168, %v1168
    %v1201 = vmul.f32 %v1169, %v1169
    %v1202 = vmul.f32 %v1170, %v1170
    %v1203 = vmul.f32 %v1171, %v1171
    %v1204 = vmul.f32 %v1172, %v1172
    %v1205 = vmul.f32 %v1173, %v1173
    %v1206 = vmul.f32 %v1174, %v1174
    %v1207 = vmul.f32 %v1175, %v1175
    %v1208 = vmul.f32 %v1176, %v1176
    %v1209 = vmul.f32 %v1177, %v1177
    %v1210 = vmul.f32 %v1178, %v1178
    %v1211 = vmul.f32 %v1179, %v1179
    %v1212 = vmul.f32 %v1180, %v1180
    %v1213 = vmul.f32 %v1181, %v1181
    %v1214 = vmul.f32 %v1182, %v1182
    %v1215 = vmul.f32 %v1183, %v1183
    %v1216 = vmul.f32 %v1184, %v1184
    %v1217 = vmul.f32 %v1185, %v1185
    %v1218 = vmul.f32 %v1186, %v1186
    %v1219 = vmul.f32 %v1187, %v1187
    %v1220 = vmul.f32 %v1188, %v1188
    %v1221 = vadd.f32 %v1189, %v1191
    %v1222 = vadd.f32 %v1221, %v1193
    %v1223 = vadd.f32 %v1222, %v1195
    %v1224 = vadd.f32 %v1223, %v1197
    %v1225 = vadd.f32 %v1224, %v1199
    %v1226 = vadd.f32 %v1225, %v1201
    %v1227 = vadd.f32 %v1226, %v1203
    %v1228 = vadd.f32 %v1227, %v1205
    %v1229 = vadd.f32 %v1228, %v1207
    %v1230 = vadd.f32 %v1229, %v1209
    %v1231 = vadd.f32 %v1230, %v1211
    %v1232 = vadd.f32 %v1231, %v1213
    %v1233 = vadd.f32 %v1232, %v1215
    %v1234 = vadd.f32 %v1233, %v1217
    %v1235 = vadd.f32 %v1234, %v1219
    %v1236 = vrot.slane %v1235, 4
    %v1237 = vadd.f32 %v1235, %v1236
    %v1238 = vrot.slane %v1237, 2
    %v1239 = vadd.f32 %v1237, %v1238
    %v1240 = vrot.slane %v1239, 1
    %v1241 = vadd.f32 %v1239, %v1240
    %v1242 = vadd.f32 %v1190, %v1192
    %v1243 = vadd.f32 %v1242, %v1194
    %v1244 = vadd.f32 %v1243, %v1196
    %v1245 = vadd.f32 %v1244, %v1198
    %v1246 = vadd.f32 %v1245, %v1200
    %v1247 = vadd.f32 %v1246, %v1202
    %v1248 = vadd.f32 %v1247, %v1204
    %v1249 = vadd.f32 %v1248, %v1206
    %v1250 = vadd.f32 %v1249, %v1208
    %v1251 = vadd.f32 %v1250, %v1210
    %v1252 = vadd.f32 %v1251, %v1212
    %v1253 = vadd.f32 %v1252, %v1214
    %v1254 = vadd.f32 %v1253, %v1216
    %v1255 = vadd.f32 %v1254, %v1218
    %v1256 = vadd.f32 %v1255, %v1220
    %v1257 = vrot.slane %v1256, 4
    %v1258 = vadd.f32 %v1256, %v1257
    %v1259 = vrot.slane %v1258, 2
    %v1260 = vadd.f32 %v1258, %v1259
    %v1261 = vrot.slane %v1260, 1
    %v1262 = vadd.f32 %v1260, %v1261
    %v1263 = vmul.f32 %v1241, %v425
    %v1264 = vmul.f32 %v1262, %v425
    %v1265 = vadd.f32 %v1263, 1e-05
    %v1266 = vadd.f32 %v1264, 1e-05
    %v1267 = vrsqrt.pop %v1265
    %v1268 = vrsqrt.pop %v1266
    %v1269 = vmul.f32 %v1157, %v1267
    %v1270 = vmul.f32 %v1158, %v1268
    %v1271 = vmul.f32 %v1159, %v1267
    %v1272 = vmul.f32 %v1160, %v1268
    %v1273 = vmul.f32 %v1161, %v1267
    %v1274 = vmul.f32 %v1162, %v1268
    %v1275 = vmul.f32 %v1163, %v1267
    %v1276 = vmul.f32 %v1164, %v1268
    %v1277 = vmul.f32 %v1165, %v1267
    %v1278 = vmul.f32 %v1166, %v1268
    %v1279 = vmul.f32 %v1167, %v1267
    %v1280 = vmul.f32 %v1168, %v1268
    %v1281 = vmul.f32 %v1169, %v1267
    %v1282 = vmul.f32 %v1170, %v1268
    %v1283 = vmul.f32 %v1171, %v1267
    %v1284 = vmul.f32 %v1172, %v1268
    %v1285 = vmul.f32 %v1173, %v1267
    %v1286 = vmul.f32 %v1174, %v1268
    %v1287 = vmul.f32 %v1175, %v1267
    %v1288 = vmul.f32 %v1176, %v1268
    %v1289 = vmul.f32 %v1177, %v1267
    %v1290 = vmul.f32 %v1178, %v1268
    %v1291 = vmul.f32 %v1179, %v1267
    %v1292 = vmul.f32 %v1180, %v1268
    %v1293 = vmul.f32 %v1181, %v1267
    %v1294 = vmul.f32 %v1182, %v1268
    %v1295 = vmul.f32 %v1183, %v1267
    %v1296 = vmul.f32 %v1184, %v1268
    %v1297 = vmul.f32 %v1185, %v1267
    %v1298 = vmul.f32 %v1186, %v1268
    %v1299 = vmul.f32 %v1187, %v1267
    %v1300 = vmul.f32 %v1188, %v1268
    %v1301 = vld [vmem:[%s15] sm:$0x3]
    %v1303 = vlaneseq
    %v1304 = vshrl.u32 %v1303, 7
    %v1305 = vsub.s32 0, %v1304
    %v1306 = vrot.slane %v1301, %v1305
    %v1307 = vlaneseq
    %v1308 = vshrl.u32 %v1307, 7
    %v1309 = vsub.s32 1, %v1308
    %v1310 = vrot.slane %v1301, %v1309
    %v1313 = vmul.f32 %v1269, %v1306
    %v1314 = vmul.f32 %v1270, %v1310
    %v1315 = vmul.f32 %v1271, %v1306
    %v1316 = vmul.f32 %v1272, %v1310
    %v1317 = vmul.f32 %v1273, %v1306
    %v1318 = vmul.f32 %v1274, %v1310
    %v1319 = vmul.f32 %v1275, %v1306
    %v1320 = vmul.f32 %v1276, %v1310
    %v1321 = vmul.f32 %v1277, %v1306
    %v1322 = vmul.f32 %v1278, %v1310
    %v1323 = vmul.f32 %v1279, %v1306
    %v1324 = vmul.f32 %v1280, %v1310
    %v1325 = vmul.f32 %v1281, %v1306
    %v1326 = vmul.f32 %v1282, %v1310
    %v1327 = vmul.f32 %v1283, %v1306
    %v1328 = vmul.f32 %v1284, %v1310
    %v1329 = vmul.f32 %v1285, %v1306
    %v1330 = vmul.f32 %v1286, %v1310
    %v1331 = vmul.f32 %v1287, %v1306
    %v1332 = vmul.f32 %v1288, %v1310
    %v1333 = vmul.f32 %v1289, %v1306
    %v1334 = vmul.f32 %v1290, %v1310
    %v1335 = vmul.f32 %v1291, %v1306
    %v1336 = vmul.f32 %v1292, %v1310
    %v1337 = vmul.f32 %v1293, %v1306
    %v1338 = vmul.f32 %v1294, %v1310
    %v1339 = vmul.f32 %v1295, %v1306
    %v1340 = vmul.f32 %v1296, %v1310
    %v1341 = vmul.f32 %v1297, %v1306
    %v1342 = vmul.f32 %v1298, %v1310
    %v1343 = vmul.f32 %v1299, %v1306
    %v1344 = vmul.f32 %v1300, %v1310
    %v1345 = vld [vmem:[%s16] sm:$0x3]
    %v1347 = vlaneseq
    %v1348 = vshrl.u32 %v1347, 7
    %v1349 = vsub.s32 0, %v1348
    %v1350 = vrot.slane %v1345, %v1349
    %v1351 = vlaneseq
    %v1352 = vshrl.u32 %v1351, 7
    %v1353 = vsub.s32 1, %v1352
    %v1354 = vrot.slane %v1345, %v1353
    %v1357 = vadd.f32 %v1313, %v1350
    %v1358 = vadd.f32 %v1314, %v1354
    %v1359 = vadd.f32 %v1315, %v1350
    %v1360 = vadd.f32 %v1316, %v1354
    %v1361 = vadd.f32 %v1317, %v1350
    %v1362 = vadd.f32 %v1318, %v1354
    %v1363 = vadd.f32 %v1319, %v1350
    %v1364 = vadd.f32 %v1320, %v1354
    %v1365 = vadd.f32 %v1321, %v1350
    %v1366 = vadd.f32 %v1322, %v1354
    %v1367 = vadd.f32 %v1323, %v1350
    %v1368 = vadd.f32 %v1324, %v1354
    %v1369 = vadd.f32 %v1325, %v1350
    %v1370 = vadd.f32 %v1326, %v1354
    %v1371 = vadd.f32 %v1327, %v1350
    %v1372 = vadd.f32 %v1328, %v1354
    %v1373 = vadd.f32 %v1329, %v1350
    %v1374 = vadd.f32 %v1330, %v1354
    %v1375 = vadd.f32 %v1331, %v1350
    %v1376 = vadd.f32 %v1332, %v1354
    %v1377 = vadd.f32 %v1333, %v1350
    %v1378 = vadd.f32 %v1334, %v1354
    %v1379 = vadd.f32 %v1335, %v1350
    %v1380 = vadd.f32 %v1336, %v1354
    %v1381 = vadd.f32 %v1337, %v1350
    %v1382 = vadd.f32 %v1338, %v1354
    %v1383 = vadd.f32 %v1339, %v1350
    %v1384 = vadd.f32 %v1340, %v1354
    %v1385 = vadd.f32 %v1341, %v1350
    %v1386 = vadd.f32 %v1342, %v1354
    %v1387 = vadd.f32 %v1343, %v1350
    %v1388 = vadd.f32 %v1344, %v1354
    %v1389 = vmax.f32 %v1357, 0.0
    %v1390 = vmax.f32 %v1358, 0.0
    %v1391 = vmax.f32 %v1359, 0.0
    %v1392 = vmax.f32 %v1360, 0.0
    %v1393 = vmax.f32 %v1361, 0.0
    %v1394 = vmax.f32 %v1362, 0.0
    %v1395 = vmax.f32 %v1363, 0.0
    %v1396 = vmax.f32 %v1364, 0.0
    %v1397 = vmax.f32 %v1365, 0.0
    %v1398 = vmax.f32 %v1366, 0.0
    %v1399 = vmax.f32 %v1367, 0.0
    %v1400 = vmax.f32 %v1368, 0.0
    %v1401 = vmax.f32 %v1369, 0.0
    %v1402 = vmax.f32 %v1370, 0.0
    %v1403 = vmax.f32 %v1371, 0.0
    %v1404 = vmax.f32 %v1372, 0.0
    %v1405 = vmax.f32 %v1373, 0.0
    %v1406 = vmax.f32 %v1374, 0.0
    %v1407 = vmax.f32 %v1375, 0.0
    %v1408 = vmax.f32 %v1376, 0.0
    %v1409 = vmax.f32 %v1377, 0.0
    %v1410 = vmax.f32 %v1378, 0.0
    %v1411 = vmax.f32 %v1379, 0.0
    %v1412 = vmax.f32 %v1380, 0.0
    %v1413 = vmax.f32 %v1381, 0.0
    %v1414 = vmax.f32 %v1382, 0.0
    %v1415 = vmax.f32 %v1383, 0.0
    %v1416 = vmax.f32 %v1384, 0.0
    %v1417 = vmax.f32 %v1385, 0.0
    %v1418 = vmax.f32 %v1386, 0.0
    %v1419 = vmax.f32 %v1387, 0.0
    %v1420 = vmax.f32 %v1388, 0.0
    %v1421 = vld [vmem:[#allocation14] sm:$0xff]
    %v1422 = vld [vmem:[#allocation14 + $0x8] sm:$0xff]
    %v1423 = vld [vmem:[#allocation14 + $0x10] sm:$0xff]
    %v1424 = vld [vmem:[#allocation14 + $0x18] sm:$0xff]
    %v1425 = vld [vmem:[#allocation14 + $0x20] sm:$0xff]
    %v1426 = vld [vmem:[#allocation14 + $0x28] sm:$0xff]
    %v1427 = vld [vmem:[#allocation14 + $0x30] sm:$0xff]
    %v1428 = vld [vmem:[#allocation14 + $0x38] sm:$0xff]
    %v1429 = vld [vmem:[#allocation14 + $0x40] sm:$0xff]
    %v1430 = vld [vmem:[#allocation14 + $0x48] sm:$0xff]
    %v1431 = vld [vmem:[#allocation14 + $0x50] sm:$0xff]
    %v1432 = vld [vmem:[#allocation14 + $0x58] sm:$0xff]
    %v1433 = vld [vmem:[#allocation14 + $0x60] sm:$0xff]
    %v1434 = vld [vmem:[#allocation14 + $0x68] sm:$0xff]
    %v1435 = vld [vmem:[#allocation14 + $0x70] sm:$0xff]
    %v1436 = vld [vmem:[#allocation14 + $0x78] sm:$0xff]
    %v1437 = vld [vmem:[#allocation14 + $0x80] sm:$0xff]
    %v1438 = vld [vmem:[#allocation14 + $0x88] sm:$0xff]
    %v1439 = vld [vmem:[#allocation14 + $0x90] sm:$0xff]
    %v1440 = vld [vmem:[#allocation14 + $0x98] sm:$0xff]
    %v1441 = vld [vmem:[#allocation14 + $0xa0] sm:$0xff]
    %v1442 = vld [vmem:[#allocation14 + $0xa8] sm:$0xff]
    %v1443 = vld [vmem:[#allocation14 + $0xb0] sm:$0xff]
    %v1444 = vld [vmem:[#allocation14 + $0xb8] sm:$0xff]
    %v1445 = vld [vmem:[#allocation14 + $0xc0] sm:$0xff]
    %v1446 = vld [vmem:[#allocation14 + $0xc8] sm:$0xff]
    %v1447 = vld [vmem:[#allocation14 + $0xd0] sm:$0xff]
    %v1448 = vld [vmem:[#allocation14 + $0xd8] sm:$0xff]
    %v1449 = vld [vmem:[#allocation14 + $0xe0] sm:$0xff]
    %v1450 = vld [vmem:[#allocation14 + $0xe8] sm:$0xff]
    %v1451 = vld [vmem:[#allocation14 + $0xf0] sm:$0xff]
    %v1452 = vld [vmem:[#allocation14 + $0xf8] sm:$0xff]
    %v1453 = vld [vmem:[%s18] sm:$0x1]
    %v1455 = vlaneseq
    %v1456 = vshrl.u32 %v1455, 7
    %v1457 = vsub.s32 0, %v1456
    %v1458 = vrot.slane %v1453, %v1457
    %1460 = vmatprep.subr.mxu0 0.0
    %1461 = vmatpush1.msra.mxu0 %v1421
    %1462 = vmatprep.subr.mxu0 0.0
    %1463 = vmatpush1.msra.mxu0 %v1422
    %1464 = vmatprep.subr.mxu0 0.0
    %1465 = vmatpush1.msra.mxu0 %v1423
    %1466 = vmatprep.subr.mxu0 0.0
    %1467 = vmatpush1.msra.mxu0 %v1424
    %1468 = vmatprep.subr.mxu0 0.0
    %1469 = vmatpush1.msra.mxu0 %v1425
    %1470 = vmatprep.subr.mxu0 0.0
    %1471 = vmatpush1.msra.mxu0 %v1426
    %1472 = vmatprep.subr.mxu0 0.0
    %1473 = vmatpush1.msra.mxu0 %v1427
    %1474 = vmatprep.subr.mxu0 0.0
    %1475 = vmatpush1.msra.mxu0 %v1428
    %1476 = vmatprep.subr.mxu0 0.0
    %1477 = vmatpush1.msra.mxu0 %v1429
    %1478 = vmatprep.subr.mxu0 0.0
    %1479 = vmatpush1.msra.mxu0 %v1430
    %1480 = vmatprep.subr.mxu0 0.0
    %1481 = vmatpush1.msra.mxu0 %v1431
    %1482 = vmatprep.subr.mxu0 0.0
    %1483 = vmatpush1.msra.mxu0 %v1432
    %1484 = vmatprep.subr.mxu0 0.0
    %1485 = vmatpush1.msra.mxu0 %v1433
    %1486 = vmatprep.subr.mxu0 0.0
    %1487 = vmatpush1.msra.mxu0 %v1434
    %1488 = vmatprep.subr.mxu0 0.0
    %1489 = vmatpush1.msra.mxu0 %v1435
    %1490 = vmatprep.subr.mxu0 0.0
    %1491 = vmatpush1.msra.mxu0 %v1436
    %1492 = vmatprep.subr.mxu0 0.0
    %1493 = vmatpush1.msra.mxu0 %v1437
    %1494 = vmatprep.subr.mxu0 0.0
    %1495 = vmatpush1.msra.mxu0 %v1438
    %1496 = vmatprep.subr.mxu0 0.0
    %1497 = vmatpush1.msra.mxu0 %v1439
    %1498 = vmatprep.subr.mxu0 0.0
    %1499 = vmatpush1.msra.mxu0 %v1440
    %1500 = vmatprep.subr.mxu0 0.0
    %1501 = vmatpush1.msra.mxu0 %v1441
    %1502 = vmatprep.subr.mxu0 0.0
    %1503 = vmatpush1.msra.mxu0 %v1442
    %1504 = vmatprep.subr.mxu0 0.0
    %1505 = vmatpush1.msra.mxu0 %v1443
    %1506 = vmatprep.subr.mxu0 0.0
    %1507 = vmatpush1.msra.mxu0 %v1444
    %1508 = vmatprep.subr.mxu0 0.0
    %1509 = vmatpush1.msra.mxu0 %v1445
    %1510 = vmatprep.subr.mxu0 0.0
    %1511 = vmatpush1.msra.mxu0 %v1446
    %1512 = vmatprep.subr.mxu0 0.0
    %1513 = vmatpush1.msra.mxu0 %v1447
    %1514 = vmatprep.subr.mxu0 0.0
    %1515 = vmatpush1.msra.mxu0 %v1448
    %1516 = vmatprep.subr.mxu0 0.0
    %1517 = vmatpush1.msra.mxu0 %v1449
    %1518 = vmatprep.subr.mxu0 0.0
    %1519 = vmatpush1.msra.mxu0 %v1450
    %1520 = vmatprep.subr.mxu0 0.0
    %1521 = vmatpush1.msra.mxu0 %v1451
    %1522 = vmatprep.subr.mxu0 0.0
    %1523 = vmatpush1.msra.mxu0 %v1452
    %1524 = vmatprep.mubr.f32.mxu0 %v1390
    %1525 = vmatmul.mubr.f32.gmra.mrb[0].mxu0 %v1389
    %v1526 = vpop.f32.mrb[0].mxu0
    %v1527 = vadd.f32 %v1458, %v1526
    %v1528 = vpop.f32.mrb[0].mxu0
    %1529 = vmatprep.mubr.f32.mxu0 %v1392
    %1530 = vmatmul.mubr.f32.gmra.mrb[0].mxu0 %v1391
    %v1531 = vpop.f32.mrb[0].mxu0
    %v1532 = vadd.f32 %v1458, %v1531
    %v1533 = vpop.f32.mrb[0].mxu0
    %1534 = vmatprep.mubr.f32.mxu0 %v1394
    %1535 = vmatmul.mubr.f32.gmra.mrb[0].mxu0 %v1393
    %v1536 = vpop.f32.mrb[0].mxu0
    %v1537 = vadd.f32 %v1458, %v1536
    %v1538 = vpop.f32.mrb[0].mxu0
    %1539 = vmatprep.mubr.f32.mxu0 %v1396
    %1540 = vmatmul.mubr.f32.gmra.mrb[0].mxu0 %v1395
    %v1541 = vpop.f32.mrb[0].mxu0
    %v1542 = vadd.f32 %v1458, %v1541
    %v1543 = vpop.f32.mrb[0].mxu0
    %1544 = vmatprep.mubr.f32.mxu0 %v1398
    %1545 = vmatmul.mubr.f32.gmra.mrb[0].mxu0 %v1397
    %v1546 = vpop.f32.mrb[0].mxu0
    %v1547 = vadd.f32 %v1458, %v1546
    %v1548 = vpop.f32.mrb[0].mxu0
    %1549 = vmatprep.mubr.f32.mxu0 %v1400
    %1550 = vmatmul.mubr.f32.gmra.mrb[0].mxu0 %v1399
    %v1551 = vpop.f32.mrb[0].mxu0
    %v1552 = vadd.f32 %v1458, %v1551
    %v1553 = vpop.f32.mrb[0].mxu0
    %1554 = vmatprep.mubr.f32.mxu0 %v1402
    %1555 = vmatmul.mubr.f32.gmra.mrb[0].mxu0 %v1401
    %v1556 = vpop.f32.mrb[0].mxu0
    %v1557 = vadd.f32 %v1458, %v1556
    %v1558 = vpop.f32.mrb[0].mxu0
    %1559 = vmatprep.mubr.f32.mxu0 %v1404
    %1560 = vmatmul.mubr.f32.gmra.mrb[0].mxu0 %v1403
    %v1561 = vpop.f32.mrb[0].mxu0
    %v1562 = vadd.f32 %v1458, %v1561
    %v1563 = vpop.f32.mrb[0].mxu0
    %1564 = vmatprep.mubr.f32.mxu0 %v1406
    %1565 = vmatmul.mubr.f32.gmra.mrb[0].mxu0 %v1405
    %v1566 = vpop.f32.mrb[0].mxu0
    %v1567 = vadd.f32 %v1458, %v1566
    %v1568 = vpop.f32.mrb[0].mxu0
    %1569 = vmatprep.mubr.f32.mxu0 %v1408
    %1570 = vmatmul.mubr.f32.gmra.mrb[0].mxu0 %v1407
    %v1571 = vpop.f32.mrb[0].mxu0
    %v1572 = vadd.f32 %v1458, %v1571
    %v1573 = vpop.f32.mrb[0].mxu0
    %1574 = vmatprep.mubr.f32.mxu0 %v1410
    %1575 = vmatmul.mubr.f32.gmra.mrb[0].mxu0 %v1409
    %v1576 = vpop.f32.mrb[0].mxu0
    %v1577 = vadd.f32 %v1458, %v1576
    %v1578 = vpop.f32.mrb[0].mxu0
    %1579 = vmatprep.mubr.f32.mxu0 %v1412
    %1580 = vmatmul.mubr.f32.gmra.mrb[0].mxu0 %v1411
    %v1581 = vpop.f32.mrb[0].mxu0
    %v1582 = vadd.f32 %v1458, %v1581
    %v1583 = vpop.f32.mrb[0].mxu0
    %1584 = vmatprep.mubr.f32.mxu0 %v1414
    %1585 = vmatmul.mubr.f32.gmra.mrb[0].mxu0 %v1413
    %v1586 = vpop.f32.mrb[0].mxu0
    %v1587 = vadd.f32 %v1458, %v1586
    %v1588 = vpop.f32.mrb[0].mxu0
    %1589 = vmatprep.mubr.f32.mxu0 %v1416
    %1590 = vmatmul.mubr.f32.gmra.mrb[0].mxu0 %v1415
    %v1591 = vpop.f32.mrb[0].mxu0
    %v1592 = vadd.f32 %v1458, %v1591
    %v1593 = vpop.f32.mrb[0].mxu0
    %1594 = vmatprep.mubr.f32.mxu0 %v1418
    %1595 = vmatmul.mubr.f32.gmra.mrb[0].mxu0 %v1417
    %v1596 = vpop.f32.mrb[0].mxu0
    %v1597 = vadd.f32 %v1458, %v1596
    %v1598 = vpop.f32.mrb[0].mxu0
    %1599 = vmatprep.mubr.f32.mxu0 %v1420
    %1600 = vmatmul.mubr.f32.gmra.mrb[0].mxu0 %v1419
    %v1601 = vpop.f32.mrb[0].mxu0
    %v1602 = vadd.f32 %v1458, %v1601
    %v1603 = vpop.f32.mrb[0].mxu0
    %1604 = vdwg.mxu0
    %1605 = vst [vmem:[#allocation15] sm:$0xff] %v1527
    %1606 = vst [vmem:[#allocation15 + $0x8] sm:$0xff] %v1532
    %1607 = vst [vmem:[#allocation15 + $0x10] sm:$0xff] %v1537
    %1608 = vst [vmem:[#allocation15 + $0x18] sm:$0xff] %v1542
    %1609 = vst [vmem:[#allocation15 + $0x20] sm:$0xff] %v1547
    %1610 = vst [vmem:[#allocation15 + $0x28] sm:$0xff] %v1552
    %1611 = vst [vmem:[#allocation15 + $0x30] sm:$0xff] %v1557
    %1612 = vst [vmem:[#allocation15 + $0x38] sm:$0xff] %v1562
    %1613 = vst [vmem:[#allocation15 + $0x40] sm:$0xff] %v1567
    %1614 = vst [vmem:[#allocation15 + $0x48] sm:$0xff] %v1572
    %1615 = vst [vmem:[#allocation15 + $0x50] sm:$0xff] %v1577
    %1616 = vst [vmem:[#allocation15 + $0x58] sm:$0xff] %v1582
    %1617 = vst [vmem:[#allocation15 + $0x60] sm:$0xff] %v1587
    %1618 = vst [vmem:[#allocation15 + $0x68] sm:$0xff] %v1592
    %1619 = vst [vmem:[#allocation15 + $0x70] sm:$0xff] %v1597
    %1620 = vst [vmem:[#allocation15 + $0x78] sm:$0xff] %v1602
    %v1621 = vld [vmem:[#allocation9] sm:$0xff]
    %v1622 = vld [vmem:[#allocation9 + $0x8] sm:$0xff]
    %v1623 = vld [vmem:[#allocation9 + $0x10] sm:$0xff]
    %v1624 = vld [vmem:[#allocation9 + $0x18] sm:$0xff]
    %v1625 = vld [vmem:[#allocation9 + $0x20] sm:$0xff]
    %v1626 = vld [vmem:[#allocation9 + $0x28] sm:$0xff]
    %v1627 = vld [vmem:[#allocation9 + $0x30] sm:$0xff]
    %v1628 = vld [vmem:[#allocation9 + $0x38] sm:$0xff]
    %v1629 = vld [vmem:[#allocation9 + $0x40] sm:$0xff]
    %v1630 = vld [vmem:[#allocation9 + $0x48] sm:$0xff]
    %v1631 = vld [vmem:[#allocation9 + $0x50] sm:$0xff]
    %v1632 = vld [vmem:[#allocation9 + $0x58] sm:$0xff]
    %v1633 = vld [vmem:[#allocation9 + $0x60] sm:$0xff]
    %v1634 = vld [vmem:[#allocation9 + $0x68] sm:$0xff]
    %v1635 = vld [vmem:[#allocation9 + $0x70] sm:$0xff]
    %v1636 = vld [vmem:[#allocation9 + $0x78] sm:$0xff]
    %v1637 = vld [vmem:[#allocation9 + $0x80] sm:$0xff]
    %v1638 = vld [vmem:[#allocation9 + $0x88] sm:$0xff]
    %v1639 = vld [vmem:[#allocation9 + $0x90] sm:$0xff]
    %v1640 = vld [vmem:[#allocation9 + $0x98] sm:$0xff]
    %v1641 = vld [vmem:[#allocation9 + $0xa0] sm:$0xff]
    %v1642 = vld [vmem:[#allocation9 + $0xa8] sm:$0xff]
    %v1643 = vld [vmem:[#allocation9 + $0xb0] sm:$0xff]
    %v1644 = vld [vmem:[#allocation9 + $0xb8] sm:$0xff]
    %v1645 = vld [vmem:[#allocation9 + $0xc0] sm:$0xff]
    %v1646 = vld [vmem:[#allocation9 + $0xc8] sm:$0xff]
    %v1647 = vld [vmem:[#allocation9 + $0xd0] sm:$0xff]
    %v1648 = vld [vmem:[#allocation9 + $0xd8] sm:$0xff]
    %v1649 = vld [vmem:[#allocation9 + $0xe0] sm:$0xff]
    %v1650 = vld [vmem:[#allocation9 + $0xe8] sm:$0xff]
    %v1651 = vld [vmem:[#allocation9 + $0xf0] sm:$0xff]
    %v1652 = vld [vmem:[#allocation9 + $0xf8] sm:$0xff]
    %v1653 = vld [vmem:[%s8] sm:$0x3]
    %v1655 = vlaneseq
    %v1656 = vshrl.u32 %v1655, 7
    %v1657 = vsub.s32 0, %v1656
    %v1658 = vrot.slane %v1653, %v1657
    %v1659 = vlaneseq
    %v1660 = vshrl.u32 %v1659, 7
    %v1661 = vsub.s32 1, %v1660
    %v1662 = vrot.slane %v1653, %v1661
    %1665 = vmatprep.subr.mxu0 %v1622
    %1666 = vmatpush1.msra.mxu0 %v1621
    %1667 = vmatprep.subr.mxu0 %v1624
    %1668 = vmatpush1.msra.mxu0 %v1623
    %1669 = vmatprep.subr.mxu0 %v1626
    %1670 = vmatpush1.msra.mxu0 %v1625
    %1671 = vmatprep.subr.mxu0 %v1628
    %1672 = vmatpush1.msra.mxu0 %v1627
    %1673 = vmatprep.subr.mxu0 %v1630
    %1674 = vmatpush1.msra.mxu0 %v1629
    %1675 = vmatprep.subr.mxu0 %v1632
    %1676 = vmatpush1.msra.mxu0 %v1631
    %1677 = vmatprep.subr.mxu0 %v1634
    %1678 = vmatpush1.msra.mxu0 %v1633
    %1679 = vmatprep.subr.mxu0 %v1636
    %1680 = vmatpush1.msra.mxu0 %v1635
    %1681 = vmatprep.subr.mxu0 %v1638
    %1682 = vmatpush1.msra.mxu0 %v1637
    %1683 = vmatprep.subr.mxu0 %v1640
    %1684 = vmatpush1.msra.mxu0 %v1639
    %1685 = vmatprep.subr.mxu0 %v1642
    %1686 = vmatpush1.msra.mxu0 %v1641
    %1687 = vmatprep.subr.mxu0 %v1644
    %1688 = vmatpush1.msra.mxu0 %v1643
    %1689 = vmatprep.subr.mxu0 %v1646
    %1690 = vmatpush1.msra.mxu0 %v1645
    %1691 = vmatprep.subr.mxu0 %v1648
    %1692 = vmatpush1.msra.mxu0 %v1647
    %1693 = vmatprep.subr.mxu0 %v1650
    %1694 = vmatpush1.msra.mxu0 %v1649
    %1695 = vmatprep.subr.mxu0 %v1652
    %1696 = vmatpush1.msra.mxu0 %v1651
    %1697 = vmatprep.subr.mxu0 0.0
    %1698 = vmatpush1.msra.mxu0 0.0
    %1699 = vmatprep.subr.mxu0 0.0
    %1700 = vmatpush1.msra.mxu0 0.0
    %1701 = vmatprep.subr.mxu0 0.0
    %1702 = vmatpush1.msra.mxu0 0.0
    %1703 = vmatprep.subr.mxu0 0.0
    %1704 = vmatpush1.msra.mxu0 0.0
    %1705 = vmatprep.subr.mxu0 0.0
    %1706 = vmatpush1.msra.mxu0 0.0
    %1707 = vmatprep.subr.mxu0 0.0
    %1708 = vmatpush1.msra.mxu0 0.0
    %1709 = vmatprep.subr.mxu0 0.0
    %1710 = vmatpush1.msra.mxu0 0.0
    %1711 = vmatprep.subr.mxu0 0.0
    %1712 = vmatpush1.msra.mxu0 0.0
    %1713 = vmatprep.subr.mxu0 0.0
    %1714 = vmatpush1.msra.mxu0 0.0
    %1715 = vmatprep.subr.mxu0 0.0
    %1716 = vmatpush1.msra.mxu0 0.0
    %1717 = vmatprep.subr.mxu0 0.0
    %1718 = vmatpush1.msra.mxu0 0.0
    %1719 = vmatprep.subr.mxu0 0.0
    %1720 = vmatpush1.msra.mxu0 0.0
    %1721 = vmatprep.subr.mxu0 0.0
    %1722 = vmatpush1.msra.mxu0 0.0
    %1723 = vmatprep.subr.mxu0 0.0
    %1724 = vmatpush1.msra.mxu0 0.0
    %1725 = vmatprep.subr.mxu0 0.0
    %1726 = vmatpush1.msra.mxu0 0.0
    %1727 = vmatprep.subr.mxu0 0.0
    %1728 = vmatpush1.msra.mxu0 0.0
    %1729 = vmatprep.mubr.f32.mxu0 0.0
    %1730 = vmatmul.mubr.f32.gmra.mrb[0].mxu0 %v892
    %v1731 = vpop.f32.mrb[0].mxu0
    %v1732 = vadd.f32 %v1658, %v1731
    %v1733 = vpop.f32.mrb[0].mxu0
    %v1734 = vadd.f32 %v1662, %v1733
    %1735 = vmatprep.mubr.f32.mxu0 0.0
    %1736 = vmatmul.mubr.f32.gmra.mrb[0].mxu0 %v893
    %v1737 = vpop.f32.mrb[0].mxu0
    %v1738 = vadd.f32 %v1658, %v1737
    %v1739 = vpop.f32.mrb[0].mxu0
    %v1740 = vadd.f32 %v1662, %v1739
    %1741 = vmatprep.mubr.f32.mxu0 0.0
    %1742 = vmatmul.mubr.f32.gmra.mrb[0].mxu0 %v894
    %v1743 = vpop.f32.mrb[0].mxu0
    %v1744 = vadd.f32 %v1658, %v1743
    %v1745 = vpop.f32.mrb[0].mxu0
    %v1746 = vadd.f32 %v1662, %v1745
    %1747 = vmatprep.mubr.f32.mxu0 0.0
    %1748 = vmatmul.mubr.f32.gmra.mrb[0].mxu0 %v895
    %v1749 = vpop.f32.mrb[0].mxu0
    %v1750 = vadd.f32 %v1658, %v1749
    %v1751 = vpop.f32.mrb[0].mxu0
    %v1752 = vadd.f32 %v1662, %v1751
    %1753 = vmatprep.mubr.f32.mxu0 0.0
    %1754 = vmatmul.mubr.f32.gmra.mrb[0].mxu0 %v896
    %v1755 = vpop.f32.mrb[0].mxu0
    %v1756 = vadd.f32 %v1658, %v1755
    %v1757 = vpop.f32.mrb[0].mxu0
    %v1758 = vadd.f32 %v1662, %v1757
    %1759 = vmatprep.mubr.f32.mxu0 0.0
    %1760 = vmatmul.mubr.f32.gmra.mrb[0].mxu0 %v897
    %v1761 = vpop.f32.mrb[0].mxu0
    %v1762 = vadd.f32 %v1658, %v1761
    %v1763 = vpop.f32.mrb[0].mxu0
    %v1764 = vadd.f32 %v1662, %v1763
    %1765 = vmatprep.mubr.f32.mxu0 0.0
    %1766 = vmatmul.mubr.f32.gmra.mrb[0].mxu0 %v898
    %v1767 = vpop.f32.mrb[0].mxu0
    %v1768 = vadd.f32 %v1658, %v1767
    %v1769 = vpop.f32.mrb[0].mxu0
    %v1770 = vadd.f32 %v1662, %v1769
    %1771 = vmatprep.mubr.f32.mxu0 0.0
    %1772 = vmatmul.mubr.f32.gmra.mrb[0].mxu0 %v899
    %v1773 = vpop.f32.mrb[0].mxu0
    %v1774 = vadd.f32 %v1658, %v1773
    %v1775 = vpop.f32.mrb[0].mxu0
    %v1776 = vadd.f32 %v1662, %v1775
    %1777 = vmatprep.mubr.f32.mxu0 0.0
    %1778 = vmatmul.mubr.f32.gmra.mrb[0].mxu0 %v900
    %v1779 = vpop.f32.mrb[0].mxu0
    %v1780 = vadd.f32 %v1658, %v1779
    %v1781 = vpop.f32.mrb[0].mxu0
    %v1782 = vadd.f32 %v1662, %v1781
    %1783 = vmatprep.mubr.f32.mxu0 0.0
    %1784 = vmatmul.mubr.f32.gmra.mrb[0].mxu0 %v901
    %v1785 = vpop.f32.mrb[0].mxu0
    %v1786 = vadd.f32 %v1658, %v1785
    %v1787 = vpop.f32.mrb[0].mxu0
    %v1788 = vadd.f32 %v1662, %v1787
    %1789 = vmatprep.mubr.f32.mxu0 0.0
    %1790 = vmatmul.mubr.f32.gmra.mrb[0].mxu0 %v902
    %v1791 = vpop.f32.mrb[0].mxu0
    %v1792 = vadd.f32 %v1658, %v1791
    %v1793 = vpop.f32.mrb[0].mxu0
    %v1794 = vadd.f32 %v1662, %v1793
    %1795 = vmatprep.mubr.f32.mxu0 0.0
    %1796 = vmatmul.mubr.f32.gmra.mrb[0].mxu0 %v903
    %v1797 = vpop.f32.mrb[0].mxu0
    %v1798 = vadd.f32 %v1658, %v1797
    %v1799 = vpop.f32.mrb[0].mxu0
    %v1800 = vadd.f32 %v1662, %v1799
    %1801 = vmatprep.mubr.f32.mxu0 0.0
    %1802 = vmatmul.mubr.f32.gmra.mrb[0].mxu0 %v904
    %v1803 = vpop.f32.mrb[0].mxu0
    %v1804 = vadd.f32 %v1658, %v1803
    %v1805 = vpop.f32.mrb[0].mxu0
    %v1806 = vadd.f32 %v1662, %v1805
    %1807 = vmatprep.mubr.f32.mxu0 0.0
    %1808 = vmatmul.mubr.f32.gmra.mrb[0].mxu0 %v905
    %v1809 = vpop.f32.mrb[0].mxu0
    %v1810 = vadd.f32 %v1658, %v1809
    %v1811 = vpop.f32.mrb[0].mxu0
    %v1812 = vadd.f32 %v1662, %v1811
    %1813 = vmatprep.mubr.f32.mxu0 0.0
    %1814 = vmatmul.mubr.f32.gmra.mrb[0].mxu0 %v906
    %v1815 = vpop.f32.mrb[0].mxu0
    %v1816 = vadd.f32 %v1658, %v1815
    %v1817 = vpop.f32.mrb[0].mxu0
    %v1818 = vadd.f32 %v1662, %v1817
    %1819 = vmatprep.mubr.f32.mxu0 0.0
    %1820 = vmatmul.mubr.f32.gmra.mrb[0].mxu0 %v907
    %v1821 = vpop.f32.mrb[0].mxu0
    %v1822 = vadd.f32 %v1658, %v1821
    %v1823 = vpop.f32.mrb[0].mxu0
    %v1824 = vadd.f32 %v1662, %v1823
    %1825 = vdwg.mxu0
    %v1826 = vadd.f32 %v1732, %v1738
    %v1827 = vadd.f32 %v1826, %v1744
    %v1828 = vadd.f32 %v1827, %v1750
    %v1829 = vadd.f32 %v1828, %v1756
    %v1830 = vadd.f32 %v1829, %v1762
    %v1831 = vadd.f32 %v1830, %v1768
    %v1832 = vadd.f32 %v1831, %v1774
    %v1833 = vadd.f32 %v1832, %v1780
    %v1834 = vadd.f32 %v1833, %v1786
    %v1835 = vadd.f32 %v1834, %v1792
    %v1836 = vadd.f32 %v1835, %v1798
    %v1837 = vadd.f32 %v1836, %v1804
    %v1838 = vadd.f32 %v1837, %v1810
    %v1839 = vadd.f32 %v1838, %v1816
    %v1840 = vadd.f32 %v1839, %v1822
    %v1841 = vrot.slane %v1840, 4
    %v1842 = vadd.f32 %v1840, %v1841
    %v1843 = vrot.slane %v1842, 2
    %v1844 = vadd.f32 %v1842, %v1843
    %v1845 = vrot.slane %v1844, 1
    %v1846 = vadd.f32 %v1844, %v1845
    %v1847 = vadd.f32 %v1734, %v1740
    %v1848 = vadd.f32 %v1847, %v1746
    %v1849 = vadd.f32 %v1848, %v1752
    %v1850 = vadd.f32 %v1849, %v1758
    %v1851 = vadd.f32 %v1850, %v1764
    %v1852 = vadd.f32 %v1851, %v1770
    %v1853 = vadd.f32 %v1852, %v1776
    %v1854 = vadd.f32 %v1853, %v1782
    %v1855 = vadd.f32 %v1854, %v1788
    %v1856 = vadd.f32 %v1855, %v1794
    %v1857 = vadd.f32 %v1856, %v1800
    %v1858 = vadd.f32 %v1857, %v1806
    %v1859 = vadd.f32 %v1858, %v1812
    %v1860 = vadd.f32 %v1859, %v1818
    %v1861 = vadd.f32 %v1860, %v1824
    %v1862 = vrot.slane %v1861, 4
    %v1863 = vadd.f32 %v1861, %v1862
    %v1864 = vrot.slane %v1863, 2
    %v1865 = vadd.f32 %v1863, %v1864
    %v1866 = vrot.slane %v1865, 1
    %v1867 = vadd.f32 %v1865, %v1866
    %v1868 = vmul.f32 %v1846, %v425
    %v1869 = vmul.f32 %v1867, %v425
    %v1870 = vsub.f32 %v1732, %v1868
    %v1871 = vsub.f32 %v1734, %v1869
    %v1872 = vsub.f32 %v1738, %v1868
    %v1873 = vsub.f32 %v1740, %v1869
    %v1874 = vsub.f32 %v1744, %v1868
    %v1875 = vsub.f32 %v1746, %v1869
    %v1876 = vsub.f32 %v1750, %v1868
    %v1877 = vsub.f32 %v1752, %v1869
    %v1878 = vsub.f32 %v1756, %v1868
    %v1879 = vsub.f32 %v1758, %v1869
    %v1880 = vsub.f32 %v1762, %v1868
    %v1881 = vsub.f32 %v1764, %v1869
    %v1882 = vsub.f32 %v1768, %v1868
    %v1883 = vsub.f32 %v1770, %v1869
    %v1884 = vsub.f32 %v1774, %v1868
    %v1885 = vsub.f32 %v1776, %v1869
    %v1886 = vsub.f32 %v1780, %v1868
    %v1887 = vsub.f32 %v1782, %v1869
    %v1888 = vsub.f32 %v1786, %v1868
    %v1889 = vsub.f32 %v1788, %v1869
    %v1890 = vsub.f32 %v1792, %v1868
    %v1891 = vsub.f32 %v1794, %v1869
    %v1892 = vsub.f32 %v1798, %v1868
    %v1893 = vsub.f32 %v1800, %v1869
    %v1894 = vsub.f32 %v1804, %v1868
    %v1895 = vsub.f32 %v1806, %v1869
    %v1896 = vsub.f32 %v1810, %v1868
    %v1897 = vsub.f32 %v1812, %v1869
    %v1898 = vsub.f32 %v1816, %v1868
    %v1899 = vsub.f32 %v1818, %v1869
    %v1900 = vsub.f32 %v1822, %v1868
    %v1901 = vsub.f32 %v1824, %v1869
    %v1902 = vmul.f32 %v1870, %v1870
    %v1903 = vmul.f32 %v1871, %v1871
    %v1904 = vmul.f32 %v1872, %v1872
    %v1905 = vmul.f32 %v1873, %v1873
    %v1906 = vmul.f32 %v1874, %v1874
    %v1907 = vmul.f32 %v1875, %v1875
    %v1908 = vmul.f32 %v1876, %v1876
    %v1909 = vmul.f32 %v1877, %v1877
    %v1910 = vmul.f32 %v1878, %v1878
    %v1911 = vmul.f32 %v1879, %v1879
    %v1912 = vmul.f32 %v1880, %v1880
    %v1913 = vmul.f32 %v1881, %v1881
    %v1914 = vmul.f32 %v1882, %v1882
    %v1915 = vmul.f32 %v1883, %v1883
    %v1916 = vmul.f32 %v1884, %v1884
    %v1917 = vmul.f32 %v1885, %v1885
    %v1918 = vmul.f32 %v1886, %v1886
    %v1919 = vmul.f32 %v1887, %v1887
    %v1920 = vmul.f32 %v1888, %v1888
    %v1921 = vmul.f32 %v1889, %v1889
    %v1922 = vmul.f32 %v1890, %v1890
    %v1923 = vmul.f32 %v1891, %v1891
    %v1924 = vmul.f32 %v1892, %v1892
    %v1925 = vmul.f32 %v1893, %v1893
    %v1926 = vmul.f32 %v1894, %v1894
    %v1927 = vmul.f32 %v1895, %v1895
    %v1928 = vmul.f32 %v1896, %v1896
    %v1929 = vmul.f32 %v1897, %v1897
    %v1930 = vmul.f32 %v1898, %v1898
    %v1931 = vmul.f32 %v1899, %v1899
    %v1932 = vmul.f32 %v1900, %v1900
    %v1933 = vmul.f32 %v1901, %v1901
    %v1934 = vadd.f32 %v1902, %v1904
    %v1935 = vadd.f32 %v1934, %v1906
    %v1936 = vadd.f32 %v1935, %v1908
    %v1937 = vadd.f32 %v1936, %v1910
    %v1938 = vadd.f32 %v1937, %v1912
    %v1939 = vadd.f32 %v1938, %v1914
    %v1940 = vadd.f32 %v1939, %v1916
    %v1941 = vadd.f32 %v1940, %v1918
    %v1942 = vadd.f32 %v1941, %v1920
    %v1943 = vadd.f32 %v1942, %v1922
    %v1944 = vadd.f32 %v1943, %v1924
    %v1945 = vadd.f32 %v1944, %v1926
    %v1946 = vadd.f32 %v1945, %v1928
    %v1947 = vadd.f32 %v1946, %v1930
    %v1948 = vadd.f32 %v1947, %v1932
    %v1949 = vrot.slane %v1948, 4
    %v1950 = vadd.f32 %v1948, %v1949
    %v1951 = vrot.slane %v1950, 2
    %v1952 = vadd.f32 %v1950, %v1951
    %v1953 = vrot.slane %v1952, 1
    %v1954 = vadd.f32 %v1952, %v1953
    %v1955 = vadd.f32 %v1903, %v1905
    %v1956 = vadd.f32 %v1955, %v1907
    %v1957 = vadd.f32 %v1956, %v1909
    %v1958 = vadd.f32 %v1957, %v1911
    %v1959 = vadd.f32 %v1958, %v1913
    %v1960 = vadd.f32 %v1959, %v1915
    %v1961 = vadd.f32 %v1960, %v1917
    %v1962 = vadd.f32 %v1961, %v1919
    %v1963 = vadd.f32 %v1962, %v1921
    %v1964 = vadd.f32 %v1963, %v1923
    %v1965 = vadd.f32 %v1964, %v1925
    %v1966 = vadd.f32 %v1965, %v1927
    %v1967 = vadd.f32 %v1966, %v1929
    %v1968 = vadd.f32 %v1967, %v1931
    %v1969 = vadd.f32 %v1968, %v1933
    %v1970 = vrot.slane %v1969, 4
    %v1971 = vadd.f32 %v1969, %v1970
    %v1972 = vrot.slane %v1971, 2
    %v1973 = vadd.f32 %v1971, %v1972
    %v1974 = vrot.slane %v1973, 1
    %v1975 = vadd.f32 %v1973, %v1974
    %v1976 = vmul.f32 %v1954, %v425
    %v1977 = vmul.f32 %v1975, %v425
    %v1978 = vadd.f32 %v1976, 1e-05
    %v1979 = vadd.f32 %v1977, 1e-05
    %v1980 = vrsqrt.pop %v1978
    %v1981 = vrsqrt.pop %v1979
    %v1982 = vmul.f32 %v1870, %v1980
    %v1983 = vmul.f32 %v1871, %v1981
    %v1984 = vmul.f32 %v1872, %v1980
    %v1985 = vmul.f32 %v1873, %v1981
    %v1986 = vmul.f32 %v1874, %v1980
    %v1987 = vmul.f32 %v1875, %v1981
    %v1988 = vmul.f32 %v1876, %v1980
    %v1989 = vmul.f32 %v1877, %v1981
    %v1990 = vmul.f32 %v1878, %v1980
    %v1991 = vmul.f32 %v1879, %v1981
    %v1992 = vmul.f32 %v1880, %v1980
    %v1993 = vmul.f32 %v1881, %v1981
    %v1994 = vmul.f32 %v1882, %v1980
    %v1995 = vmul.f32 %v1883, %v1981
    %v1996 = vmul.f32 %v1884, %v1980
    %v1997 = vmul.f32 %v1885, %v1981
    %v1998 = vmul.f32 %v1886, %v1980
    %v1999 = vmul.f32 %v1887, %v1981
    %v2000 = vmul.f32 %v1888, %v1980
    %v2001 = vmul.f32 %v1889, %v1981
    %v2002 = vmul.f32 %v1890, %v1980
    %v2003 = vmul.f32 %v1891, %v1981
    %v2004 = vmul.f32 %v1892, %v1980
    %v2005 = vmul.f32 %v1893, %v1981
    %v2006 = vmul.f32 %v1894, %v1980
    %v2007 = vmul.f32 %v1895, %v1981
    %v2008 = vmul.f32 %v1896, %v1980
    %v2009 = vmul.f32 %v1897, %v1981
    %v2010 = vmul.f32 %v1898, %v1980
    %v2011 = vmul.f32 %v1899, %v1981
    %v2012 = vmul.f32 %v1900, %v1980
    %v2013 = vmul.f32 %v1901, %v1981
    %v2014 = vld [vmem:[%s9] sm:$0x3]
    %v2016 = vlaneseq
    %v2017 = vshrl.u32 %v2016, 7
    %v2018 = vsub.s32 0, %v2017
    %v2019 = vrot.slane %v2014, %v2018
    %v2020 = vlaneseq
    %v2021 = vshrl.u32 %v2020, 7
    %v2022 = vsub.s32 1, %v2021
    %v2023 = vrot.slane %v2014, %v2022
    %v2026 = vmul.f32 %v1982, %v2019
    %v2027 = vmul.f32 %v1983, %v2023
    %v2028 = vmul.f32 %v1984, %v2019
    %v2029 = vmul.f32 %v1985, %v2023
    %v2030 = vmul.f32 %v1986, %v2019
    %v2031 = vmul.f32 %v1987, %v2023
    %v2032 = vmul.f32 %v1988, %v2019
    %v2033 = vmul.f32 %v1989, %v2023
    %v2034 = vmul.f32 %v1990, %v2019
    %v2035 = vmul.f32 %v1991, %v2023
    %v2036 = vmul.f32 %v1992, %v2019
    %v2037 = vmul.f32 %v1993, %v2023
    %v2038 = vmul.f32 %v1994, %v2019
    %v2039 = vmul.f32 %v1995, %v2023
    %v2040 = vmul.f32 %v1996, %v2019
    %v2041 = vmul.f32 %v1997, %v2023
    %v2042 = vmul.f32 %v1998, %v2019
    %v2043 = vmul.f32 %v1999, %v2023
    %v2044 = vmul.f32 %v2000, %v2019
    %v2045 = vmul.f32 %v2001, %v2023
    %v2046 = vmul.f32 %v2002, %v2019
    %v2047 = vmul.f32 %v2003, %v2023
    %v2048 = vmul.f32 %v2004, %v2019
    %v2049 = vmul.f32 %v2005, %v2023
    %v2050 = vmul.f32 %v2006, %v2019
    %v2051 = vmul.f32 %v2007, %v2023
    %v2052 = vmul.f32 %v2008, %v2019
    %v2053 = vmul.f32 %v2009, %v2023
    %v2054 = vmul.f32 %v2010, %v2019
    %v2055 = vmul.f32 %v2011, %v2023
    %v2056 = vmul.f32 %v2012, %v2019
    %v2057 = vmul.f32 %v2013, %v2023
    %v2058 = vld [vmem:[%s10] sm:$0x3]
    %v2060 = vlaneseq
    %v2061 = vshrl.u32 %v2060, 7
    %v2062 = vsub.s32 0, %v2061
    %v2063 = vrot.slane %v2058, %v2062
    %v2064 = vlaneseq
    %v2065 = vshrl.u32 %v2064, 7
    %v2066 = vsub.s32 1, %v2065
    %v2067 = vrot.slane %v2058, %v2066
    %v2070 = vadd.f32 %v2026, %v2063
    %v2071 = vadd.f32 %v2027, %v2067
    %v2072 = vadd.f32 %v2028, %v2063
    %v2073 = vadd.f32 %v2029, %v2067
    %v2074 = vadd.f32 %v2030, %v2063
    %v2075 = vadd.f32 %v2031, %v2067
    %v2076 = vadd.f32 %v2032, %v2063
    %v2077 = vadd.f32 %v2033, %v2067
    %v2078 = vadd.f32 %v2034, %v2063
    %v2079 = vadd.f32 %v2035, %v2067
    %v2080 = vadd.f32 %v2036, %v2063
    %v2081 = vadd.f32 %v2037, %v2067
    %v2082 = vadd.f32 %v2038, %v2063
    %v2083 = vadd.f32 %v2039, %v2067
    %v2084 = vadd.f32 %v2040, %v2063
    %v2085 = vadd.f32 %v2041, %v2067
    %v2086 = vadd.f32 %v2042, %v2063
    %v2087 = vadd.f32 %v2043, %v2067
    %v2088 = vadd.f32 %v2044, %v2063
    %v2089 = vadd.f32 %v2045, %v2067
    %v2090 = vadd.f32 %v2046, %v2063
    %v2091 = vadd.f32 %v2047, %v2067
    %v2092 = vadd.f32 %v2048, %v2063
    %v2093 = vadd.f32 %v2049, %v2067
    %v2094 = vadd.f32 %v2050, %v2063
    %v2095 = vadd.f32 %v2051, %v2067
    %v2096 = vadd.f32 %v2052, %v2063
    %v2097 = vadd.f32 %v2053, %v2067
    %v2098 = vadd.f32 %v2054, %v2063
    %v2099 = vadd.f32 %v2055, %v2067
    %v2100 = vadd.f32 %v2056, %v2063
    %v2101 = vadd.f32 %v2057, %v2067
    %v2102 = vmax.f32 %v2070, 0.0
    %v2103 = vmax.f32 %v2071, 0.0
    %v2104 = vmax.f32 %v2072, 0.0
    %v2105 = vmax.f32 %v2073, 0.0
    %v2106 = vmax.f32 %v2074, 0.0
    %v2107 = vmax.f32 %v2075, 0.0
    %v2108 = vmax.f32 %v2076, 0.0
    %v2109 = vmax.f32 %v2077, 0.0
    %v2110 = vmax.f32 %v2078, 0.0
    %v2111 = vmax.f32 %v2079, 0.0
    %v2112 = vmax.f32 %v2080, 0.0
    %v2113 = vmax.f32 %v2081, 0.0
    %v2114 = vmax.f32 %v2082, 0.0
    %v2115 = vmax.f32 %v2083, 0.0
    %v2116 = vmax.f32 %v2084, 0.0
    %v2117 = vmax.f32 %v2085, 0.0
    %v2118 = vmax.f32 %v2086, 0.0
    %v2119 = vmax.f32 %v2087, 0.0
    %v2120 = vmax.f32 %v2088, 0.0
    %v2121 = vmax.f32 %v2089, 0.0
    %v2122 = vmax.f32 %v2090, 0.0
    %v2123 = vmax.f32 %v2091, 0.0
    %v2124 = vmax.f32 %v2092, 0.0
    %v2125 = vmax.f32 %v2093, 0.0
    %v2126 = vmax.f32 %v2094, 0.0
    %v2127 = vmax.f32 %v2095, 0.0
    %v2128 = vmax.f32 %v2096, 0.0
    %v2129 = vmax.f32 %v2097, 0.0
    %v2130 = vmax.f32 %v2098, 0.0
    %v2131 = vmax.f32 %v2099, 0.0
    %v2132 = vmax.f32 %v2100, 0.0
    %v2133 = vmax.f32 %v2101, 0.0
    %v2134 = vld [vmem:[#allocation11] sm:$0xff]
    %v2135 = vld [vmem:[#allocation11 + $0x8] sm:$0xff]
    %v2136 = vld [vmem:[#allocation11 + $0x10] sm:$0xff]
    %v2137 = vld [vmem:[#allocation11 + $0x18] sm:$0xff]
    %v2138 = vld [vmem:[#allocation11 + $0x20] sm:$0xff]
    %v2139 = vld [vmem:[#allocation11 + $0x28] sm:$0xff]
    %v2140 = vld [vmem:[#allocation11 + $0x30] sm:$0xff]
    %v2141 = vld [vmem:[#allocation11 + $0x38] sm:$0xff]
    %v2142 = vld [vmem:[#allocation11 + $0x40] sm:$0xff]
    %v2143 = vld [vmem:[#allocation11 + $0x48] sm:$0xff]
    %v2144 = vld [vmem:[#allocation11 + $0x50] sm:$0xff]
    %v2145 = vld [vmem:[#allocation11 + $0x58] sm:$0xff]
    %v2146 = vld [vmem:[#allocation11 + $0x60] sm:$0xff]
    %v2147 = vld [vmem:[#allocation11 + $0x68] sm:$0xff]
    %v2148 = vld [vmem:[#allocation11 + $0x70] sm:$0xff]
    %v2149 = vld [vmem:[#allocation11 + $0x78] sm:$0xff]
    %v2150 = vld [vmem:[#allocation11 + $0x80] sm:$0xff]
    %v2151 = vld [vmem:[#allocation11 + $0x88] sm:$0xff]
    %v2152 = vld [vmem:[#allocation11 + $0x90] sm:$0xff]
    %v2153 = vld [vmem:[#allocation11 + $0x98] sm:$0xff]
    %v2154 = vld [vmem:[#allocation11 + $0xa0] sm:$0xff]
    %v2155 = vld [vmem:[#allocation11 + $0xa8] sm:$0xff]
    %v2156 = vld [vmem:[#allocation11 + $0xb0] sm:$0xff]
    %v2157 = vld [vmem:[#allocation11 + $0xb8] sm:$0xff]
    %v2158 = vld [vmem:[#allocation11 + $0xc0] sm:$0xff]
    %v2159 = vld [vmem:[#allocation11 + $0xc8] sm:$0xff]
    %v2160 = vld [vmem:[#allocation11 + $0xd0] sm:$0xff]
    %v2161 = vld [vmem:[#allocation11 + $0xd8] sm:$0xff]
    %v2162 = vld [vmem:[#allocation11 + $0xe0] sm:$0xff]
    %v2163 = vld [vmem:[#allocation11 + $0xe8] sm:$0xff]
    %v2164 = vld [vmem:[#allocation11 + $0xf0] sm:$0xff]
    %v2165 = vld [vmem:[#allocation11 + $0xf8] sm:$0xff]
    %v2166 = vld [vmem:[%s12] sm:$0x1]
    %v2168 = vlaneseq
    %v2169 = vshrl.u32 %v2168, 7
    %v2170 = vsub.s32 0, %v2169
    %v2171 = vrot.slane %v2166, %v2170
    %2173 = vmatprep.subr.mxu0 0.0
    %2174 = vmatpush1.msra.mxu0 %v2134
    %2175 = vmatprep.subr.mxu0 0.0
    %2176 = vmatpush1.msra.mxu0 %v2135
    %2177 = vmatprep.subr.mxu0 0.0
    %2178 = vmatpush1.msra.mxu0 %v2136
    %2179 = vmatprep.subr.mxu0 0.0
    %2180 = vmatpush1.msra.mxu0 %v2137
    %2181 = vmatprep.subr.mxu0 0.0
    %2182 = vmatpush1.msra.mxu0 %v2138
    %2183 = vmatprep.subr.mxu0 0.0
    %2184 = vmatpush1.msra.mxu0 %v2139
    %2185 = vmatprep.subr.mxu0 0.0
    %2186 = vmatpush1.msra.mxu0 %v2140
    %2187 = vmatprep.subr.mxu0 0.0
    %2188 = vmatpush1.msra.mxu0 %v2141
    %2189 = vmatprep.subr.mxu0 0.0
    %2190 = vmatpush1.msra.mxu0 %v2142
    %2191 = vmatprep.subr.mxu0 0.0
    %2192 = vmatpush1.msra.mxu0 %v2143
    %2193 = vmatprep.subr.mxu0 0.0
    %2194 = vmatpush1.msra.mxu0 %v2144
    %2195 = vmatprep.subr.mxu0 0.0
    %2196 = vmatpush1.msra.mxu0 %v2145
    %2197 = vmatprep.subr.mxu0 0.0
    %2198 = vmatpush1.msra.mxu0 %v2146
    %2199 = vmatprep.subr.mxu0 0.0
    %2200 = vmatpush1.msra.mxu0 %v2147
    %2201 = vmatprep.subr.mxu0 0.0
    %2202 = vmatpush1.msra.mxu0 %v2148
    %2203 = vmatprep.subr.mxu0 0.0
    %2204 = vmatpush1.msra.mxu0 %v2149
    %2205 = vmatprep.subr.mxu0 0.0
    %2206 = vmatpush1.msra.mxu0 %v2150
    %2207 = vmatprep.subr.mxu0 0.0
    %2208 = vmatpush1.msra.mxu0 %v2151
    %2209 = vmatprep.subr.mxu0 0.0
    %2210 = vmatpush1.msra.mxu0 %v2152
    %2211 = vmatprep.subr.mxu0 0.0
    %2212 = vmatpush1.msra.mxu0 %v2153
    %2213 = vmatprep.subr.mxu0 0.0
    %2214 = vmatpush1.msra.mxu0 %v2154
    %2215 = vmatprep.subr.mxu0 0.0
    %2216 = vmatpush1.msra.mxu0 %v2155
    %2217 = vmatprep.subr.mxu0 0.0
    %2218 = vmatpush1.msra.mxu0 %v2156
    %2219 = vmatprep.subr.mxu0 0.0
    %2220 = vmatpush1.msra.mxu0 %v2157
    %2221 = vmatprep.subr.mxu0 0.0
    %2222 = vmatpush1.msra.mxu0 %v2158
    %2223 = vmatprep.subr.mxu0 0.0
    %2224 = vmatpush1.msra.mxu0 %v2159
    %2225 = vmatprep.subr.mxu0 0.0
    %2226 = vmatpush1.msra.mxu0 %v2160
    %2227 = vmatprep.subr.mxu0 0.0
    %2228 = vmatpush1.msra.mxu0 %v2161
    %2229 = vmatprep.subr.mxu0 0.0
    %2230 = vmatpush1.msra.mxu0 %v2162
    %2231 = vmatprep.subr.mxu0 0.0
    %2232 = vmatpush1.msra.mxu0 %v2163
    %2233 = vmatprep.subr.mxu0 0.0
    %2234 = vmatpush1.msra.mxu0 %v2164
    %2235 = vmatprep.subr.mxu0 0.0
    %2236 = vmatpush1.msra.mxu0 %v2165
    %2237 = vmatprep.mubr.f32.mxu0 %v2103
    %2238 = vmatmul.mubr.f32.gmra.mrb[0].mxu0 %v2102
    %v2239 = vpop.f32.mrb[0].mxu0
    %v2240 = vadd.f32 %v2171, %v2239
    %v2241 = vpop.f32.mrb[0].mxu0
    %2242 = vmatprep.mubr.f32.mxu0 %v2105
    %2243 = vmatmul.mubr.f32.gmra.mrb[0].mxu0 %v2104
    %v2244 = vpop.f32.mrb[0].mxu0
    %v2245 = vadd.f32 %v2171, %v2244
    %v2246 = vpop.f32.mrb[0].mxu0
    %2247 = vmatprep.mubr.f32.mxu0 %v2107
    %2248 = vmatmul.mubr.f32.gmra.mrb[0].mxu0 %v2106
    %v2249 = vpop.f32.mrb[0].mxu0
    %v2250 = vadd.f32 %v2171, %v2249
    %v2251 = vpop.f32.mrb[0].mxu0
    %2252 = vmatprep.mubr.f32.mxu0 %v2109
    %2253 = vmatmul.mubr.f32.gmra.mrb[0].mxu0 %v2108
    %v2254 = vpop.f32.mrb[0].mxu0
    %v2255 = vadd.f32 %v2171, %v2254
    %v2256 = vpop.f32.mrb[0].mxu0
    %2257 = vmatprep.mubr.f32.mxu0 %v2111
    %2258 = vmatmul.mubr.f32.gmra.mrb[0].mxu0 %v2110
    %v2259 = vpop.f32.mrb[0].mxu0
    %v2260 = vadd.f32 %v2171, %v2259
    %v2261 = vpop.f32.mrb[0].mxu0
    %2262 = vmatprep.mubr.f32.mxu0 %v2113
    %2263 = vmatmul.mubr.f32.gmra.mrb[0].mxu0 %v2112
    %v2264 = vpop.f32.mrb[0].mxu0
    %v2265 = vadd.f32 %v2171, %v2264
    %v2266 = vpop.f32.mrb[0].mxu0
    %2267 = vmatprep.mubr.f32.mxu0 %v2115
    %2268 = vmatmul.mubr.f32.gmra.mrb[0].mxu0 %v2114
    %v2269 = vpop.f32.mrb[0].mxu0
    %v2270 = vadd.f32 %v2171, %v2269
    %v2271 = vpop.f32.mrb[0].mxu0
    %2272 = vmatprep.mubr.f32.mxu0 %v2117
    %2273 = vmatmul.mubr.f32.gmra.mrb[0].mxu0 %v2116
    %v2274 = vpop.f32.mrb[0].mxu0
    %v2275 = vadd.f32 %v2171, %v2274
    %v2276 = vpop.f32.mrb[0].mxu0
    %2277 = vmatprep.mubr.f32.mxu0 %v2119
    %2278 = vmatmul.mubr.f32.gmra.mrb[0].mxu0 %v2118
    %v2279 = vpop.f32.mrb[0].mxu0
    %v2280 = vadd.f32 %v2171, %v2279
    %v2281 = vpop.f32.mrb[0].mxu0
    %2282 = vmatprep.mubr.f32.mxu0 %v2121
    %2283 = vmatmul.mubr.f32.gmra.mrb[0].mxu0 %v2120
    %v2284 = vpop.f32.mrb[0].mxu0
    %v2285 = vadd.f32 %v2171, %v2284
    %v2286 = vpop.f32.mrb[0].mxu0
    %2287 = vmatprep.mubr.f32.mxu0 %v2123
    %2288 = vmatmul.mubr.f32.gmra.mrb[0].mxu0 %v2122
    %v2289 = vpop.f32.mrb[0].mxu0
    %v2290 = vadd.f32 %v2171, %v2289
    %v2291 = vpop.f32.mrb[0].mxu0
    %2292 = vmatprep.mubr.f32.mxu0 %v2125
    %2293 = vmatmul.mubr.f32.gmra.mrb[0].mxu0 %v2124
    %v2294 = vpop.f32.mrb[0].mxu0
    %v2295 = vadd.f32 %v2171, %v2294
    %v2296 = vpop.f32.mrb[0].mxu0
    %2297 = vmatprep.mubr.f32.mxu0 %v2127
    %2298 = vmatmul.mubr.f32.gmra.mrb[0].mxu0 %v2126
    %v2299 = vpop.f32.mrb[0].mxu0
    %v2300 = vadd.f32 %v2171, %v2299
    %v2301 = vpop.f32.mrb[0].mxu0
    %2302 = vmatprep.mubr.f32.mxu0 %v2129
    %2303 = vmatmul.mubr.f32.gmra.mrb[0].mxu0 %v2128
    %v2304 = vpop.f32.mrb[0].mxu0
    %v2305 = vadd.f32 %v2171, %v2304
    %v2306 = vpop.f32.mrb[0].mxu0
    %2307 = vmatprep.mubr.f32.mxu0 %v2131
    %2308 = vmatmul.mubr.f32.gmra.mrb[0].mxu0 %v2130
    %v2309 = vpop.f32.mrb[0].mxu0
    %v2310 = vadd.f32 %v2171, %v2309
    %v2311 = vpop.f32.mrb[0].mxu0
    %2312 = vmatprep.mubr.f32.mxu0 %v2133
    %2313 = vmatmul.mubr.f32.gmra.mrb[0].mxu0 %v2132
    %v2314 = vpop.f32.mrb[0].mxu0
    %v2315 = vadd.f32 %v2171, %v2314
    %v2316 = vpop.f32.mrb[0].mxu0
    %2317 = vdwg.mxu0
    %2318 = vmatprep.subr.mxu0 0.0
    %2319 = vmatpush1.xpose.msra.mxu0 %v2240
    %2320 = vmatprep.subr.mxu0 0.0
    %2321 = vmatpush1.xpose.msra.mxu0 %v2245
    %2322 = vmatprep.subr.mxu0 0.0
    %2323 = vmatpush1.xpose.msra.mxu0 %v2250
    %2324 = vmatprep.subr.mxu0 0.0
    %2325 = vmatpush1.xpose.msra.mxu0 %v2255
    %2326 = vmatprep.subr.mxu0 0.0
    %2327 = vmatpush1.xpose.msra.mxu0 %v2260
    %2328 = vmatprep.subr.mxu0 0.0
    %2329 = vmatpush1.xpose.msra.mxu0 %v2265
    %2330 = vmatprep.subr.mxu0 0.0
    %2331 = vmatpush1.xpose.msra.mxu0 %v2270
    %2332 = vmatprep.subr.mxu0 0.0
    %2333 = vmatpush1.xpose.msra.mxu0 %v2275
    %2334 = vmatprep.subr.mxu0 0.0
    %2335 = vmatpush1.xpose.msra.mxu0 %v2280
    %2336 = vmatprep.subr.mxu0 0.0
    %2337 = vmatpush1.xpose.msra.mxu0 %v2285
    %2338 = vmatprep.subr.mxu0 0.0
    %2339 = vmatpush1.xpose.msra.mxu0 %v2290
    %2340 = vmatprep.subr.mxu0 0.0
    %2341 = vmatpush1.xpose.msra.mxu0 %v2295
    %2342 = vmatprep.subr.mxu0 0.0
    %2343 = vmatpush1.xpose.msra.mxu0 %v2300
    %2344 = vmatprep.subr.mxu0 0.0
    %2345 = vmatpush1.xpose.msra.mxu0 %v2305
    %2346 = vmatprep.subr.mxu0 0.0
    %2347 = vmatpush1.xpose.msra.mxu0 %v2310
    %2348 = vmatprep.subr.mxu0 0.0
    %2349 = vmatpush1.xpose.msra.mxu0 %v2315
    %2350 = vmatprep.subr.mxu0 0.0
    %2351 = vmatpush1.xpose.msra.mxu0 0.0
    %2352 = vmatprep.subr.mxu0 0.0
    %2353 = vmatpush1.xpose.msra.mxu0 0.0
    %2354 = vmatprep.subr.mxu0 0.0
    %2355 = vmatpush1.xpose.msra.mxu0 0.0
    %2356 = vmatprep.subr.mxu0 0.0
    %2357 = vmatpush1.xpose.msra.mxu0 0.0
    %2358 = vmatprep.subr.mxu0 0.0
    %2359 = vmatpush1.xpose.msra.mxu0 0.0
    %2360 = vmatprep.subr.mxu0 0.0
    %2361 = vmatpush1.xpose.msra.mxu0 0.0
    %2362 = vmatprep.subr.mxu0 0.0
    %2363 = vmatpush1.xpose.msra.mxu0 0.0
    %2364 = vmatprep.subr.mxu0 0.0
    %2365 = vmatpush1.xpose.msra.mxu0 0.0
    %2366 = vmatprep.subr.mxu0 0.0
    %2367 = vmatpush1.xpose.msra.mxu0 0.0
    %2368 = vmatprep.subr.mxu0 0.0
    %2369 = vmatpush1.xpose.msra.mxu0 0.0
    %2370 = vmatprep.subr.mxu0 0.0
    %2371 = vmatpush1.xpose.msra.mxu0 0.0
    %2372 = vmatprep.subr.mxu0 0.0
    %2373 = vmatpush1.xpose.msra.mxu0 0.0
    %2374 = vmatprep.subr.mxu0 0.0
    %2375 = vmatpush1.xpose.msra.mxu0 0.0
    %2376 = vmatprep.subr.mxu0 0.0
    %2377 = vmatpush1.xpose.msra.mxu0 0.0
    %2378 = vmatprep.subr.mxu0 0.0
    %2379 = vmatpush1.xpose.msra.mxu0 0.0
    %2380 = vmatprep.subr.mxu0 0.0
    %2381 = vmatpush1.xpose.msra.mxu0 0.0
    %2382 = vmatprep.mubr.f32.mxu0 0.0
    %2383 = vmatmul.mubr.f32.gmra.mrb[0].mxu0 %v2240
    %v2384 = vpop.f32.mrb[0].mxu0
    %v2385 = vadd.f32 0.0, %v2384
    %v2386 = vpop.f32.mrb[0].mxu0
    %2387 = vmatprep.mubr.f32.mxu0 0.0
    %2388 = vmatmul.mubr.f32.gmra.mrb[0].mxu0 %v2245
    %v2389 = vpop.f32.mrb[0].mxu0
    %v2390 = vadd.f32 0.0, %v2389
    %v2391 = vpop.f32.mrb[0].mxu0
    %2392 = vmatprep.mubr.f32.mxu0 0.0
    %2393 = vmatmul.mubr.f32.gmra.mrb[0].mxu0 %v2250
    %v2394 = vpop.f32.mrb[0].mxu0
    %v2395 = vadd.f32 0.0, %v2394
    %v2396 = vpop.f32.mrb[0].mxu0
    %2397 = vmatprep.mubr.f32.mxu0 0.0
    %2398 = vmatmul.mubr.f32.gmra.mrb[0].mxu0 %v2255
    %v2399 = vpop.f32.mrb[0].mxu0
    %v2400 = vadd.f32 0.0, %v2399
    %v2401 = vpop.f32.mrb[0].mxu0
    %2402 = vmatprep.mubr.f32.mxu0 0.0
    %2403 = vmatmul.mubr.f32.gmra.mrb[0].mxu0 %v2260
    %v2404 = vpop.f32.mrb[0].mxu0
    %v2405 = vadd.f32 0.0, %v2404
    %v2406 = vpop.f32.mrb[0].mxu0
    %2407 = vmatprep.mubr.f32.mxu0 0.0
    %2408 = vmatmul.mubr.f32.gmra.mrb[0].mxu0 %v2265
    %v2409 = vpop.f32.mrb[0].mxu0
    %v2410 = vadd.f32 0.0, %v2409
    %v2411 = vpop.f32.mrb[0].mxu0
    %2412 = vmatprep.mubr.f32.mxu0 0.0
    %2413 = vmatmul.mubr.f32.gmra.mrb[0].mxu0 %v2270
    %v2414 = vpop.f32.mrb[0].mxu0
    %v2415 = vadd.f32 0.0, %v2414
    %v2416 = vpop.f32.mrb[0].mxu0
    %2417 = vmatprep.mubr.f32.mxu0 0.0
    %2418 = vmatmul.mubr.f32.gmra.mrb[0].mxu0 %v2275
    %v2419 = vpop.f32.mrb[0].mxu0
    %v2420 = vadd.f32 0.0, %v2419
    %v2421 = vpop.f32.mrb[0].mxu0
    %2422 = vmatprep.mubr.f32.mxu0 0.0
    %2423 = vmatmul.mubr.f32.gmra.mrb[0].mxu0 %v2280
    %v2424 = vpop.f32.mrb[0].mxu0
    %v2425 = vadd.f32 0.0, %v2424
    %v2426 = vpop.f32.mrb[0].mxu0
    %2427 = vmatprep.mubr.f32.mxu0 0.0
    %2428 = vmatmul.mubr.f32.gmra.mrb[0].mxu0 %v2285
    %v2429 = vpop.f32.mrb[0].mxu0
    %v2430 = vadd.f32 0.0, %v2429
    %v2431 = vpop.f32.mrb[0].mxu0
    %2432 = vmatprep.mubr.f32.mxu0 0.0
    %2433 = vmatmul.mubr.f32.gmra.mrb[0].mxu0 %v2290
    %v2434 = vpop.f32.mrb[0].mxu0
    %v2435 = vadd.f32 0.0, %v2434
    %v2436 = vpop.f32.mrb[0].mxu0
    %2437 = vmatprep.mubr.f32.mxu0 0.0
    %2438 = vmatmul.mubr.f32.gmra.mrb[0].mxu0 %v2295
    %v2439 = vpop.f32.mrb[0].mxu0
    %v2440 = vadd.f32 0.0, %v2439
    %v2441 = vpop.f32.mrb[0].mxu0
    %2442 = vmatprep.mubr.f32.mxu0 0.0
    %2443 = vmatmul.mubr.f32.gmra.mrb[0].mxu0 %v2300
    %v2444 = vpop.f32.mrb[0].mxu0
    %v2445 = vadd.f32 0.0, %v2444
    %v2446 = vpop.f32.mrb[0].mxu0
    %2447 = vmatprep.mubr.f32.mxu0 0.0
    %2448 = vmatmul.mubr.f32.gmra.mrb[0].mxu0 %v2305
    %v2449 = vpop.f32.mrb[0].mxu0
    %v2450 = vadd.f32 0.0, %v2449
    %v2451 = vpop.f32.mrb[0].mxu0
    %2452 = vmatprep.mubr.f32.mxu0 0.0
    %2453 = vmatmul.mubr.f32.gmra.mrb[0].mxu0 %v2310
    %v2454 = vpop.f32.mrb[0].mxu0
    %v2455 = vadd.f32 0.0, %v2454
    %v2456 = vpop.f32.mrb[0].mxu0
    %2457 = vmatprep.mubr.f32.mxu0 0.0
    %2458 = vmatmul.mubr.f32.gmra.mrb[0].mxu0 %v2315
    %v2459 = vpop.f32.mrb[0].mxu0
    %v2460 = vadd.f32 0.0, %v2459
    %v2461 = vpop.f32.mrb[0].mxu0
    %2462 = vdwg.mxu0
    %v2463 = vmul.f32 %v2240, %v2240
    %v2464 = vmul.f32 %v2245, %v2245
    %v2465 = vmul.f32 %v2250, %v2250
    %v2466 = vmul.f32 %v2255, %v2255
    %v2467 = vmul.f32 %v2260, %v2260
    %v2468 = vmul.f32 %v2265, %v2265
    %v2469 = vmul.f32 %v2270, %v2270
    %v2470 = vmul.f32 %v2275, %v2275
    %v2471 = vmul.f32 %v2280, %v2280
    %v2472 = vmul.f32 %v2285, %v2285
    %v2473 = vmul.f32 %v2290, %v2290
    %v2474 = vmul.f32 %v2295, %v2295
    %v2475 = vmul.f32 %v2300, %v2300
    %v2476 = vmul.f32 %v2305, %v2305
    %v2477 = vmul.f32 %v2310, %v2310
    %v2478 = vmul.f32 %v2315, %v2315
    %2479 = vadd.xlane.f32.xlu0 %v2463
    %v2480 = vpop.xlane.xlu0 %2479
    %2481 = vadd.xlane.f32.xlu0 %v2464
    %v2482 = vpop.xlane.xlu0 %2481
    %2483 = vadd.xlane.f32.xlu0 %v2465
    %v2484 = vpop.xlane.xlu0 %2483
    %2485 = vadd.xlane.f32.xlu0 %v2466
    %v2486 = vpop.xlane.xlu0 %2485
    %2487 = vadd.xlane.f32.xlu0 %v2467
    %v2488 = vpop.xlane.xlu0 %2487
    %2489 = vadd.xlane.f32.xlu0 %v2468
    %v2490 = vpop.xlane.xlu0 %2489
    %2491 = vadd.xlane.f32.xlu0 %v2469
    %v2492 = vpop.xlane.xlu0 %2491
    %2493 = vadd.xlane.f32.xlu0 %v2470
    %v2494 = vpop.xlane.xlu0 %2493
    %2495 = vadd.xlane.f32.xlu0 %v2471
    %v2496 = vpop.xlane.xlu0 %2495
    %2497 = vadd.xlane.f32.xlu0 %v2472
    %v2498 = vpop.xlane.xlu0 %2497
    %2499 = vadd.xlane.f32.xlu0 %v2473
    %v2500 = vpop.xlane.xlu0 %2499
    %2501 = vadd.xlane.f32.xlu0 %v2474
    %v2502 = vpop.xlane.xlu0 %2501
    %2503 = vadd.xlane.f32.xlu0 %v2475
    %v2504 = vpop.xlane.xlu0 %2503
    %2505 = vadd.xlane.f32.xlu0 %v2476
    %v2506 = vpop.xlane.xlu0 %2505
    %2507 = vadd.xlane.f32.xlu0 %v2477
    %v2508 = vpop.xlane.xlu0 %2507
    %2509 = vadd.xlane.f32.xlu0 %v2478
    %v2510 = vpop.xlane.xlu0 %2509
    %2511 = vxpose.xlu0.b32.start [1/16] %v2480, 128
    %2512 = vxpose.xlu0.b32.cont [2/16] %v2482, 128
    %2513 = vxpose.xlu0.b32.cont [3/16] %v2484, 128
    %2514 = vxpose.xlu0.b32.cont [4/16] %v2486, 128
    %2515 = vxpose.xlu0.b32.cont [5/16] %v2488, 128
    %2516 = vxpose.xlu0.b32.cont [6/16] %v2490, 128
    %2517 = vxpose.xlu0.b32.cont [7/16] %v2492, 128
    %2518 = vxpose.xlu0.b32.cont [8/16] %v2494, 128
    %2519 = vxpose.xlu0.b32.cont [9/16] %v2496, 128
    %2520 = vxpose.xlu0.b32.cont [10/16] %v2498, 128
    %2521 = vxpose.xlu0.b32.cont [11/16] %v2500, 128
    %2522 = vxpose.xlu0.b32.cont [12/16] %v2502, 128
    %2523 = vxpose.xlu0.b32.cont [13/16] %v2504, 128
    %2524 = vxpose.xlu0.b32.cont [14/16] %v2506, 128
    %2525 = vxpose.xlu0.b32.cont [15/16] %v2508, 128
    %2526 = vxpose.xlu0.b32.end [16/16] %v2510, 128
    %v2527 = vpop.trf.xlu0
    %v2528 = vpop.trf.xlu0
    %v2529 = vpop.trf.xlu0
    %v2530 = vpop.trf.xlu0
    %v2531 = vpop.trf.xlu0
    %v2532 = vpop.trf.xlu0
    %v2533 = vpop.trf.xlu0
    %v2534 = vpop.trf.xlu0
    %v2535 = vpop.trf.xlu0
    %v2536 = vpop.trf.xlu0
    %v2537 = vpop.trf.xlu0
    %v2538 = vpop.trf.xlu0
    %v2539 = vpop.trf.xlu0
    %v2540 = vpop.trf.xlu0
    %v2541 = vpop.trf.xlu0
    %v2542 = vpop.trf.xlu0
    %v2543 = vlaneseq
    %v2544 = vshrl.u32 %v2543, 7
    %v2545 = vsub.s32 0, %v2544
    %v2546 = vrot.slane %v2527, %v2545
    %v2547 = vadd.f32 %v2480, %v2546
    %v2548 = vadd.f32 %v2482, %v2546
    %v2549 = vadd.f32 %v2484, %v2546
    %v2550 = vadd.f32 %v2486, %v2546
    %v2551 = vadd.f32 %v2488, %v2546
    %v2552 = vadd.f32 %v2490, %v2546
    %v2553 = vadd.f32 %v2492, %v2546
    %v2554 = vadd.f32 %v2494, %v2546
    %v2555 = vadd.f32 %v2496, %v2546
    %v2556 = vadd.f32 %v2498, %v2546
    %v2557 = vadd.f32 %v2500, %v2546
    %v2558 = vadd.f32 %v2502, %v2546
    %v2559 = vadd.f32 %v2504, %v2546
    %v2560 = vadd.f32 %v2506, %v2546
    %v2561 = vadd.f32 %v2508, %v2546
    %v2562 = vadd.f32 %v2510, %v2546
    %v2563 = vmul.f32 %v2385, 2.0
    %v2564 = vmul.f32 %v2390, 2.0
    %v2565 = vmul.f32 %v2395, 2.0
    %v2566 = vmul.f32 %v2400, 2.0
    %v2567 = vmul.f32 %v2405, 2.0
    %v2568 = vmul.f32 %v2410, 2.0
    %v2569 = vmul.f32 %v2415, 2.0
    %v2570 = vmul.f32 %v2420, 2.0
    %v2571 = vmul.f32 %v2425, 2.0
    %v2572 = vmul.f32 %v2430, 2.0
    %v2573 = vmul.f32 %v2435, 2.0
    %v2574 = vmul.f32 %v2440, 2.0
    %v2575 = vmul.f32 %v2445, 2.0
    %v2576 = vmul.f32 %v2450, 2.0
    %v2577 = vmul.f32 %v2455, 2.0
    %v2578 = vmul.f32 %v2460, 2.0
    %v2579 = vsub.f32 %v2547, %v2563
    %v2580 = vsub.f32 %v2548, %v2564
    %v2581 = vsub.f32 %v2549, %v2565
    %v2582 = vsub.f32 %v2550, %v2566
    %v2583 = vsub.f32 %v2551, %v2567
    %v2584 = vsub.f32 %v2552, %v2568
    %v2585 = vsub.f32 %v2553, %v2569
    %v2586 = vsub.f32 %v2554, %v2570
    %v2587 = vsub.f32 %v2555, %v2571
    %v2588 = vsub.f32 %v2556, %v2572
    %v2589 = vsub.f32 %v2557, %v2573
    %v2590 = vsub.f32 %v2558, %v2574
    %v2591 = vsub.f32 %v2559, %v2575
    %v2592 = vsub.f32 %v2560, %v2576
    %v2593 = vsub.f32 %v2561, %v2577
    %v2594 = vsub.f32 %v2562, %v2578
    %v2595 = vmax.f32 %v2579, 0.0
    %v2596 = vmax.f32 %v2580, 0.0
    %v2597 = vmax.f32 %v2581, 0.0
    %v2598 = vmax.f32 %v2582, 0.0
    %v2599 = vmax.f32 %v2583, 0.0
    %v2600 = vmax.f32 %v2584, 0.0
    %v2601 = vmax.f32 %v2585, 0.0
    %v2602 = vmax.f32 %v2586, 0.0
    %v2603 = vmax.f32 %v2587, 0.0
    %v2604 = vmax.f32 %v2588, 0.0
    %v2605 = vmax.f32 %v2589, 0.0
    %v2606 = vmax.f32 %v2590, 0.0
    %v2607 = vmax.f32 %v2591, 0.0
    %v2608 = vmax.f32 %v2592, 0.0
    %v2609 = vmax.f32 %v2593, 0.0
    %v2610 = vmax.f32 %v2594, 0.0
    %v2611 = vlaneseq
    %v2612 = vshrl.u32 %v2611, 7
    %v2613 = vadd.s32 %v2612, 8
    %v2614 = vadd.s32 %v2612, 16
    %v2615 = vadd.s32 %v2612, 24
    %v2616 = vadd.s32 %v2612, 32
    %v2617 = vadd.s32 %v2612, 40
    %v2618 = vadd.s32 %v2612, 48
    %v2619 = vadd.s32 %v2612, 56
    %v2620 = vadd.s32 %v2612, 64
    %v2621 = vadd.s32 %v2612, 72
    %v2622 = vadd.s32 %v2612, 80
    %v2623 = vadd.s32 %v2612, 88
    %v2624 = vadd.s32 %v2612, 96
    %v2625 = vadd.s32 %v2612, 104
    %v2626 = vadd.s32 %v2612, 112
    %v2627 = vadd.s32 %v2612, 120
    %v2628 = vlaneseq
    %v2629 = vand.u32 %v2628, 127
    %vm2630 = vcmp.eq.s32.totalorder %v2612, %v2629
    %vm2631 = vcmp.eq.s32.totalorder %v2613, %v2629
    %vm2632 = vcmp.eq.s32.totalorder %v2614, %v2629
    %vm2633 = vcmp.eq.s32.totalorder %v2615, %v2629
    %vm2634 = vcmp.eq.s32.totalorder %v2616, %v2629
    %vm2635 = vcmp.eq.s32.totalorder %v2617, %v2629
    %vm2636 = vcmp.eq.s32.totalorder %v2618, %v2629
    %vm2637 = vcmp.eq.s32.totalorder %v2619, %v2629
    %vm2638 = vcmp.eq.s32.totalorder %v2620, %v2629
    %vm2639 = vcmp.eq.s32.totalorder %v2621, %v2629
    %vm2640 = vcmp.eq.s32.totalorder %v2622, %v2629
    %vm2641 = vcmp.eq.s32.totalorder %v2623, %v2629
    %vm2642 = vcmp.eq.s32.totalorder %v2624, %v2629
    %vm2643 = vcmp.eq.s32.totalorder %v2625, %v2629
    %vm2644 = vcmp.eq.s32.totalorder %v2626, %v2629
    %vm2645 = vcmp.eq.s32.totalorder %v2627, %v2629
    %v2646 = vsel %vm2630, 0.0, %v2595
    %v2647 = vsel %vm2631, 0.0, %v2596
    %v2648 = vsel %vm2632, 0.0, %v2597
    %v2649 = vsel %vm2633, 0.0, %v2598
    %v2650 = vsel %vm2634, 0.0, %v2599
    %v2651 = vsel %vm2635, 0.0, %v2600
    %v2652 = vsel %vm2636, 0.0, %v2601
    %v2653 = vsel %vm2637, 0.0, %v2602
    %v2654 = vsel %vm2638, 0.0, %v2603
    %v2655 = vsel %vm2639, 0.0, %v2604
    %v2656 = vsel %vm2640, 0.0, %v2605
    %v2657 = vsel %vm2641, 0.0, %v2606
    %v2658 = vsel %vm2642, 0.0, %v2607
    %v2659 = vsel %vm2643, 0.0, %v2608
    %v2660 = vsel %vm2644, 0.0, %v2609
    %v2661 = vsel %vm2645, 0.0, %v2610
    %vm2662 = vcmp.gt.f32.partialorder %v2646, -inf
    %vm2663 = vcmp.gt.f32.partialorder %v2647, -inf
    %vm2664 = vcmp.gt.f32.partialorder %v2648, -inf
    %vm2665 = vcmp.gt.f32.partialorder %v2649, -inf
    %vm2666 = vcmp.gt.f32.partialorder %v2650, -inf
    %vm2667 = vcmp.gt.f32.partialorder %v2651, -inf
    %vm2668 = vcmp.gt.f32.partialorder %v2652, -inf
    %vm2669 = vcmp.gt.f32.partialorder %v2653, -inf
    %vm2670 = vcmp.gt.f32.partialorder %v2654, -inf
    %vm2671 = vcmp.gt.f32.partialorder %v2655, -inf
    %vm2672 = vcmp.gt.f32.partialorder %v2656, -inf
    %vm2673 = vcmp.gt.f32.partialorder %v2657, -inf
    %vm2674 = vcmp.gt.f32.partialorder %v2658, -inf
    %vm2675 = vcmp.gt.f32.partialorder %v2659, -inf
    %vm2676 = vcmp.gt.f32.partialorder %v2660, -inf
    %vm2677 = vcmp.gt.f32.partialorder %v2661, -inf
    %v2678 = vsel %vm2662, %v2646, inf
    %v2679 = vsel %vm2663, %v2647, inf
    %v2680 = vsel %vm2664, %v2648, inf
    %v2681 = vsel %vm2665, %v2649, inf
    %v2682 = vsel %vm2666, %v2650, inf
    %v2683 = vsel %vm2667, %v2651, inf
    %v2684 = vsel %vm2668, %v2652, inf
    %v2685 = vsel %vm2669, %v2653, inf
    %v2686 = vsel %vm2670, %v2654, inf
    %v2687 = vsel %vm2671, %v2655, inf
    %v2688 = vsel %vm2672, %v2656, inf
    %v2689 = vsel %vm2673, %v2657, inf
    %v2690 = vsel %vm2674, %v2658, inf
    %v2691 = vsel %vm2675, %v2659, inf
    %v2692 = vsel %vm2676, %v2660, inf
    %v2693 = vsel %vm2677, %v2661, inf
    %2694 = vmin.xlane.f32.xlu0 %v2678
    %v2695 = vpop.xlane.xlu0 %2694
    %2696 = vmin.xlane.f32.xlu0 %v2679
    %v2697 = vpop.xlane.xlu0 %2696
    %2698 = vmin.xlane.f32.xlu0 %v2680
    %v2699 = vpop.xlane.xlu0 %2698
    %2700 = vmin.xlane.f32.xlu0 %v2681
    %v2701 = vpop.xlane.xlu0 %2700
    %2702 = vmin.xlane.f32.xlu0 %v2682
    %v2703 = vpop.xlane.xlu0 %2702
    %2704 = vmin.xlane.f32.xlu0 %v2683
    %v2705 = vpop.xlane.xlu0 %2704
    %2706 = vmin.xlane.f32.xlu0 %v2684
    %v2707 = vpop.xlane.xlu0 %2706
    %2708 = vmin.xlane.f32.xlu0 %v2685
    %v2709 = vpop.xlane.xlu0 %2708
    %2710 = vmin.xlane.f32.xlu0 %v2686
    %v2711 = vpop.xlane.xlu0 %2710
    %2712 = vmin.xlane.f32.xlu0 %v2687
    %v2713 = vpop.xlane.xlu0 %2712
    %2714 = vmin.xlane.f32.xlu0 %v2688
    %v2715 = vpop.xlane.xlu0 %2714
    %2716 = vmin.xlane.f32.xlu0 %v2689
    %v2717 = vpop.xlane.xlu0 %2716
    %2718 = vmin.xlane.f32.xlu0 %v2690
    %v2719 = vpop.xlane.xlu0 %2718
    %2720 = vmin.xlane.f32.xlu0 %v2691
    %v2721 = vpop.xlane.xlu0 %2720
    %2722 = vmin.xlane.f32.xlu0 %v2692
    %v2723 = vpop.xlane.xlu0 %2722
    %2724 = vmin.xlane.f32.xlu0 %v2693
    %v2725 = vpop.xlane.xlu0 %2724
    %vm2726 = vcmp.lt.f32.partialorder 0.0, 5.0
    %v2727 = vsel %vm2726, %v2695, -inf
    %v2728 = vsel %vm2726, %v2697, -inf
    %v2729 = vsel %vm2726, %v2699, -inf
    %v2730 = vsel %vm2726, %v2701, -inf
    %v2731 = vsel %vm2726, %v2703, -inf
    %v2732 = vsel %vm2726, %v2705, -inf
    %v2733 = vsel %vm2726, %v2707, -inf
    %v2734 = vsel %vm2726, %v2709, -inf
    %v2735 = vsel %vm2726, %v2711, -inf
    %v2736 = vsel %vm2726, %v2713, -inf
    %v2737 = vsel %vm2726, %v2715, -inf
    %v2738 = vsel %vm2726, %v2717, -inf
    %v2739 = vsel %vm2726, %v2719, -inf
    %v2740 = vsel %vm2726, %v2721, -inf
    %v2741 = vsel %vm2726, %v2723, -inf
    %v2742 = vsel %vm2726, %v2725, -inf
    %vm2743 = vcmp.le.f32.partialorder %v2646, %v2695
    %vm2744 = vcmp.le.f32.partialorder %v2647, %v2697
    %vm2745 = vcmp.le.f32.partialorder %v2648, %v2699
    %vm2746 = vcmp.le.f32.partialorder %v2649, %v2701
    %vm2747 = vcmp.le.f32.partialorder %v2650, %v2703
    %vm2748 = vcmp.le.f32.partialorder %v2651, %v2705
    %vm2749 = vcmp.le.f32.partialorder %v2652, %v2707
    %vm2750 = vcmp.le.f32.partialorder %v2653, %v2709
    %vm2751 = vcmp.le.f32.partialorder %v2654, %v2711
    %vm2752 = vcmp.le.f32.partialorder %v2655, %v2713
    %vm2753 = vcmp.le.f32.partialorder %v2656, %v2715
    %vm2754 = vcmp.le.f32.partialorder %v2657, %v2717
    %vm2755 = vcmp.le.f32.partialorder %v2658, %v2719
    %vm2756 = vcmp.le.f32.partialorder %v2659, %v2721
    %vm2757 = vcmp.le.f32.partialorder %v2660, %v2723
    %vm2758 = vcmp.le.f32.partialorder %v2661, %v2725
    %v2759 = vsel %vm2743, 1, 0
    %v2760 = vsel %vm2744, 1, 0
    %v2761 = vsel %vm2745, 1, 0
    %v2762 = vsel %vm2746, 1, 0
    %v2763 = vsel %vm2747, 1, 0
    %v2764 = vsel %vm2748, 1, 0
    %v2765 = vsel %vm2749, 1, 0
    %v2766 = vsel %vm2750, 1, 0
    %v2767 = vsel %vm2751, 1, 0
    %v2768 = vsel %vm2752, 1, 0
    %v2769 = vsel %vm2753, 1, 0
    %v2770 = vsel %vm2754, 1, 0
    %v2771 = vsel %vm2755, 1, 0
    %v2772 = vsel %vm2756, 1, 0
    %v2773 = vsel %vm2757, 1, 0
    %v2774 = vsel %vm2758, 1, 0
    %v2775 = vcvt.s32.f32 %v2759
    %v2776 = vcvt.s32.f32 %v2760
    %v2777 = vcvt.s32.f32 %v2761
    %v2778 = vcvt.s32.f32 %v2762
    %v2779 = vcvt.s32.f32 %v2763
    %v2780 = vcvt.s32.f32 %v2764
    %v2781 = vcvt.s32.f32 %v2765
    %v2782 = vcvt.s32.f32 %v2766
    %v2783 = vcvt.s32.f32 %v2767
    %v2784 = vcvt.s32.f32 %v2768
    %v2785 = vcvt.s32.f32 %v2769
    %v2786 = vcvt.s32.f32 %v2770
    %v2787 = vcvt.s32.f32 %v2771
    %v2788 = vcvt.s32.f32 %v2772
    %v2789 = vcvt.s32.f32 %v2773
    %v2790 = vcvt.s32.f32 %v2774
    %2791 = vadd.xlane.f32.xlu0 %v2775
    %v2792 = vpop.xlane.xlu0 %2791
    %2793 = vadd.xlane.f32.xlu0 %v2776
    %v2794 = vpop.xlane.xlu0 %2793
    %2795 = vadd.xlane.f32.xlu0 %v2777
    %v2796 = vpop.xlane.xlu0 %2795
    %2797 = vadd.xlane.f32.xlu0 %v2778
    %v2798 = vpop.xlane.xlu0 %2797
    %2799 = vadd.xlane.f32.xlu0 %v2779
    %v2800 = vpop.xlane.xlu0 %2799
    %2801 = vadd.xlane.f32.xlu0 %v2780
    %v2802 = vpop.xlane.xlu0 %2801
    %2803 = vadd.xlane.f32.xlu0 %v2781
    %v2804 = vpop.xlane.xlu0 %2803
    %2805 = vadd.xlane.f32.xlu0 %v2782
    %v2806 = vpop.xlane.xlu0 %2805
    %2807 = vadd.xlane.f32.xlu0 %v2783
    %v2808 = vpop.xlane.xlu0 %2807
    %2809 = vadd.xlane.f32.xlu0 %v2784
    %v2810 = vpop.xlane.xlu0 %2809
    %2811 = vadd.xlane.f32.xlu0 %v2785
    %v2812 = vpop.xlane.xlu0 %2811
    %2813 = vadd.xlane.f32.xlu0 %v2786
    %v2814 = vpop.xlane.xlu0 %2813
    %2815 = vadd.xlane.f32.xlu0 %v2787
    %v2816 = vpop.xlane.xlu0 %2815
    %2817 = vadd.xlane.f32.xlu0 %v2788
    %v2818 = vpop.xlane.xlu0 %2817
    %2819 = vadd.xlane.f32.xlu0 %v2789
    %v2820 = vpop.xlane.xlu0 %2819
    %2821 = vadd.xlane.f32.xlu0 %v2790
    %v2822 = vpop.xlane.xlu0 %2821
    %v2823 = vsel %vm2726, %v2792, 0.0
    %v2824 = vsel %vm2726, %v2794, 0.0
    %v2825 = vsel %vm2726, %v2796, 0.0
    %v2826 = vsel %vm2726, %v2798, 0.0
    %v2827 = vsel %vm2726, %v2800, 0.0
    %v2828 = vsel %vm2726, %v2802, 0.0
    %v2829 = vsel %vm2726, %v2804, 0.0
    %v2830 = vsel %vm2726, %v2806, 0.0
    %v2831 = vsel %vm2726, %v2808, 0.0
    %v2832 = vsel %vm2726, %v2810, 0.0
    %v2833 = vsel %vm2726, %v2812, 0.0
    %v2834 = vsel %vm2726, %v2814, 0.0
    %v2835 = vsel %vm2726, %v2816, 0.0
    %v2836 = vsel %vm2726, %v2818, 0.0
    %v2837 = vsel %vm2726, %v2820, 0.0
    %v2838 = vsel %vm2726, %v2822, 0.0
    %vm2839 = vcmp.gt.f32.partialorder %v2646, %v2727
    %vm2840 = vcmp.gt.f32.partialorder %v2647, %v2728
    %vm2841 = vcmp.gt.f32.partialorder %v2648, %v2729
    %vm2842 = vcmp.gt.f32.partialorder %v2649, %v2730
    %vm2843 = vcmp.gt.f32.partialorder %v2650, %v2731
    %vm2844 = vcmp.gt.f32.partialorder %v2651, %v2732
    %vm2845 = vcmp.gt.f32.partialorder %v2652, %v2733
    %vm2846 = vcmp.gt.f32.partialorder %v2653, %v2734
    %vm2847 = vcmp.gt.f32.partialorder %v2654, %v2735
    %vm2848 = vcmp.gt.f32.partialorder %v2655, %v2736
    %vm2849 = vcmp.gt.f32.partialorder %v2656, %v2737
    %vm2850 = vcmp.gt.f32.partialorder %v2657, %v2738
    %vm2851 = vcmp.gt.f32.partialorder %v2658, %v2739
    %vm2852 = vcmp.gt.f32.partialorder %v2659, %v2740
    %vm2853 = vcmp.gt.f32.partialorder %v2660, %v2741
    %vm2854 = vcmp.gt.f32.partialorder %v2661, %v2742
    %v2855 = vsel %vm2839, %v2646, inf
    %v2856 = vsel %vm2840, %v2647, inf
    %v2857 = vsel %vm2841, %v2648, inf
    %v2858 = vsel %vm2842, %v2649, inf
    %v2859 = vsel %vm2843, %v2650, inf
    %v2860 = vsel %vm2844, %v2651, inf
    %v2861 = vsel %vm2845, %v2652, inf
    %v2862 = vsel %vm2846, %v2653, inf
    %v2863 = vsel %vm2847, %v2654, inf
    %v2864 = vsel %vm2848, %v2655, inf
    %v2865 = vsel %vm2849, %v2656, inf
    %v2866 = vsel %vm2850, %v2657, inf
    %v2867 = vsel %vm2851, %v2658, inf
    %v2868 = vsel %vm2852, %v2659, inf
    %v2869 = vsel %vm2853, %v2660, inf
    %v2870 = vsel %vm2854, %v2661, inf
    %2871 = vmin.xlane.f32.xlu0 %v2855
    %v2872 = vpop.xlane.xlu0 %2871
    %2873 = vmin.xlane.f32.xlu0 %v2856
    %v2874 = vpop.xlane.xlu0 %2873
    %2875 = vmin.xlane.f32.xlu0 %v2857
    %v2876 = vpop.xlane.xlu0 %2875
    %2877 = vmin.xlane.f32.xlu0 %v2858
    %v2878 = vpop.xlane.xlu0 %2877
    %2879 = vmin.xlane.f32.xlu0 %v2859
    %v2880 = vpop.xlane.xlu0 %2879
    %2881 = vmin.xlane.f32.xlu0 %v2860
    %v2882 = vpop.xlane.xlu0 %2881
    %2883 = vmin.xlane.f32.xlu0 %v2861
    %v2884 = vpop.xlane.xlu0 %2883
    %2885 = vmin.xlane.f32.xlu0 %v2862
    %v2886 = vpop.xlane.xlu0 %2885
    %2887 = vmin.xlane.f32.xlu0 %v2863
    %v2888 = vpop.xlane.xlu0 %2887
    %2889 = vmin.xlane.f32.xlu0 %v2864
    %v2890 = vpop.xlane.xlu0 %2889
    %2891 = vmin.xlane.f32.xlu0 %v2865
    %v2892 = vpop.xlane.xlu0 %2891
    %2893 = vmin.xlane.f32.xlu0 %v2866
    %v2894 = vpop.xlane.xlu0 %2893
    %2895 = vmin.xlane.f32.xlu0 %v2867
    %v2896 = vpop.xlane.xlu0 %2895
    %2897 = vmin.xlane.f32.xlu0 %v2868
    %v2898 = vpop.xlane.xlu0 %2897
    %2899 = vmin.xlane.f32.xlu0 %v2869
    %v2900 = vpop.xlane.xlu0 %2899
    %2901 = vmin.xlane.f32.xlu0 %v2870
    %v2902 = vpop.xlane.xlu0 %2901
    %vm2903 = vcmp.lt.f32.partialorder %v2823, 5.0
    %vm2904 = vcmp.lt.f32.partialorder %v2824, 5.0
    %vm2905 = vcmp.lt.f32.partialorder %v2825, 5.0
    %vm2906 = vcmp.lt.f32.partialorder %v2826, 5.0
    %vm2907 = vcmp.lt.f32.partialorder %v2827, 5.0
    %vm2908 = vcmp.lt.f32.partialorder %v2828, 5.0
    %vm2909 = vcmp.lt.f32.partialorder %v2829, 5.0
    %vm2910 = vcmp.lt.f32.partialorder %v2830, 5.0
    %vm2911 = vcmp.lt.f32.partialorder %v2831, 5.0
    %vm2912 = vcmp.lt.f32.partialorder %v2832, 5.0
    %vm2913 = vcmp.lt.f32.partialorder %v2833, 5.0
    %vm2914 = vcmp.lt.f32.partialorder %v2834, 5.0
    %vm2915 = vcmp.lt.f32.partialorder %v2835, 5.0
    %vm2916 = vcmp.lt.f32.partialorder %v2836, 5.0
    %vm2917 = vcmp.lt.f32.partialorder %v2837, 5.0
    %vm2918 = vcmp.lt.f32.partialorder %v2838, 5.0
    %v2919 = vsel %vm2903, %v2872, %v2727
    %v2920 = vsel %vm2904, %v2874, %v2728
    %v2921 = vsel %vm2905, %v2876, %v2729
    %v2922 = vsel %vm2906, %v2878, %v2730
    %v2923 = vsel %vm2907, %v2880, %v2731
    %v2924 = vsel %vm2908, %v2882, %v2732
    %v2925 = vsel %vm2909, %v2884, %v2733
    %v2926 = vsel %vm2910, %v2886, %v2734
    %v2927 = vsel %vm2911, %v2888, %v2735
    %v2928 = vsel %vm2912, %v2890, %v2736
    %v2929 = vsel %vm2913, %v2892, %v2737
    %v2930 = vsel %vm2914, %v2894, %v2738
    %v2931 = vsel %vm2915, %v2896, %v2739
    %v2932 = vsel %vm2916, %v2898, %v2740
    %v2933 = vsel %vm2917, %v2900, %v2741
    %v2934 = vsel %vm2918, %v2902, %v2742
    %vm2935 = vcmp.le.f32.partialorder %v2646, %v2872
    %vm2936 = vcmp.le.f32.partialorder %v2647, %v2874
    %vm2937 = vcmp.le.f32.partialorder %v2648, %v2876
    %vm2938 = vcmp.le.f32.partialorder %v2649, %v2878
    %vm2939 = vcmp.le.f32.partialorder %v2650, %v2880
    %vm2940 = vcmp.le.f32.partialorder %v2651, %v2882
    %vm2941 = vcmp.le.f32.partialorder %v2652, %v2884
    %vm2942 = vcmp.le.f32.partialorder %v2653, %v2886
    %vm2943 = vcmp.le.f32.partialorder %v2654, %v2888
    %vm2944 = vcmp.le.f32.partialorder %v2655, %v2890
    %vm2945 = vcmp.le.f32.partialorder %v2656, %v2892
    %vm2946 = vcmp.le.f32.partialorder %v2657, %v2894
    %vm2947 = vcmp.le.f32.partialorder %v2658, %v2896
    %vm2948 = vcmp.le.f32.partialorder %v2659, %v2898
    %vm2949 = vcmp.le.f32.partialorder %v2660, %v2900
    %vm2950 = vcmp.le.f32.partialorder %v2661, %v2902
    %v2951 = vsel %vm2935, 1, 0
    %v2952 = vsel %vm2936, 1, 0
    %v2953 = vsel %vm2937, 1, 0
    %v2954 = vsel %vm2938, 1, 0
    %v2955 = vsel %vm2939, 1, 0
    %v2956 = vsel %vm2940, 1, 0
    %v2957 = vsel %vm2941, 1, 0
    %v2958 = vsel %vm2942, 1, 0
    %v2959 = vsel %vm2943, 1, 0
    %v2960 = vsel %vm2944, 1, 0
    %v2961 = vsel %vm2945, 1, 0
    %v2962 = vsel %vm2946, 1, 0
    %v2963 = vsel %vm2947, 1, 0
    %v2964 = vsel %vm2948, 1, 0
    %v2965 = vsel %vm2949, 1, 0
    %v2966 = vsel %vm2950, 1, 0
    %v2967 = vcvt.s32.f32 %v2951
    %v2968 = vcvt.s32.f32 %v2952
    %v2969 = vcvt.s32.f32 %v2953
    %v2970 = vcvt.s32.f32 %v2954
    %v2971 = vcvt.s32.f32 %v2955
    %v2972 = vcvt.s32.f32 %v2956
    %v2973 = vcvt.s32.f32 %v2957
    %v2974 = vcvt.s32.f32 %v2958
    %v2975 = vcvt.s32.f32 %v2959
    %v2976 = vcvt.s32.f32 %v2960
    %v2977 = vcvt.s32.f32 %v2961
    %v2978 = vcvt.s32.f32 %v2962
    %v2979 = vcvt.s32.f32 %v2963
    %v2980 = vcvt.s32.f32 %v2964
    %v2981 = vcvt.s32.f32 %v2965
    %v2982 = vcvt.s32.f32 %v2966
    %2983 = vadd.xlane.f32.xlu0 %v2967
    %v2984 = vpop.xlane.xlu0 %2983
    %2985 = vadd.xlane.f32.xlu0 %v2968
    %v2986 = vpop.xlane.xlu0 %2985
    %2987 = vadd.xlane.f32.xlu0 %v2969
    %v2988 = vpop.xlane.xlu0 %2987
    %2989 = vadd.xlane.f32.xlu0 %v2970
    %v2990 = vpop.xlane.xlu0 %2989
    %2991 = vadd.xlane.f32.xlu0 %v2971
    %v2992 = vpop.xlane.xlu0 %2991
    %2993 = vadd.xlane.f32.xlu0 %v2972
    %v2994 = vpop.xlane.xlu0 %2993
    %2995 = vadd.xlane.f32.xlu0 %v2973
    %v2996 = vpop.xlane.xlu0 %2995
    %2997 = vadd.xlane.f32.xlu0 %v2974
    %v2998 = vpop.xlane.xlu0 %2997
    %2999 = vadd.xlane.f32.xlu0 %v2975
    %v3000 = vpop.xlane.xlu0 %2999
    %3001 = vadd.xlane.f32.xlu0 %v2976
    %v3002 = vpop.xlane.xlu0 %3001
    %3003 = vadd.xlane.f32.xlu0 %v2977
    %v3004 = vpop.xlane.xlu0 %3003
    %3005 = vadd.xlane.f32.xlu0 %v2978
    %v3006 = vpop.xlane.xlu0 %3005
    %3007 = vadd.xlane.f32.xlu0 %v2979
    %v3008 = vpop.xlane.xlu0 %3007
    %3009 = vadd.xlane.f32.xlu0 %v2980
    %v3010 = vpop.xlane.xlu0 %3009
    %3011 = vadd.xlane.f32.xlu0 %v2981
    %v3012 = vpop.xlane.xlu0 %3011
    %3013 = vadd.xlane.f32.xlu0 %v2982
    %v3014 = vpop.xlane.xlu0 %3013
    %v3015 = vsel %vm2903, %v2984, %v2823
    %v3016 = vsel %vm2904, %v2986, %v2824
    %v3017 = vsel %vm2905, %v2988, %v2825
    %v3018 = vsel %vm2906, %v2990, %v2826
    %v3019 = vsel %vm2907, %v2992, %v2827
    %v3020 = vsel %vm2908, %v2994, %v2828
    %v3021 = vsel %vm2909, %v2996, %v2829
    %v3022 = vsel %vm2910, %v2998, %v2830
    %v3023 = vsel %vm2911, %v3000, %v2831
    %v3024 = vsel %vm2912, %v3002, %v2832
    %v3025 = vsel %vm2913, %v3004, %v2833
    %v3026 = vsel %vm2914, %v3006, %v2834
    %v3027 = vsel %vm2915, %v3008, %v2835
    %v3028 = vsel %vm2916, %v3010, %v2836
    %v3029 = vsel %vm2917, %v3012, %v2837
    %v3030 = vsel %vm2918, %v3014, %v2838
    %vm3031 = vcmp.gt.f32.partialorder %v2646, %v2919
    %vm3032 = vcmp.gt.f32.partialorder %v2647, %v2920
    %vm3033 = vcmp.gt.f32.partialorder %v2648, %v2921
    %vm3034 = vcmp.gt.f32.partialorder %v2649, %v2922
    %vm3035 = vcmp.gt.f32.partialorder %v2650, %v2923
    %vm3036 = vcmp.gt.f32.partialorder %v2651, %v2924
    %vm3037 = vcmp.gt.f32.partialorder %v2652, %v2925
    %vm3038 = vcmp.gt.f32.partialorder %v2653, %v2926
    %vm3039 = vcmp.gt.f32.partialorder %v2654, %v2927
    %vm3040 = vcmp.gt.f32.partialorder %v2655, %v2928
    %vm3041 = vcmp.gt.f32.partialorder %v2656, %v2929
    %vm3042 = vcmp.gt.f32.partialorder %v2657, %v2930
    %vm3043 = vcmp.gt.f32.partialorder %v2658, %v2931
    %vm3044 = vcmp.gt.f32.partialorder %v2659, %v2932
    %vm3045 = vcmp.gt.f32.partialorder %v2660, %v2933
    %vm3046 = vcmp.gt.f32.partialorder %v2661, %v2934
    %v3047 = vsel %vm3031, %v2646, inf
    %v3048 = vsel %vm3032, %v2647, inf
    %v3049 = vsel %vm3033, %v2648, inf
    %v3050 = vsel %vm3034, %v2649, inf
    %v3051 = vsel %vm3035, %v2650, inf
    %v3052 = vsel %vm3036, %v2651, inf
    %v3053 = vsel %vm3037, %v2652, inf
    %v3054 = vsel %vm3038, %v2653, inf
    %v3055 = vsel %vm3039, %v2654, inf
    %v3056 = vsel %vm3040, %v2655, inf
    %v3057 = vsel %vm3041, %v2656, inf
    %v3058 = vsel %vm3042, %v2657, inf
    %v3059 = vsel %vm3043, %v2658, inf
    %v3060 = vsel %vm3044, %v2659, inf
    %v3061 = vsel %vm3045, %v2660, inf
    %v3062 = vsel %vm3046, %v2661, inf
    %3063 = vmin.xlane.f32.xlu0 %v3047
    %v3064 = vpop.xlane.xlu0 %3063
    %3065 = vmin.xlane.f32.xlu0 %v3048
    %v3066 = vpop.xlane.xlu0 %3065
    %3067 = vmin.xlane.f32.xlu0 %v3049
    %v3068 = vpop.xlane.xlu0 %3067
    %3069 = vmin.xlane.f32.xlu0 %v3050
    %v3070 = vpop.xlane.xlu0 %3069
    %3071 = vmin.xlane.f32.xlu0 %v3051
    %v3072 = vpop.xlane.xlu0 %3071
    %3073 = vmin.xlane.f32.xlu0 %v3052
    %v3074 = vpop.xlane.xlu0 %3073
    %3075 = vmin.xlane.f32.xlu0 %v3053
    %v3076 = vpop.xlane.xlu0 %3075
    %3077 = vmin.xlane.f32.xlu0 %v3054
    %v3078 = vpop.xlane.xlu0 %3077
    %3079 = vmin.xlane.f32.xlu0 %v3055
    %v3080 = vpop.xlane.xlu0 %3079
    %3081 = vmin.xlane.f32.xlu0 %v3056
    %v3082 = vpop.xlane.xlu0 %3081
    %3083 = vmin.xlane.f32.xlu0 %v3057
    %v3084 = vpop.xlane.xlu0 %3083
    %3085 = vmin.xlane.f32.xlu0 %v3058
    %v3086 = vpop.xlane.xlu0 %3085
    %3087 = vmin.xlane.f32.xlu0 %v3059
    %v3088 = vpop.xlane.xlu0 %3087
    %3089 = vmin.xlane.f32.xlu0 %v3060
    %v3090 = vpop.xlane.xlu0 %3089
    %3091 = vmin.xlane.f32.xlu0 %v3061
    %v3092 = vpop.xlane.xlu0 %3091
    %3093 = vmin.xlane.f32.xlu0 %v3062
    %v3094 = vpop.xlane.xlu0 %3093
    %vm3095 = vcmp.lt.f32.partialorder %v3015, 5.0
    %vm3096 = vcmp.lt.f32.partialorder %v3016, 5.0
    %vm3097 = vcmp.lt.f32.partialorder %v3017, 5.0
    %vm3098 = vcmp.lt.f32.partialorder %v3018, 5.0
    %vm3099 = vcmp.lt.f32.partialorder %v3019, 5.0
    %vm3100 = vcmp.lt.f32.partialorder %v3020, 5.0
    %vm3101 = vcmp.lt.f32.partialorder %v3021, 5.0
    %vm3102 = vcmp.lt.f32.partialorder %v3022, 5.0
    %vm3103 = vcmp.lt.f32.partialorder %v3023, 5.0
    %vm3104 = vcmp.lt.f32.partialorder %v3024, 5.0
    %vm3105 = vcmp.lt.f32.partialorder %v3025, 5.0
    %vm3106 = vcmp.lt.f32.partialorder %v3026, 5.0
    %vm3107 = vcmp.lt.f32.partialorder %v3027, 5.0
    %vm3108 = vcmp.lt.f32.partialorder %v3028, 5.0
    %vm3109 = vcmp.lt.f32.partialorder %v3029, 5.0
    %vm3110 = vcmp.lt.f32.partialorder %v3030, 5.0
    %v3111 = vsel %vm3095, %v3064, %v2919
    %v3112 = vsel %vm3096, %v3066, %v2920
    %v3113 = vsel %vm3097, %v3068, %v2921
    %v3114 = vsel %vm3098, %v3070, %v2922
    %v3115 = vsel %vm3099, %v3072, %v2923
    %v3116 = vsel %vm3100, %v3074, %v2924
    %v3117 = vsel %vm3101, %v3076, %v2925
    %v3118 = vsel %vm3102, %v3078, %v2926
    %v3119 = vsel %vm3103, %v3080, %v2927
    %v3120 = vsel %vm3104, %v3082, %v2928
    %v3121 = vsel %vm3105, %v3084, %v2929
    %v3122 = vsel %vm3106, %v3086, %v2930
    %v3123 = vsel %vm3107, %v3088, %v2931
    %v3124 = vsel %vm3108, %v3090, %v2932
    %v3125 = vsel %vm3109, %v3092, %v2933
    %v3126 = vsel %vm3110, %v3094, %v2934
    %vm3127 = vcmp.le.f32.partialorder %v2646, %v3064
    %vm3128 = vcmp.le.f32.partialorder %v2647, %v3066
    %vm3129 = vcmp.le.f32.partialorder %v2648, %v3068
    %vm3130 = vcmp.le.f32.partialorder %v2649, %v3070
    %vm3131 = vcmp.le.f32.partialorder %v2650, %v3072
    %vm3132 = vcmp.le.f32.partialorder %v2651, %v3074
    %vm3133 = vcmp.le.f32.partialorder %v2652, %v3076
    %vm3134 = vcmp.le.f32.partialorder %v2653, %v3078
    %vm3135 = vcmp.le.f32.partialorder %v2654, %v3080
    %vm3136 = vcmp.le.f32.partialorder %v2655, %v3082
    %vm3137 = vcmp.le.f32.partialorder %v2656, %v3084
    %vm3138 = vcmp.le.f32.partialorder %v2657, %v3086
    %vm3139 = vcmp.le.f32.partialorder %v2658, %v3088
    %vm3140 = vcmp.le.f32.partialorder %v2659, %v3090
    %vm3141 = vcmp.le.f32.partialorder %v2660, %v3092
    %vm3142 = vcmp.le.f32.partialorder %v2661, %v3094
    %v3143 = vsel %vm3127, 1, 0
    %v3144 = vsel %vm3128, 1, 0
    %v3145 = vsel %vm3129, 1, 0
    %v3146 = vsel %vm3130, 1, 0
    %v3147 = vsel %vm3131, 1, 0
    %v3148 = vsel %vm3132, 1, 0
    %v3149 = vsel %vm3133, 1, 0
    %v3150 = vsel %vm3134, 1, 0
    %v3151 = vsel %vm3135, 1, 0
    %v3152 = vsel %vm3136, 1, 0
    %v3153 = vsel %vm3137, 1, 0
    %v3154 = vsel %vm3138, 1, 0
    %v3155 = vsel %vm3139, 1, 0
    %v3156 = vsel %vm3140, 1, 0
    %v3157 = vsel %vm3141, 1, 0
    %v3158 = vsel %vm3142, 1, 0
    %v3159 = vcvt.s32.f32 %v3143
    %v3160 = vcvt.s32.f32 %v3144
    %v3161 = vcvt.s32.f32 %v3145
    %v3162 = vcvt.s32.f32 %v3146
    %v3163 = vcvt.s32.f32 %v3147
    %v3164 = vcvt.s32.f32 %v3148
    %v3165 = vcvt.s32.f32 %v3149
    %v3166 = vcvt.s32.f32 %v3150
    %v3167 = vcvt.s32.f32 %v3151
    %v3168 = vcvt.s32.f32 %v3152
    %v3169 = vcvt.s32.f32 %v3153
    %v3170 = vcvt.s32.f32 %v3154
    %v3171 = vcvt.s32.f32 %v3155
    %v3172 = vcvt.s32.f32 %v3156
    %v3173 = vcvt.s32.f32 %v3157
    %v3174 = vcvt.s32.f32 %v3158
    %3175 = vadd.xlane.f32.xlu0 %v3159
    %v3176 = vpop.xlane.xlu0 %3175
    %3177 = vadd.xlane.f32.xlu0 %v3160
    %v3178 = vpop.xlane.xlu0 %3177
    %3179 = vadd.xlane.f32.xlu0 %v3161
    %v3180 = vpop.xlane.xlu0 %3179
    %3181 = vadd.xlane.f32.xlu0 %v3162
    %v3182 = vpop.xlane.xlu0 %3181
    %3183 = vadd.xlane.f32.xlu0 %v3163
    %v3184 = vpop.xlane.xlu0 %3183
    %3185 = vadd.xlane.f32.xlu0 %v3164
    %v3186 = vpop.xlane.xlu0 %3185
    %3187 = vadd.xlane.f32.xlu0 %v3165
    %v3188 = vpop.xlane.xlu0 %3187
    %3189 = vadd.xlane.f32.xlu0 %v3166
    %v3190 = vpop.xlane.xlu0 %3189
    %3191 = vadd.xlane.f32.xlu0 %v3167
    %v3192 = vpop.xlane.xlu0 %3191
    %3193 = vadd.xlane.f32.xlu0 %v3168
    %v3194 = vpop.xlane.xlu0 %3193
    %3195 = vadd.xlane.f32.xlu0 %v3169
    %v3196 = vpop.xlane.xlu0 %3195
    %3197 = vadd.xlane.f32.xlu0 %v3170
    %v3198 = vpop.xlane.xlu0 %3197
    %3199 = vadd.xlane.f32.xlu0 %v3171
    %v3200 = vpop.xlane.xlu0 %3199
    %3201 = vadd.xlane.f32.xlu0 %v3172
    %v3202 = vpop.xlane.xlu0 %3201
    %3203 = vadd.xlane.f32.xlu0 %v3173
    %v3204 = vpop.xlane.xlu0 %3203
    %3205 = vadd.xlane.f32.xlu0 %v3174
    %v3206 = vpop.xlane.xlu0 %3205
    %v3207 = vsel %vm3095, %v3176, %v3015
    %v3208 = vsel %vm3096, %v3178, %v3016
    %v3209 = vsel %vm3097, %v3180, %v3017
    %v3210 = vsel %vm3098, %v3182, %v3018
    %v3211 = vsel %vm3099, %v3184, %v3019
    %v3212 = vsel %vm3100, %v3186, %v3020
    %v3213 = vsel %vm3101, %v3188, %v3021
    %v3214 = vsel %vm3102, %v3190, %v3022
    %v3215 = vsel %vm3103, %v3192, %v3023
    %v3216 = vsel %vm3104, %v3194, %v3024
    %v3217 = vsel %vm3105, %v3196, %v3025
    %v3218 = vsel %vm3106, %v3198, %v3026
    %v3219 = vsel %vm3107, %v3200, %v3027
    %v3220 = vsel %vm3108, %v3202, %v3028
    %v3221 = vsel %vm3109, %v3204, %v3029
    %v3222 = vsel %vm3110, %v3206, %v3030
    %vm3223 = vcmp.gt.f32.partialorder %v2646, %v3111
    %vm3224 = vcmp.gt.f32.partialorder %v2647, %v3112
    %vm3225 = vcmp.gt.f32.partialorder %v2648, %v3113
    %vm3226 = vcmp.gt.f32.partialorder %v2649, %v3114
    %vm3227 = vcmp.gt.f32.partialorder %v2650, %v3115
    %vm3228 = vcmp.gt.f32.partialorder %v2651, %v3116
    %vm3229 = vcmp.gt.f32.partialorder %v2652, %v3117
    %vm3230 = vcmp.gt.f32.partialorder %v2653, %v3118
    %vm3231 = vcmp.gt.f32.partialorder %v2654, %v3119
    %vm3232 = vcmp.gt.f32.partialorder %v2655, %v3120
    %vm3233 = vcmp.gt.f32.partialorder %v2656, %v3121
    %vm3234 = vcmp.gt.f32.partialorder %v2657, %v3122
    %vm3235 = vcmp.gt.f32.partialorder %v2658, %v3123
    %vm3236 = vcmp.gt.f32.partialorder %v2659, %v3124
    %vm3237 = vcmp.gt.f32.partialorder %v2660, %v3125
    %vm3238 = vcmp.gt.f32.partialorder %v2661, %v3126
    %v3239 = vsel %vm3223, %v2646, inf
    %v3240 = vsel %vm3224, %v2647, inf
    %v3241 = vsel %vm3225, %v2648, inf
    %v3242 = vsel %vm3226, %v2649, inf
    %v3243 = vsel %vm3227, %v2650, inf
    %v3244 = vsel %vm3228, %v2651, inf
    %v3245 = vsel %vm3229, %v2652, inf
    %v3246 = vsel %vm3230, %v2653, inf
    %v3247 = vsel %vm3231, %v2654, inf
    %v3248 = vsel %vm3232, %v2655, inf
    %v3249 = vsel %vm3233, %v2656, inf
    %v3250 = vsel %vm3234, %v2657, inf
    %v3251 = vsel %vm3235, %v2658, inf
    %v3252 = vsel %vm3236, %v2659, inf
    %v3253 = vsel %vm3237, %v2660, inf
    %v3254 = vsel %vm3238, %v2661, inf
    %3255 = vmin.xlane.f32.xlu0 %v3239
    %v3256 = vpop.xlane.xlu0 %3255
    %3257 = vmin.xlane.f32.xlu0 %v3240
    %v3258 = vpop.xlane.xlu0 %3257
    %3259 = vmin.xlane.f32.xlu0 %v3241
    %v3260 = vpop.xlane.xlu0 %3259
    %3261 = vmin.xlane.f32.xlu0 %v3242
    %v3262 = vpop.xlane.xlu0 %3261
    %3263 = vmin.xlane.f32.xlu0 %v3243
    %v3264 = vpop.xlane.xlu0 %3263
    %3265 = vmin.xlane.f32.xlu0 %v3244
    %v3266 = vpop.xlane.xlu0 %3265
    %3267 = vmin.xlane.f32.xlu0 %v3245
    %v3268 = vpop.xlane.xlu0 %3267
    %3269 = vmin.xlane.f32.xlu0 %v3246
    %v3270 = vpop.xlane.xlu0 %3269
    %3271 = vmin.xlane.f32.xlu0 %v3247
    %v3272 = vpop.xlane.xlu0 %3271
    %3273 = vmin.xlane.f32.xlu0 %v3248
    %v3274 = vpop.xlane.xlu0 %3273
    %3275 = vmin.xlane.f32.xlu0 %v3249
    %v3276 = vpop.xlane.xlu0 %3275
    %3277 = vmin.xlane.f32.xlu0 %v3250
    %v3278 = vpop.xlane.xlu0 %3277
    %3279 = vmin.xlane.f32.xlu0 %v3251
    %v3280 = vpop.xlane.xlu0 %3279
    %3281 = vmin.xlane.f32.xlu0 %v3252
    %v3282 = vpop.xlane.xlu0 %3281
    %3283 = vmin.xlane.f32.xlu0 %v3253
    %v3284 = vpop.xlane.xlu0 %3283
    %3285 = vmin.xlane.f32.xlu0 %v3254
    %v3286 = vpop.xlane.xlu0 %3285
    %vm3287 = vcmp.lt.f32.partialorder %v3207, 5.0
    %vm3288 = vcmp.lt.f32.partialorder %v3208, 5.0
    %vm3289 = vcmp.lt.f32.partialorder %v3209, 5.0
    %vm3290 = vcmp.lt.f32.partialorder %v3210, 5.0
    %vm3291 = vcmp.lt.f32.partialorder %v3211, 5.0
    %vm3292 = vcmp.lt.f32.partialorder %v3212, 5.0
    %vm3293 = vcmp.lt.f32.partialorder %v3213, 5.0
    %vm3294 = vcmp.lt.f32.partialorder %v3214, 5.0
    %vm3295 = vcmp.lt.f32.partialorder %v3215, 5.0
    %vm3296 = vcmp.lt.f32.partialorder %v3216, 5.0
    %vm3297 = vcmp.lt.f32.partialorder %v3217, 5.0
    %vm3298 = vcmp.lt.f32.partialorder %v3218, 5.0
    %vm3299 = vcmp.lt.f32.partialorder %v3219, 5.0
    %vm3300 = vcmp.lt.f32.partialorder %v3220, 5.0
    %vm3301 = vcmp.lt.f32.partialorder %v3221, 5.0
    %vm3302 = vcmp.lt.f32.partialorder %v3222, 5.0
    %v3303 = vsel %vm3287, %v3256, %v3111
    %v3304 = vsel %vm3288, %v3258, %v3112
    %v3305 = vsel %vm3289, %v3260, %v3113
    %v3306 = vsel %vm3290, %v3262, %v3114
    %v3307 = vsel %vm3291, %v3264, %v3115
    %v3308 = vsel %vm3292, %v3266, %v3116
    %v3309 = vsel %vm3293, %v3268, %v3117
    %v3310 = vsel %vm3294, %v3270, %v3118
    %v3311 = vsel %vm3295, %v3272, %v3119
    %v3312 = vsel %vm3296, %v3274, %v3120
    %v3313 = vsel %vm3297, %v3276, %v3121
    %v3314 = vsel %vm3298, %v3278, %v3122
    %v3315 = vsel %vm3299, %v3280, %v3123
    %v3316 = vsel %vm3300, %v3282, %v3124
    %v3317 = vsel %vm3301, %v3284, %v3125
    %v3318 = vsel %vm3302, %v3286, %v3126
    %vm3319 = vcmp.le.f32.partialorder %v2646, %v3256
    %vm3320 = vcmp.le.f32.partialorder %v2647, %v3258
    %vm3321 = vcmp.le.f32.partialorder %v2648, %v3260
    %vm3322 = vcmp.le.f32.partialorder %v2649, %v3262
    %vm3323 = vcmp.le.f32.partialorder %v2650, %v3264
    %vm3324 = vcmp.le.f32.partialorder %v2651, %v3266
    %vm3325 = vcmp.le.f32.partialorder %v2652, %v3268
    %vm3326 = vcmp.le.f32.partialorder %v2653, %v3270
    %vm3327 = vcmp.le.f32.partialorder %v2654, %v3272
    %vm3328 = vcmp.le.f32.partialorder %v2655, %v3274
    %vm3329 = vcmp.le.f32.partialorder %v2656, %v3276
    %vm3330 = vcmp.le.f32.partialorder %v2657, %v3278
    %vm3331 = vcmp.le.f32.partialorder %v2658, %v3280
    %vm3332 = vcmp.le.f32.partialorder %v2659, %v3282
    %vm3333 = vcmp.le.f32.partialorder %v2660, %v3284
    %vm3334 = vcmp.le.f32.partialorder %v2661, %v3286
    %v3335 = vsel %vm3319, 1, 0
    %v3336 = vsel %vm3320, 1, 0
    %v3337 = vsel %vm3321, 1, 0
    %v3338 = vsel %vm3322, 1, 0
    %v3339 = vsel %vm3323, 1, 0
    %v3340 = vsel %vm3324, 1, 0
    %v3341 = vsel %vm3325, 1, 0
    %v3342 = vsel %vm3326, 1, 0
    %v3343 = vsel %vm3327, 1, 0
    %v3344 = vsel %vm3328, 1, 0
    %v3345 = vsel %vm3329, 1, 0
    %v3346 = vsel %vm3330, 1, 0
    %v3347 = vsel %vm3331, 1, 0
    %v3348 = vsel %vm3332, 1, 0
    %v3349 = vsel %vm3333, 1, 0
    %v3350 = vsel %vm3334, 1, 0
    %v3351 = vcvt.s32.f32 %v3335
    %v3352 = vcvt.s32.f32 %v3336
    %v3353 = vcvt.s32.f32 %v3337
    %v3354 = vcvt.s32.f32 %v3338
    %v3355 = vcvt.s32.f32 %v3339
    %v3356 = vcvt.s32.f32 %v3340
    %v3357 = vcvt.s32.f32 %v3341
    %v3358 = vcvt.s32.f32 %v3342
    %v3359 = vcvt.s32.f32 %v3343
    %v3360 = vcvt.s32.f32 %v3344
    %v3361 = vcvt.s32.f32 %v3345
    %v3362 = vcvt.s32.f32 %v3346
    %v3363 = vcvt.s32.f32 %v3347
    %v3364 = vcvt.s32.f32 %v3348
    %v3365 = vcvt.s32.f32 %v3349
    %v3366 = vcvt.s32.f32 %v3350
    %3367 = vadd.xlane.f32.xlu0 %v3351
    %v3368 = vpop.xlane.xlu0 %3367
    %3369 = vadd.xlane.f32.xlu0 %v3352
    %v3370 = vpop.xlane.xlu0 %3369
    %3371 = vadd.xlane.f32.xlu0 %v3353
    %v3372 = vpop.xlane.xlu0 %3371
    %3373 = vadd.xlane.f32.xlu0 %v3354
    %v3374 = vpop.xlane.xlu0 %3373
    %3375 = vadd.xlane.f32.xlu0 %v3355
    %v3376 = vpop.xlane.xlu0 %3375
    %3377 = vadd.xlane.f32.xlu0 %v3356
    %v3378 = vpop.xlane.xlu0 %3377
    %3379 = vadd.xlane.f32.xlu0 %v3357
    %v3380 = vpop.xlane.xlu0 %3379
    %3381 = vadd.xlane.f32.xlu0 %v3358
    %v3382 = vpop.xlane.xlu0 %3381
    %3383 = vadd.xlane.f32.xlu0 %v3359
    %v3384 = vpop.xlane.xlu0 %3383
    %3385 = vadd.xlane.f32.xlu0 %v3360
    %v3386 = vpop.xlane.xlu0 %3385
    %3387 = vadd.xlane.f32.xlu0 %v3361
    %v3388 = vpop.xlane.xlu0 %3387
    %3389 = vadd.xlane.f32.xlu0 %v3362
    %v3390 = vpop.xlane.xlu0 %3389
    %3391 = vadd.xlane.f32.xlu0 %v3363
    %v3392 = vpop.xlane.xlu0 %3391
    %3393 = vadd.xlane.f32.xlu0 %v3364
    %v3394 = vpop.xlane.xlu0 %3393
    %3395 = vadd.xlane.f32.xlu0 %v3365
    %v3396 = vpop.xlane.xlu0 %3395
    %3397 = vadd.xlane.f32.xlu0 %v3366
    %v3398 = vpop.xlane.xlu0 %3397
    %v3399 = vsel %vm3287, %v3368, %v3207
    %v3400 = vsel %vm3288, %v3370, %v3208
    %v3401 = vsel %vm3289, %v3372, %v3209
    %v3402 = vsel %vm3290, %v3374, %v3210
    %v3403 = vsel %vm3291, %v3376, %v3211
    %v3404 = vsel %vm3292, %v3378, %v3212
    %v3405 = vsel %vm3293, %v3380, %v3213
    %v3406 = vsel %vm3294, %v3382, %v3214
    %v3407 = vsel %vm3295, %v3384, %v3215
    %v3408 = vsel %vm3296, %v3386, %v3216
    %v3409 = vsel %vm3297, %v3388, %v3217
    %v3410 = vsel %vm3298, %v3390, %v3218
    %v3411 = vsel %vm3299, %v3392, %v3219
    %v3412 = vsel %vm3300, %v3394, %v3220
    %v3413 = vsel %vm3301, %v3396, %v3221
    %v3414 = vsel %vm3302, %v3398, %v3222
    %vm3415 = vcmp.gt.f32.partialorder %v2646, %v3303
    %vm3416 = vcmp.gt.f32.partialorder %v2647, %v3304
    %vm3417 = vcmp.gt.f32.partialorder %v2648, %v3305
    %vm3418 = vcmp.gt.f32.partialorder %v2649, %v3306
    %vm3419 = vcmp.gt.f32.partialorder %v2650, %v3307
    %vm3420 = vcmp.gt.f32.partialorder %v2651, %v3308
    %vm3421 = vcmp.gt.f32.partialorder %v2652, %v3309
    %vm3422 = vcmp.gt.f32.partialorder %v2653, %v3310
    %vm3423 = vcmp.gt.f32.partialorder %v2654, %v3311
    %vm3424 = vcmp.gt.f32.partialorder %v2655, %v3312
    %vm3425 = vcmp.gt.f32.partialorder %v2656, %v3313
    %vm3426 = vcmp.gt.f32.partialorder %v2657, %v3314
    %vm3427 = vcmp.gt.f32.partialorder %v2658, %v3315
    %vm3428 = vcmp.gt.f32.partialorder %v2659, %v3316
    %vm3429 = vcmp.gt.f32.partialorder %v2660, %v3317
    %vm3430 = vcmp.gt.f32.partialorder %v2661, %v3318
    %v3431 = vsel %vm3415, %v2646, inf
    %v3432 = vsel %vm3416, %v2647, inf
    %v3433 = vsel %vm3417, %v2648, inf
    %v3434 = vsel %vm3418, %v2649, inf
    %v3435 = vsel %vm3419, %v2650, inf
    %v3436 = vsel %vm3420, %v2651, inf
    %v3437 = vsel %vm3421, %v2652, inf
    %v3438 = vsel %vm3422, %v2653, inf
    %v3439 = vsel %vm3423, %v2654, inf
    %v3440 = vsel %vm3424, %v2655, inf
    %v3441 = vsel %vm3425, %v2656, inf
    %v3442 = vsel %vm3426, %v2657, inf
    %v3443 = vsel %vm3427, %v2658, inf
    %v3444 = vsel %vm3428, %v2659, inf
    %v3445 = vsel %vm3429, %v2660, inf
    %v3446 = vsel %vm3430, %v2661, inf
    %3447 = vmin.xlane.f32.xlu0 %v3431
    %v3448 = vpop.xlane.xlu0 %3447
    %3449 = vmin.xlane.f32.xlu0 %v3432
    %v3450 = vpop.xlane.xlu0 %3449
    %3451 = vmin.xlane.f32.xlu0 %v3433
    %v3452 = vpop.xlane.xlu0 %3451
    %3453 = vmin.xlane.f32.xlu0 %v3434
    %v3454 = vpop.xlane.xlu0 %3453
    %3455 = vmin.xlane.f32.xlu0 %v3435
    %v3456 = vpop.xlane.xlu0 %3455
    %3457 = vmin.xlane.f32.xlu0 %v3436
    %v3458 = vpop.xlane.xlu0 %3457
    %3459 = vmin.xlane.f32.xlu0 %v3437
    %v3460 = vpop.xlane.xlu0 %3459
    %3461 = vmin.xlane.f32.xlu0 %v3438
    %v3462 = vpop.xlane.xlu0 %3461
    %3463 = vmin.xlane.f32.xlu0 %v3439
    %v3464 = vpop.xlane.xlu0 %3463
    %3465 = vmin.xlane.f32.xlu0 %v3440
    %v3466 = vpop.xlane.xlu0 %3465
    %3467 = vmin.xlane.f32.xlu0 %v3441
    %v3468 = vpop.xlane.xlu0 %3467
    %3469 = vmin.xlane.f32.xlu0 %v3442
    %v3470 = vpop.xlane.xlu0 %3469
    %3471 = vmin.xlane.f32.xlu0 %v3443
    %v3472 = vpop.xlane.xlu0 %3471
    %3473 = vmin.xlane.f32.xlu0 %v3444
    %v3474 = vpop.xlane.xlu0 %3473
    %3475 = vmin.xlane.f32.xlu0 %v3445
    %v3476 = vpop.xlane.xlu0 %3475
    %3477 = vmin.xlane.f32.xlu0 %v3446
    %v3478 = vpop.xlane.xlu0 %3477
    %vm3479 = vcmp.lt.f32.partialorder %v3399, 5.0
    %vm3480 = vcmp.lt.f32.partialorder %v3400, 5.0
    %vm3481 = vcmp.lt.f32.partialorder %v3401, 5.0
    %vm3482 = vcmp.lt.f32.partialorder %v3402, 5.0
    %vm3483 = vcmp.lt.f32.partialorder %v3403, 5.0
    %vm3484 = vcmp.lt.f32.partialorder %v3404, 5.0
    %vm3485 = vcmp.lt.f32.partialorder %v3405, 5.0
    %vm3486 = vcmp.lt.f32.partialorder %v3406, 5.0
    %vm3487 = vcmp.lt.f32.partialorder %v3407, 5.0
    %vm3488 = vcmp.lt.f32.partialorder %v3408, 5.0
    %vm3489 = vcmp.lt.f32.partialorder %v3409, 5.0
    %vm3490 = vcmp.lt.f32.partialorder %v3410, 5.0
    %vm3491 = vcmp.lt.f32.partialorder %v3411, 5.0
    %vm3492 = vcmp.lt.f32.partialorder %v3412, 5.0
    %vm3493 = vcmp.lt.f32.partialorder %v3413, 5.0
    %vm3494 = vcmp.lt.f32.partialorder %v3414, 5.0
    %v3495 = vsel %vm3479, %v3448, %v3303
    %v3496 = vsel %vm3480, %v3450, %v3304
    %v3497 = vsel %vm3481, %v3452, %v3305
    %v3498 = vsel %vm3482, %v3454, %v3306
    %v3499 = vsel %vm3483, %v3456, %v3307
    %v3500 = vsel %vm3484, %v3458, %v3308
    %v3501 = vsel %vm3485, %v3460, %v3309
    %v3502 = vsel %vm3486, %v3462, %v3310
    %v3503 = vsel %vm3487, %v3464, %v3311
    %v3504 = vsel %vm3488, %v3466, %v3312
    %v3505 = vsel %vm3489, %v3468, %v3313
    %v3506 = vsel %vm3490, %v3470, %v3314
    %v3507 = vsel %vm3491, %v3472, %v3315
    %v3508 = vsel %vm3492, %v3474, %v3316
    %v3509 = vsel %vm3493, %v3476, %v3317
    %v3510 = vsel %vm3494, %v3478, %v3318
    %vm3511 = vcmp.le.f32.partialorder %v2646, %v3495
    %vm3512 = vcmp.le.f32.partialorder %v2647, %v3496
    %vm3513 = vcmp.le.f32.partialorder %v2648, %v3497
    %vm3514 = vcmp.le.f32.partialorder %v2649, %v3498
    %vm3515 = vcmp.le.f32.partialorder %v2650, %v3499
    %vm3516 = vcmp.le.f32.partialorder %v2651, %v3500
    %vm3517 = vcmp.le.f32.partialorder %v2652, %v3501
    %vm3518 = vcmp.le.f32.partialorder %v2653, %v3502
    %vm3519 = vcmp.le.f32.partialorder %v2654, %v3503
    %vm3520 = vcmp.le.f32.partialorder %v2655, %v3504
    %vm3521 = vcmp.le.f32.partialorder %v2656, %v3505
    %vm3522 = vcmp.le.f32.partialorder %v2657, %v3506
    %vm3523 = vcmp.le.f32.partialorder %v2658, %v3507
    %vm3524 = vcmp.le.f32.partialorder %v2659, %v3508
    %vm3525 = vcmp.le.f32.partialorder %v2660, %v3509
    %vm3526 = vcmp.le.f32.partialorder %v2661, %v3510
    %v3527 = vsel %vm3511, 1, 0
    %v3528 = vsel %vm3512, 1, 0
    %v3529 = vsel %vm3513, 1, 0
    %v3530 = vsel %vm3514, 1, 0
    %v3531 = vsel %vm3515, 1, 0
    %v3532 = vsel %vm3516, 1, 0
    %v3533 = vsel %vm3517, 1, 0
    %v3534 = vsel %vm3518, 1, 0
    %v3535 = vsel %vm3519, 1, 0
    %v3536 = vsel %vm3520, 1, 0
    %v3537 = vsel %vm3521, 1, 0
    %v3538 = vsel %vm3522, 1, 0
    %v3539 = vsel %vm3523, 1, 0
    %v3540 = vsel %vm3524, 1, 0
    %v3541 = vsel %vm3525, 1, 0
    %v3542 = vsel %vm3526, 1, 0
    %v3543 = vcvt.s32.f32 %v3527
    %v3544 = vcvt.s32.f32 %v3528
    %v3545 = vcvt.s32.f32 %v3529
    %v3546 = vcvt.s32.f32 %v3530
    %v3547 = vcvt.s32.f32 %v3531
    %v3548 = vcvt.s32.f32 %v3532
    %v3549 = vcvt.s32.f32 %v3533
    %v3550 = vcvt.s32.f32 %v3534
    %v3551 = vcvt.s32.f32 %v3535
    %v3552 = vcvt.s32.f32 %v3536
    %v3553 = vcvt.s32.f32 %v3537
    %v3554 = vcvt.s32.f32 %v3538
    %v3555 = vcvt.s32.f32 %v3539
    %v3556 = vcvt.s32.f32 %v3540
    %v3557 = vcvt.s32.f32 %v3541
    %v3558 = vcvt.s32.f32 %v3542
    %v3559 = vpack.c.bf16 %v3544, %v3543
    %v3560 = vpack.c.bf16 %v3546, %v3545
    %v3561 = vpack.c.bf16 %v3548, %v3547
    %v3562 = vpack.c.bf16 %v3550, %v3549
    %v3563 = vpack.c.bf16 %v3552, %v3551
    %v3564 = vpack.c.bf16 %v3554, %v3553
    %v3565 = vpack.c.bf16 %v3556, %v3555
    %v3566 = vpack.c.bf16 %v3558, %v3557
    %3567 = vmatprep.subr.bf16.mxu0 0
    %3568 = vmatpush1.bf16.xpose.msra.mxu0 %v3559
    %3569 = vmatprep.subr.bf16.mxu0 0
    %3570 = vmatpush1.bf16.xpose.msra.mxu0 %v3560
    %3571 = vmatprep.subr.bf16.mxu0 0
    %3572 = vmatpush1.bf16.xpose.msra.mxu0 %v3561
    %3573 = vmatprep.subr.bf16.mxu0 0
    %3574 = vmatpush1.bf16.xpose.msra.mxu0 %v3562
    %3575 = vmatprep.subr.bf16.mxu0 0
    %3576 = vmatpush1.bf16.xpose.msra.mxu0 %v3563
    %3577 = vmatprep.subr.bf16.mxu0 0
    %3578 = vmatpush1.bf16.xpose.msra.mxu0 %v3564
    %3579 = vmatprep.subr.bf16.mxu0 0
    %3580 = vmatpush1.bf16.xpose.msra.mxu0 %v3565
    %3581 = vmatprep.subr.bf16.mxu0 0
    %3582 = vmatpush1.bf16.xpose.msra.mxu0 %v3566
    %3583 = vmatprep.subr.bf16.mxu0 0
    %3584 = vmatpush1.bf16.xpose.msra.mxu0 0
    %3585 = vmatprep.subr.bf16.mxu0 0
    %3586 = vmatpush1.bf16.xpose.msra.mxu0 0
    %3587 = vmatprep.subr.bf16.mxu0 0
    %3588 = vmatpush1.bf16.xpose.msra.mxu0 0
    %3589 = vmatprep.subr.bf16.mxu0 0
    %3590 = vmatpush1.bf16.xpose.msra.mxu0 0
    %3591 = vmatprep.subr.bf16.mxu0 0
    %3592 = vmatpush1.bf16.xpose.msra.mxu0 0
    %3593 = vmatprep.subr.bf16.mxu0 0
    %3594 = vmatpush1.bf16.xpose.msra.mxu0 0
    %3595 = vmatprep.subr.bf16.mxu0 0
    %3596 = vmatpush1.bf16.xpose.msra.mxu0 0
    %3597 = vmatprep.subr.bf16.mxu0 0
    %3598 = vmatpush1.bf16.xpose.msra.mxu0 0
    %3599 = vmatprep.mubr.bf16.mxu0 0
    %3600 = vmatmul.mubr.bf16.gmra.mrb[0].mxu0 %v3559
    %v3601 = vpop.f32.mrb[0].mxu0
    %v3602 = vadd.f32 0.0, %v3601
    %v3603 = vpop.f32.mrb[0].mxu0
    %v3604 = vpop.f32.mrb[0].mxu0
    %v3605 = vadd.f32 0.0, %v3604
    %v3606 = vpop.f32.mrb[0].mxu0
    %3607 = vmatprep.mubr.bf16.mxu0 0
    %3608 = vmatmul.mubr.bf16.gmra.mrb[0].mxu0 %v3560
    %v3609 = vpop.f32.mrb[0].mxu0
    %v3610 = vadd.f32 0.0, %v3609
    %v3611 = vpop.f32.mrb[0].mxu0
    %v3612 = vpop.f32.mrb[0].mxu0
    %v3613 = vadd.f32 0.0, %v3612
    %v3614 = vpop.f32.mrb[0].mxu0
    %3615 = vmatprep.mubr.bf16.mxu0 0
    %3616 = vmatmul.mubr.bf16.gmra.mrb[0].mxu0 %v3561
    %v3617 = vpop.f32.mrb[0].mxu0
    %v3618 = vadd.f32 0.0, %v3617
    %v3619 = vpop.f32.mrb[0].mxu0
    %v3620 = vpop.f32.mrb[0].mxu0
    %v3621 = vadd.f32 0.0, %v3620
    %v3622 = vpop.f32.mrb[0].mxu0
    %3623 = vmatprep.mubr.bf16.mxu0 0
    %3624 = vmatmul.mubr.bf16.gmra.mrb[0].mxu0 %v3562
    %v3625 = vpop.f32.mrb[0].mxu0
    %v3626 = vadd.f32 0.0, %v3625
    %v3627 = vpop.f32.mrb[0].mxu0
    %v3628 = vpop.f32.mrb[0].mxu0
    %v3629 = vadd.f32 0.0, %v3628
    %v3630 = vpop.f32.mrb[0].mxu0
    %3631 = vmatprep.mubr.bf16.mxu0 0
    %3632 = vmatmul.mubr.bf16.gmra.mrb[0].mxu0 %v3563
    %v3633 = vpop.f32.mrb[0].mxu0
    %v3634 = vadd.f32 0.0, %v3633
    %v3635 = vpop.f32.mrb[0].mxu0
    %v3636 = vpop.f32.mrb[0].mxu0
    %v3637 = vadd.f32 0.0, %v3636
    %v3638 = vpop.f32.mrb[0].mxu0
    %3639 = vmatprep.mubr.bf16.mxu0 0
    %3640 = vmatmul.mubr.bf16.gmra.mrb[0].mxu0 %v3564
    %v3641 = vpop.f32.mrb[0].mxu0
    %v3642 = vadd.f32 0.0, %v3641
    %v3643 = vpop.f32.mrb[0].mxu0
    %v3644 = vpop.f32.mrb[0].mxu0
    %v3645 = vadd.f32 0.0, %v3644
    %v3646 = vpop.f32.mrb[0].mxu0
    %3647 = vmatprep.mubr.bf16.mxu0 0
    %3648 = vmatmul.mubr.bf16.gmra.mrb[0].mxu0 %v3565
    %v3649 = vpop.f32.mrb[0].mxu0
    %v3650 = vadd.f32 0.0, %v3649
    %v3651 = vpop.f32.mrb[0].mxu0
    %v3652 = vpop.f32.mrb[0].mxu0
    %v3653 = vadd.f32 0.0, %v3652
    %v3654 = vpop.f32.mrb[0].mxu0
    %3655 = vmatprep.mubr.bf16.mxu0 0
    %3656 = vmatmul.mubr.bf16.gmra.mrb[0].mxu0 %v3566
    %v3657 = vpop.f32.mrb[0].mxu0
    %v3658 = vadd.f32 0.0, %v3657
    %v3659 = vpop.f32.mrb[0].mxu0
    %v3660 = vpop.f32.mrb[0].mxu0
    %v3661 = vadd.f32 0.0, %v3660
    %v3662 = vpop.f32.mrb[0].mxu0
    %3663 = vdwg.mxu0
    %3664 = vadd.xlane.f32.xlu0 %v3543
    %v3665 = vpop.xlane.xlu0 %3664
    %3666 = vadd.xlane.f32.xlu0 %v3544
    %v3667 = vpop.xlane.xlu0 %3666
    %3668 = vadd.xlane.f32.xlu0 %v3545
    %v3669 = vpop.xlane.xlu0 %3668
    %3670 = vadd.xlane.f32.xlu0 %v3546
    %v3671 = vpop.xlane.xlu0 %3670
    %3672 = vadd.xlane.f32.xlu0 %v3547
    %v3673 = vpop.xlane.xlu0 %3672
    %3674 = vadd.xlane.f32.xlu0 %v3548
    %v3675 = vpop.xlane.xlu0 %3674
    %3676 = vadd.xlane.f32.xlu0 %v3549
    %v3677 = vpop.xlane.xlu0 %3676
    %3678 = vadd.xlane.f32.xlu0 %v3550
    %v3679 = vpop.xlane.xlu0 %3678
    %3680 = vadd.xlane.f32.xlu0 %v3551
    %v3681 = vpop.xlane.xlu0 %3680
    %3682 = vadd.xlane.f32.xlu0 %v3552
    %v3683 = vpop.xlane.xlu0 %3682
    %3684 = vadd.xlane.f32.xlu0 %v3553
    %v3685 = vpop.xlane.xlu0 %3684
    %3686 = vadd.xlane.f32.xlu0 %v3554
    %v3687 = vpop.xlane.xlu0 %3686
    %3688 = vadd.xlane.f32.xlu0 %v3555
    %v3689 = vpop.xlane.xlu0 %3688
    %3690 = vadd.xlane.f32.xlu0 %v3556
    %v3691 = vpop.xlane.xlu0 %3690
    %3692 = vadd.xlane.f32.xlu0 %v3557
    %v3693 = vpop.xlane.xlu0 %3692
    %3694 = vadd.xlane.f32.xlu0 %v3558
    %v3695 = vpop.xlane.xlu0 %3694
    %v3696 = vrcp.pop %v3665
    %v3697 = vrcp.pop %v3667
    %v3698 = vrcp.pop %v3669
    %v3699 = vrcp.pop %v3671
    %v3700 = vrcp.pop %v3673
    %v3701 = vrcp.pop %v3675
    %v3702 = vrcp.pop %v3677
    %v3703 = vrcp.pop %v3679
    %v3704 = vrcp.pop %v3681
    %v3705 = vrcp.pop %v3683
    %v3706 = vrcp.pop %v3685
    %v3707 = vrcp.pop %v3687
    %v3708 = vrcp.pop %v3689
    %v3709 = vrcp.pop %v3691
    %v3710 = vrcp.pop %v3693
    %v3711 = vrcp.pop %v3695
    %v3712 = vmul.f32 %v3602, %v3696
    %v3713 = vmul.f32 %v3605, %v3697
    %v3714 = vmul.f32 %v3610, %v3698
    %v3715 = vmul.f32 %v3613, %v3699
    %v3716 = vmul.f32 %v3618, %v3700
    %v3717 = vmul.f32 %v3621, %v3701
    %v3718 = vmul.f32 %v3626, %v3702
    %v3719 = vmul.f32 %v3629, %v3703
    %v3720 = vmul.f32 %v3634, %v3704
    %v3721 = vmul.f32 %v3637, %v3705
    %v3722 = vmul.f32 %v3642, %v3706
    %v3723 = vmul.f32 %v3645, %v3707
    %v3724 = vmul.f32 %v3650, %v3708
    %v3725 = vmul.f32 %v3653, %v3709
    %v3726 = vmul.f32 %v3658, %v3710
    %v3727 = vmul.f32 %v3661, %v3711
    %3728 = vxpose.xlu0.b32.start [1/16] %v3495, 128
    %3729 = vxpose.xlu0.b32.cont [2/16] %v3496, 128
    %3730 = vxpose.xlu0.b32.cont [3/16] %v3497, 128
    %3731 = vxpose.xlu0.b32.cont [4/16] %v3498, 128
    %3732 = vxpose.xlu0.b32.cont [5/16] %v3499, 128
    %3733 = vxpose.xlu0.b32.cont [6/16] %v3500, 128
    %3734 = vxpose.xlu0.b32.cont [7/16] %v3501, 128
    %3735 = vxpose.xlu0.b32.cont [8/16] %v3502, 128
    %3736 = vxpose.xlu0.b32.cont [9/16] %v3503, 128
    %3737 = vxpose.xlu0.b32.cont [10/16] %v3504, 128
    %3738 = vxpose.xlu0.b32.cont [11/16] %v3505, 128
    %3739 = vxpose.xlu0.b32.cont [12/16] %v3506, 128
    %3740 = vxpose.xlu0.b32.cont [13/16] %v3507, 128
    %3741 = vxpose.xlu0.b32.cont [14/16] %v3508, 128
    %3742 = vxpose.xlu0.b32.cont [15/16] %v3509, 128
    %3743 = vxpose.xlu0.b32.end [16/16] %v3510, 128
    %v3744 = vpop.trf.xlu0
    %v3745 = vpop.trf.xlu0
    %v3746 = vpop.trf.xlu0
    %v3747 = vpop.trf.xlu0
    %v3748 = vpop.trf.xlu0
    %v3749 = vpop.trf.xlu0
    %v3750 = vpop.trf.xlu0
    %v3751 = vpop.trf.xlu0
    %v3752 = vpop.trf.xlu0
    %v3753 = vpop.trf.xlu0
    %v3754 = vpop.trf.xlu0
    %v3755 = vpop.trf.xlu0
    %v3756 = vpop.trf.xlu0
    %v3757 = vpop.trf.xlu0
    %v3758 = vpop.trf.xlu0
    %v3759 = vpop.trf.xlu0
    %v3760 = vlaneseq
    %v3761 = vshrl.u32 %v3760, 7
    %v3762 = vsub.s32 0, %v3761
    %v3763 = vrot.slane %v3744, %v3762
    %vm3764 = vcmp.le.f32.partialorder %v2646, %v3763
    %vm3765 = vcmp.le.f32.partialorder %v2647, %v3763
    %vm3766 = vcmp.le.f32.partialorder %v2648, %v3763
    %vm3767 = vcmp.le.f32.partialorder %v2649, %v3763
    %vm3768 = vcmp.le.f32.partialorder %v2650, %v3763
    %vm3769 = vcmp.le.f32.partialorder %v2651, %v3763
    %vm3770 = vcmp.le.f32.partialorder %v2652, %v3763
    %vm3771 = vcmp.le.f32.partialorder %v2653, %v3763
    %vm3772 = vcmp.le.f32.partialorder %v2654, %v3763
    %vm3773 = vcmp.le.f32.partialorder %v2655, %v3763
    %vm3774 = vcmp.le.f32.partialorder %v2656, %v3763
    %vm3775 = vcmp.le.f32.partialorder %v2657, %v3763
    %vm3776 = vcmp.le.f32.partialorder %v2658, %v3763
    %vm3777 = vcmp.le.f32.partialorder %v2659, %v3763
    %vm3778 = vcmp.le.f32.partialorder %v2660, %v3763
    %vm3779 = vcmp.le.f32.partialorder %v2661, %v3763
    %v3780 = vsel %vm3764, 1, 0
    %v3781 = vsel %vm3765, 1, 0
    %v3782 = vsel %vm3766, 1, 0
    %v3783 = vsel %vm3767, 1, 0
    %v3784 = vsel %vm3768, 1, 0
    %v3785 = vsel %vm3769, 1, 0
    %v3786 = vsel %vm3770, 1, 0
    %v3787 = vsel %vm3771, 1, 0
    %v3788 = vsel %vm3772, 1, 0
    %v3789 = vsel %vm3773, 1, 0
    %v3790 = vsel %vm3774, 1, 0
    %v3791 = vsel %vm3775, 1, 0
    %v3792 = vsel %vm3776, 1, 0
    %v3793 = vsel %vm3777, 1, 0
    %v3794 = vsel %vm3778, 1, 0
    %v3795 = vsel %vm3779, 1, 0
    %v3796 = vcvt.s32.f32 %v3780
    %v3797 = vcvt.s32.f32 %v3781
    %v3798 = vcvt.s32.f32 %v3782
    %v3799 = vcvt.s32.f32 %v3783
    %v3800 = vcvt.s32.f32 %v3784
    %v3801 = vcvt.s32.f32 %v3785
    %v3802 = vcvt.s32.f32 %v3786
    %v3803 = vcvt.s32.f32 %v3787
    %v3804 = vcvt.s32.f32 %v3788
    %v3805 = vcvt.s32.f32 %v3789
    %v3806 = vcvt.s32.f32 %v3790
    %v3807 = vcvt.s32.f32 %v3791
    %v3808 = vcvt.s32.f32 %v3792
    %v3809 = vcvt.s32.f32 %v3793
    %v3810 = vcvt.s32.f32 %v3794
    %v3811 = vcvt.s32.f32 %v3795
    %v3812 = vmul.f32 %v3543, %v3796
    %v3813 = vmul.f32 %v3544, %v3797
    %v3814 = vmul.f32 %v3545, %v3798
    %v3815 = vmul.f32 %v3546, %v3799
    %v3816 = vmul.f32 %v3547, %v3800
    %v3817 = vmul.f32 %v3548, %v3801
    %v3818 = vmul.f32 %v3549, %v3802
    %v3819 = vmul.f32 %v3550, %v3803
    %v3820 = vmul.f32 %v3551, %v3804
    %v3821 = vmul.f32 %v3552, %v3805
    %v3822 = vmul.f32 %v3553, %v3806
    %v3823 = vmul.f32 %v3554, %v3807
    %v3824 = vmul.f32 %v3555, %v3808
    %v3825 = vmul.f32 %v3556, %v3809
    %v3826 = vmul.f32 %v3557, %v3810
    %v3827 = vmul.f32 %v3558, %v3811
    %3828 = vmatprep.subr.mxu0 0.0
    %3829 = vmatpush1.xpose.msra.mxu0 %v3812
    %3830 = vmatprep.subr.mxu0 0.0
    %3831 = vmatpush1.xpose.msra.mxu0 %v3813
    %3832 = vmatprep.subr.mxu0 0.0
    %3833 = vmatpush1.xpose.msra.mxu0 %v3814
    %3834 = vmatprep.subr.mxu0 0.0
    %3835 = vmatpush1.xpose.msra.mxu0 %v3815
    %3836 = vmatprep.subr.mxu0 0.0
    %3837 = vmatpush1.xpose.msra.mxu0 %v3816
    %3838 = vmatprep.subr.mxu0 0.0
    %3839 = vmatpush1.xpose.msra.mxu0 %v3817
    %3840 = vmatprep.subr.mxu0 0.0
    %3841 = vmatpush1.xpose.msra.mxu0 %v3818
    %3842 = vmatprep.subr.mxu0 0.0
    %3843 = vmatpush1.xpose.msra.mxu0 %v3819
    %3844 = vmatprep.subr.mxu0 0.0
    %3845 = vmatpush1.xpose.msra.mxu0 %v3820
    %3846 = vmatprep.subr.mxu0 0.0
    %3847 = vmatpush1.xpose.msra.mxu0 %v3821
    %3848 = vmatprep.subr.mxu0 0.0
    %3849 = vmatpush1.xpose.msra.mxu0 %v3822
    %3850 = vmatprep.subr.mxu0 0.0
    %3851 = vmatpush1.xpose.msra.mxu0 %v3823
    %3852 = vmatprep.subr.mxu0 0.0
    %3853 = vmatpush1.xpose.msra.mxu0 %v3824
    %3854 = vmatprep.subr.mxu0 0.0
    %3855 = vmatpush1.xpose.msra.mxu0 %v3825
    %3856 = vmatprep.subr.mxu0 0.0
    %3857 = vmatpush1.xpose.msra.mxu0 %v3826
    %3858 = vmatprep.subr.mxu0 0.0
    %3859 = vmatpush1.xpose.msra.mxu0 %v3827
    %3860 = vmatprep.subr.mxu0 0.0
    %3861 = vmatpush1.xpose.msra.mxu0 0.0
    %3862 = vmatprep.subr.mxu0 0.0
    %3863 = vmatpush1.xpose.msra.mxu0 0.0
    %3864 = vmatprep.subr.mxu0 0.0
    %3865 = vmatpush1.xpose.msra.mxu0 0.0
    %3866 = vmatprep.subr.mxu0 0.0
    %3867 = vmatpush1.xpose.msra.mxu0 0.0
    %3868 = vmatprep.subr.mxu0 0.0
    %3869 = vmatpush1.xpose.msra.mxu0 0.0
    %3870 = vmatprep.subr.mxu0 0.0
    %3871 = vmatpush1.xpose.msra.mxu0 0.0
    %3872 = vmatprep.subr.mxu0 0.0
    %3873 = vmatpush1.xpose.msra.mxu0 0.0
    %3874 = vmatprep.subr.mxu0 0.0
    %3875 = vmatpush1.xpose.msra.mxu0 0.0
    %3876 = vmatprep.subr.mxu0 0.0
    %3877 = vmatpush1.xpose.msra.mxu0 0.0
    %3878 = vmatprep.subr.mxu0 0.0
    %3879 = vmatpush1.xpose.msra.mxu0 0.0
    %3880 = vmatprep.subr.mxu0 0.0
    %3881 = vmatpush1.xpose.msra.mxu0 0.0
    %3882 = vmatprep.subr.mxu0 0.0
    %3883 = vmatpush1.xpose.msra.mxu0 0.0
    %3884 = vmatprep.subr.mxu0 0.0
    %3885 = vmatpush1.xpose.msra.mxu0 0.0
    %3886 = vmatprep.subr.mxu0 0.0
    %3887 = vmatpush1.xpose.msra.mxu0 0.0
    %3888 = vmatprep.subr.mxu0 0.0
    %3889 = vmatpush1.xpose.msra.mxu0 0.0
    %3890 = vmatprep.subr.mxu0 0.0
    %3891 = vmatpush1.xpose.msra.mxu0 0.0
    %3892 = vmatprep.mubr.f32.mxu0 0.0
    %3893 = vmatmul.mubr.f32.gmra.mrb[0].mxu0 %v3712
    %v3894 = vpop.f32.mrb[0].mxu0
    %v3895 = vadd.f32 0.0, %v3894
    %v3896 = vpop.f32.mrb[0].mxu0
    %3897 = vmatprep.mubr.f32.mxu0 0.0
    %3898 = vmatmul.mubr.f32.gmra.mrb[0].mxu0 %v3713
    %v3899 = vpop.f32.mrb[0].mxu0
    %v3900 = vadd.f32 0.0, %v3899
    %v3901 = vpop.f32.mrb[0].mxu0
    %3902 = vmatprep.mubr.f32.mxu0 0.0
    %3903 = vmatmul.mubr.f32.gmra.mrb[0].mxu0 %v3714
    %v3904 = vpop.f32.mrb[0].mxu0
    %v3905 = vadd.f32 0.0, %v3904
    %v3906 = vpop.f32.mrb[0].mxu0
    %3907 = vmatprep.mubr.f32.mxu0 0.0
    %3908 = vmatmul.mubr.f32.gmra.mrb[0].mxu0 %v3715
    %v3909 = vpop.f32.mrb[0].mxu0
    %v3910 = vadd.f32 0.0, %v3909
    %v3911 = vpop.f32.mrb[0].mxu0
    %3912 = vmatprep.mubr.f32.mxu0 0.0
    %3913 = vmatmul.mubr.f32.gmra.mrb[0].mxu0 %v3716
    %v3914 = vpop.f32.mrb[0].mxu0
    %v3915 = vadd.f32 0.0, %v3914
    %v3916 = vpop.f32.mrb[0].mxu0
    %3917 = vmatprep.mubr.f32.mxu0 0.0
    %3918 = vmatmul.mubr.f32.gmra.mrb[0].mxu0 %v3717
    %v3919 = vpop.f32.mrb[0].mxu0
    %v3920 = vadd.f32 0.0, %v3919
    %v3921 = vpop.f32.mrb[0].mxu0
    %3922 = vmatprep.mubr.f32.mxu0 0.0
    %3923 = vmatmul.mubr.f32.gmra.mrb[0].mxu0 %v3718
    %v3924 = vpop.f32.mrb[0].mxu0
    %v3925 = vadd.f32 0.0, %v3924
    %v3926 = vpop.f32.mrb[0].mxu0
    %3927 = vmatprep.mubr.f32.mxu0 0.0
    %3928 = vmatmul.mubr.f32.gmra.mrb[0].mxu0 %v3719
    %v3929 = vpop.f32.mrb[0].mxu0
    %v3930 = vadd.f32 0.0, %v3929
    %v3931 = vpop.f32.mrb[0].mxu0
    %3932 = vmatprep.mubr.f32.mxu0 0.0
    %3933 = vmatmul.mubr.f32.gmra.mrb[0].mxu0 %v3720
    %v3934 = vpop.f32.mrb[0].mxu0
    %v3935 = vadd.f32 0.0, %v3934
    %v3936 = vpop.f32.mrb[0].mxu0
    %3937 = vmatprep.mubr.f32.mxu0 0.0
    %3938 = vmatmul.mubr.f32.gmra.mrb[0].mxu0 %v3721
    %v3939 = vpop.f32.mrb[0].mxu0
    %v3940 = vadd.f32 0.0, %v3939
    %v3941 = vpop.f32.mrb[0].mxu0
    %3942 = vmatprep.mubr.f32.mxu0 0.0
    %3943 = vmatmul.mubr.f32.gmra.mrb[0].mxu0 %v3722
    %v3944 = vpop.f32.mrb[0].mxu0
    %v3945 = vadd.f32 0.0, %v3944
    %v3946 = vpop.f32.mrb[0].mxu0
    %3947 = vmatprep.mubr.f32.mxu0 0.0
    %3948 = vmatmul.mubr.f32.gmra.mrb[0].mxu0 %v3723
    %v3949 = vpop.f32.mrb[0].mxu0
    %v3950 = vadd.f32 0.0, %v3949
    %v3951 = vpop.f32.mrb[0].mxu0
    %3952 = vmatprep.mubr.f32.mxu0 0.0
    %3953 = vmatmul.mubr.f32.gmra.mrb[0].mxu0 %v3724
    %v3954 = vpop.f32.mrb[0].mxu0
    %v3955 = vadd.f32 0.0, %v3954
    %v3956 = vpop.f32.mrb[0].mxu0
    %3957 = vmatprep.mubr.f32.mxu0 0.0
    %3958 = vmatmul.mubr.f32.gmra.mrb[0].mxu0 %v3725
    %v3959 = vpop.f32.mrb[0].mxu0
    %v3960 = vadd.f32 0.0, %v3959
    %v3961 = vpop.f32.mrb[0].mxu0
    %3962 = vmatprep.mubr.f32.mxu0 0.0
    %3963 = vmatmul.mubr.f32.gmra.mrb[0].mxu0 %v3726
    %v3964 = vpop.f32.mrb[0].mxu0
    %v3965 = vadd.f32 0.0, %v3964
    %v3966 = vpop.f32.mrb[0].mxu0
    %3967 = vmatprep.mubr.f32.mxu0 0.0
    %3968 = vmatmul.mubr.f32.gmra.mrb[0].mxu0 %v3727
    %v3969 = vpop.f32.mrb[0].mxu0
    %v3970 = vadd.f32 0.0, %v3969
    %v3971 = vpop.f32.mrb[0].mxu0
    %3972 = vdwg.mxu0
    %3973 = vadd.xlane.f32.xlu0 %v3812
    %v3974 = vpop.xlane.xlu0 %3973
    %3975 = vadd.xlane.f32.xlu0 %v3813
    %v3976 = vpop.xlane.xlu0 %3975
    %3977 = vadd.xlane.f32.xlu0 %v3814
    %v3978 = vpop.xlane.xlu0 %3977
    %3979 = vadd.xlane.f32.xlu0 %v3815
    %v3980 = vpop.xlane.xlu0 %3979
    %3981 = vadd.xlane.f32.xlu0 %v3816
    %v3982 = vpop.xlane.xlu0 %3981
    %3983 = vadd.xlane.f32.xlu0 %v3817
    %v3984 = vpop.xlane.xlu0 %3983
    %3985 = vadd.xlane.f32.xlu0 %v3818
    %v3986 = vpop.xlane.xlu0 %3985
    %3987 = vadd.xlane.f32.xlu0 %v3819
    %v3988 = vpop.xlane.xlu0 %3987
    %3989 = vadd.xlane.f32.xlu0 %v3820
    %v3990 = vpop.xlane.xlu0 %3989
    %3991 = vadd.xlane.f32.xlu0 %v3821
    %v3992 = vpop.xlane.xlu0 %3991
    %3993 = vadd.xlane.f32.xlu0 %v3822
    %v3994 = vpop.xlane.xlu0 %3993
    %3995 = vadd.xlane.f32.xlu0 %v3823
    %v3996 = vpop.xlane.xlu0 %3995
    %3997 = vadd.xlane.f32.xlu0 %v3824
    %v3998 = vpop.xlane.xlu0 %3997
    %3999 = vadd.xlane.f32.xlu0 %v3825
    %v4000 = vpop.xlane.xlu0 %3999
    %4001 = vadd.xlane.f32.xlu0 %v3826
    %v4002 = vpop.xlane.xlu0 %4001
    %4003 = vadd.xlane.f32.xlu0 %v3827
    %v4004 = vpop.xlane.xlu0 %4003
    %v4005 = vrcp.pop %v3974
    %v4006 = vrcp.pop %v3976
    %v4007 = vrcp.pop %v3978
    %v4008 = vrcp.pop %v3980
    %v4009 = vrcp.pop %v3982
    %v4010 = vrcp.pop %v3984
    %v4011 = vrcp.pop %v3986
    %v4012 = vrcp.pop %v3988
    %v4013 = vrcp.pop %v3990
    %v4014 = vrcp.pop %v3992
    %v4015 = vrcp.pop %v3994
    %v4016 = vrcp.pop %v3996
    %v4017 = vrcp.pop %v3998
    %v4018 = vrcp.pop %v4000
    %v4019 = vrcp.pop %v4002
    %v4020 = vrcp.pop %v4004
    %v4021 = vmul.f32 %v3895, %v4005
    %v4022 = vmul.f32 %v3900, %v4006
    %v4023 = vmul.f32 %v3905, %v4007
    %v4024 = vmul.f32 %v3910, %v4008
    %v4025 = vmul.f32 %v3915, %v4009
    %v4026 = vmul.f32 %v3920, %v4010
    %v4027 = vmul.f32 %v3925, %v4011
    %v4028 = vmul.f32 %v3930, %v4012
    %v4029 = vmul.f32 %v3935, %v4013
    %v4030 = vmul.f32 %v3940, %v4014
    %v4031 = vmul.f32 %v3945, %v4015
    %v4032 = vmul.f32 %v3950, %v4016
    %v4033 = vmul.f32 %v3955, %v4017
    %v4034 = vmul.f32 %v3960, %v4018
    %v4035 = vmul.f32 %v3965, %v4019
    %v4036 = vmul.f32 %v3970, %v4020
    %4037 = vxpose.xlu0.b32.start [1/16] %v4021, 128
    %4038 = vxpose.xlu0.b32.cont [2/16] %v4022, 128
    %4039 = vxpose.xlu0.b32.cont [3/16] %v4023, 128
    %4040 = vxpose.xlu0.b32.cont [4/16] %v4024, 128
    %4041 = vxpose.xlu0.b32.cont [5/16] %v4025, 128
    %4042 = vxpose.xlu0.b32.cont [6/16] %v4026, 128
    %4043 = vxpose.xlu0.b32.cont [7/16] %v4027, 128
    %4044 = vxpose.xlu0.b32.cont [8/16] %v4028, 128
    %4045 = vxpose.xlu0.b32.cont [9/16] %v4029, 128
    %4046 = vxpose.xlu0.b32.cont [10/16] %v4030, 128
    %4047 = vxpose.xlu0.b32.cont [11/16] %v4031, 128
    %4048 = vxpose.xlu0.b32.cont [12/16] %v4032, 128
    %4049 = vxpose.xlu0.b32.cont [13/16] %v4033, 128
    %4050 = vxpose.xlu0.b32.cont [14/16] %v4034, 128
    %4051 = vxpose.xlu0.b32.cont [15/16] %v4035, 128
    %4052 = vxpose.xlu0.b32.end [16/16] %v4036, 128
    %v4053 = vpop.trf.xlu0
    %v4054 = vpop.trf.xlu0
    %v4055 = vpop.trf.xlu0
    %v4056 = vpop.trf.xlu0
    %v4057 = vpop.trf.xlu0
    %v4058 = vpop.trf.xlu0
    %v4059 = vpop.trf.xlu0
    %v4060 = vpop.trf.xlu0
    %v4061 = vpop.trf.xlu0
    %v4062 = vpop.trf.xlu0
    %v4063 = vpop.trf.xlu0
    %v4064 = vpop.trf.xlu0
    %v4065 = vpop.trf.xlu0
    %v4066 = vpop.trf.xlu0
    %v4067 = vpop.trf.xlu0
    %v4068 = vpop.trf.xlu0
    %v4069 = vadd.f32 %v4021, %v4053
    %v4070 = vadd.f32 %v4022, %v4054
    %v4071 = vadd.f32 %v4023, %v4055
    %v4072 = vadd.f32 %v4024, %v4056
    %v4073 = vadd.f32 %v4025, %v4057
    %v4074 = vadd.f32 %v4026, %v4058
    %v4075 = vadd.f32 %v4027, %v4059
    %v4076 = vadd.f32 %v4028, %v4060
    %v4077 = vadd.f32 %v4029, %v4061
    %v4078 = vadd.f32 %v4030, %v4062
    %v4079 = vadd.f32 %v4031, %v4063
    %v4080 = vadd.f32 %v4032, %v4064
    %v4081 = vadd.f32 %v4033, %v4065
    %v4082 = vadd.f32 %v4034, %v4066
    %v4083 = vadd.f32 %v4035, %v4067
    %v4084 = vadd.f32 %v4036, %v4068
    %v4085 = vmul.f32 %v4069, 0.5
    %v4086 = vmul.f32 %v4070, 0.5
    %v4087 = vmul.f32 %v4071, 0.5
    %v4088 = vmul.f32 %v4072, 0.5
    %v4089 = vmul.f32 %v4073, 0.5
    %v4090 = vmul.f32 %v4074, 0.5
    %v4091 = vmul.f32 %v4075, 0.5
    %v4092 = vmul.f32 %v4076, 0.5
    %v4093 = vmul.f32 %v4077, 0.5
    %v4094 = vmul.f32 %v4078, 0.5
    %v4095 = vmul.f32 %v4079, 0.5
    %v4096 = vmul.f32 %v4080, 0.5
    %v4097 = vmul.f32 %v4081, 0.5
    %v4098 = vmul.f32 %v4082, 0.5
    %v4099 = vmul.f32 %v4083, 0.5
    %v4100 = vmul.f32 %v4084, 0.5
    %v4101 = vmul.f32 %v2646, -1.0
    %v4102 = vmul.f32 %v2647, -1.0
    %v4103 = vmul.f32 %v2648, -1.0
    %v4104 = vmul.f32 %v2649, -1.0
    %v4105 = vmul.f32 %v2650, -1.0
    %v4106 = vmul.f32 %v2651, -1.0
    %v4107 = vmul.f32 %v2652, -1.0
    %v4108 = vmul.f32 %v2653, -1.0
    %v4109 = vmul.f32 %v2654, -1.0
    %v4110 = vmul.f32 %v2655, -1.0
    %v4111 = vmul.f32 %v2656, -1.0
    %v4112 = vmul.f32 %v2657, -1.0
    %v4113 = vmul.f32 %v2658, -1.0
    %v4114 = vmul.f32 %v2659, -1.0
    %v4115 = vmul.f32 %v2660, -1.0
    %v4116 = vmul.f32 %v2661, -1.0
    %v4117 = vmul.f32 %v4101, 1.442695
    %v4118 = vpow.pop %v4117
    %v4119 = vmul.f32 %v4102, 1.442695
    %v4120 = vpow.pop %v4119
    %v4121 = vmul.f32 %v4103, 1.442695
    %v4122 = vpow.pop %v4121
    %v4123 = vmul.f32 %v4104, 1.442695
    %v4124 = vpow.pop %v4123
    %v4125 = vmul.f32 %v4105, 1.442695
    %v4126 = vpow.pop %v4125
    %v4127 = vmul.f32 %v4106, 1.442695
    %v4128 = vpow.pop %v4127
    %v4129 = vmul.f32 %v4107, 1.442695
    %v4130 = vpow.pop %v4129
    %v4131 = vmul.f32 %v4108, 1.442695
    %v4132 = vpow.pop %v4131
    %v4133 = vmul.f32 %v4109, 1.442695
    %v4134 = vpow.pop %v4133
    %v4135 = vmul.f32 %v4110, 1.442695
    %v4136 = vpow.pop %v4135
    %v4137 = vmul.f32 %v4111, 1.442695
    %v4138 = vpow.pop %v4137
    %v4139 = vmul.f32 %v4112, 1.442695
    %v4140 = vpow.pop %v4139
    %v4141 = vmul.f32 %v4113, 1.442695
    %v4142 = vpow.pop %v4141
    %v4143 = vmul.f32 %v4114, 1.442695
    %v4144 = vpow.pop %v4143
    %v4145 = vmul.f32 %v4115, 1.442695
    %v4146 = vpow.pop %v4145
    %v4147 = vmul.f32 %v4116, 1.442695
    %v4148 = vpow.pop %v4147
    %v4149 = vmul.f32 %v4118, 0.5
    %v4150 = vmul.f32 %v4120, 0.5
    %v4151 = vmul.f32 %v4122, 0.5
    %v4152 = vmul.f32 %v4124, 0.5
    %v4153 = vmul.f32 %v4126, 0.5
    %v4154 = vmul.f32 %v4128, 0.5
    %v4155 = vmul.f32 %v4130, 0.5
    %v4156 = vmul.f32 %v4132, 0.5
    %v4157 = vmul.f32 %v4134, 0.5
    %v4158 = vmul.f32 %v4136, 0.5
    %v4159 = vmul.f32 %v4138, 0.5
    %v4160 = vmul.f32 %v4140, 0.5
    %v4161 = vmul.f32 %v4142, 0.5
    %v4162 = vmul.f32 %v4144, 0.5
    %v4163 = vmul.f32 %v4146, 0.5
    %v4164 = vmul.f32 %v4148, 0.5
    %v4165 = vmul.f32 %v4085, 0.5
    %v4166 = vmul.f32 %v4086, 0.5
    %v4167 = vmul.f32 %v4087, 0.5
    %v4168 = vmul.f32 %v4088, 0.5
    %v4169 = vmul.f32 %v4089, 0.5
    %v4170 = vmul.f32 %v4090, 0.5
    %v4171 = vmul.f32 %v4091, 0.5
    %v4172 = vmul.f32 %v4092, 0.5
    %v4173 = vmul.f32 %v4093, 0.5
    %v4174 = vmul.f32 %v4094, 0.5
    %v4175 = vmul.f32 %v4095, 0.5
    %v4176 = vmul.f32 %v4096, 0.5
    %v4177 = vmul.f32 %v4097, 0.5
    %v4178 = vmul.f32 %v4098, 0.5
    %v4179 = vmul.f32 %v4099, 0.5
    %v4180 = vmul.f32 %v4100, 0.5
    %v4181 = vadd.f32 %v4149, %v4165
    %v4182 = vadd.f32 %v4150, %v4166
    %v4183 = vadd.f32 %v4151, %v4167
    %v4184 = vadd.f32 %v4152, %v4168
    %v4185 = vadd.f32 %v4153, %v4169
    %v4186 = vadd.f32 %v4154, %v4170
    %v4187 = vadd.f32 %v4155, %v4171
    %v4188 = vadd.f32 %v4156, %v4172
    %v4189 = vadd.f32 %v4157, %v4173
    %v4190 = vadd.f32 %v4158, %v4174
    %v4191 = vadd.f32 %v4159, %v4175
    %v4192 = vadd.f32 %v4160, %v4176
    %v4193 = vadd.f32 %v4161, %v4177
    %v4194 = vadd.f32 %v4162, %v4178
    %v4195 = vadd.f32 %v4163, %v4179
    %v4196 = vadd.f32 %v4164, %v4180
    %4197 = vst [vmem:[#allocation16] sm:$0xff] %v4181
    %4198 = vst [vmem:[#allocation16 + $0x8] sm:$0xff] %v4182
    %4199 = vst [vmem:[#allocation16 + $0x10] sm:$0xff] %v4183
    %4200 = vst [vmem:[#allocation16 + $0x18] sm:$0xff] %v4184
    %4201 = vst [vmem:[#allocation16 + $0x20] sm:$0xff] %v4185
    %4202 = vst [vmem:[#allocation16 + $0x28] sm:$0xff] %v4186
    %4203 = vst [vmem:[#allocation16 + $0x30] sm:$0xff] %v4187
    %4204 = vst [vmem:[#allocation16 + $0x38] sm:$0xff] %v4188
    %4205 = vst [vmem:[#allocation16 + $0x40] sm:$0xff] %v4189
    %4206 = vst [vmem:[#allocation16 + $0x48] sm:$0xff] %v4190
    %4207 = vst [vmem:[#allocation16 + $0x50] sm:$0xff] %v4191
    %4208 = vst [vmem:[#allocation16 + $0x58] sm:$0xff] %v4192
    %4209 = vst [vmem:[#allocation16 + $0x60] sm:$0xff] %v4193
    %4210 = vst [vmem:[#allocation16 + $0x68] sm:$0xff] %v4194
    %4211 = vst [vmem:[#allocation16 + $0x70] sm:$0xff] %v4195
    %4212 = vst [vmem:[#allocation16 + $0x78] sm:$0xff] %v4196
    // Predicated region
    $region106: #{tpu_custom_call.1} parent=1 // pred_check
      _
    $region107: #{tpu_custom_call.1} parent=1 // pred_check_branch
      %4214 = sbr.rel (0) target = $region109
    $region108: #{tpu_custom_call.1} parent=1 // pred_region
      %s4216 = ssub.s32 2048, 2048
      %4217 = vsyncadd [#allocation5], %s4216
      %s4218 = sshll.u32 [#allocation15], 4
      %s4219 = int_to_ptr.vmem [resolvable:$true] %s4218
      %4224 = dma.vmem_to_hbm [thread:$0]  %s4219, 2048, %s19, [#allocation5], 128, 128, 8
    $region109: #{tpu_custom_call.1} parent=1 // pred_fallthru
      _
    // Predicated region
    $region110: #{tpu_custom_call.1} parent=1 // pred_check
      _
    $region111: #{tpu_custom_call.1} parent=1 // pred_check_branch
      %4226 = sbr.rel (0) target = $region113
    $region112: #{tpu_custom_call.1} parent=1 // pred_region
      %s4228 = ssub.s32 2048, 2048
      %4229 = vsyncadd [#allocation17], %s4228
      %s4230 = sshll.u32 [#allocation16], 4
      %s4231 = int_to_ptr.vmem [resolvable:$true] %s4230
      %4236 = dma.vmem_to_hbm [thread:$0]  %s4231, 2048, %s20, [#allocation17], 128, 128, 8
    $region113: #{tpu_custom_call.1} parent=1 // pred_fallthru
      _
    // Predicated region
    $region114: #{tpu_custom_call.1} parent=1 // pred_check
      _
    $region115: #{tpu_custom_call.1} parent=1 // pred_check_branch
      %4238 = sbr.rel (0) target = $region117
    $region116: #{tpu_custom_call.1} parent=1 // pred_region
      %4239 = dma.done [#allocation5], 2048
    $region117: #{tpu_custom_call.1} parent=1 // pred_fallthru
      _
    // Predicated region
    $region118: #{tpu_custom_call.1} parent=1 // pred_check
      _
    $region119: #{tpu_custom_call.1} parent=1 // pred_check_branch
      %4241 = sbr.rel (0) target = $region121
    $region120: #{tpu_custom_call.1} parent=1 // pred_region
      %4242 = dma.done [#allocation17], 2048
    $region121: #{tpu_custom_call.1} parent=1 // pred_fallthru
      _
    %4243 = vsyncpa [#allocation4], 1
    %4244 = vsyncpa [#allocation7], 1
    %4245 = vsyncpa [#allocation10], 1
    %4246 = vsyncpa [#allocation13], 1
    %4247 = vsyncpa [#allocation5], 1
    %4248 = vsyncpa [#allocation17], 1

</llo_original>
